<compile_context>
chip_gen: v5e
topology: v5e:2x2
jax: 0.10.0
libtpu: 0.0.40
codegen_flags: <defaults>
</compile_context>

<pallas_src>
import jax
import jax.numpy as jnp
from jax import lax
from jax.experimental import pallas as pl
from jax.experimental.pallas import tpu as pltpu

D_MODEL = 20
N_HEAD = 4
HEAD_DIM = D_MODEL // N_HEAD          # 5
SEQ = 10                              # Flatten -> 200 == SEQ * D_MODEL
FF = 2048                             # PyTorch default dim_feedforward
VOCAB = 20
EPS = 1e-5
HIDDEN_FC = 100
N_CLASSES = 2
NEG_BIG = -1e30


def _layer_norm(v, w, b):
    mean = jnp.mean(v, axis=-1, keepdims=True)
    var = jnp.mean((v - mean) ** 2, axis=-1, keepdims=True)
    return (v - mean) * lax.rsqrt(var + EPS) * w + b


def attns2_kernel(tok_ref, emb_ref, pe_ref, hmask_ref, rep4_ref, unpool_ref,
                  bias_ref, repd_ref, selx_ref, pool_ref,
                  wq, wk, wv, bq, bk, bv, wo, bo, n1w, n1b, n2w, n2b,
                  w1, b1, w2, b2,
                  fw1, fb1, fw2, fb2,
                  out_ref):
    """Whole forward pass for BT batch rows packed as an (M, D) slab."""
    f32 = jnp.float32

    # --- embedding gather (one-hot @ table, stays on the MXU) + pos. enc. ---
    tok = tok_ref[...]                                            # (M, 1) int32
    onehot = (tok == lax.broadcasted_iota(jnp.int32, (1, VOCAB), 1)).astype(f32)
    x = jnp.dot(onehot, emb_ref[...], preferred_element_type=f32) + pe_ref[...]

    # hoisted constants (precomputed host-side, loaded once)
    hmask = hmask_ref[...]            # (4M, D)  head-column masks, head-major rows
    rep4 = rep4_ref[...]              # (4M, M)  4 stacked identities
    unpool = unpool_ref[...]          # (M, 4M)  sums the 4 head blocks back
    bias = bias_ref[...]              # (4M, M)  0 same-sequence / -1e30 otherwise
    scale = 1.0 / (HEAD_DIM ** 0.5)

    for l in range(2):                # two encoder layers, unrolled
        x_in = x

        # --- self attention: all 4 heads in one score matmul + one softmax ---
        q = jnp.dot(x, wq[l], preferred_element_type=f32) + bq[l]   # (M, D)
        k = jnp.dot(x, wk[l], preferred_element_type=f32) + bk[l]
        v = jnp.dot(x, wv[l], preferred_element_type=f32) + bv[l]

        # stack heads on rows: row h*M+i holds q[i] masked to head h's columns
        q_stk = jnp.dot(rep4, q, preferred_element_type=f32) * hmask          # (4M, D)
        s = lax.dot_general(q_stk, k, (((1,), (1,)), ((), ())),
                            preferred_element_type=f32) * scale + bias        # (4M, M)
        s = s - jnp.max(s, axis=-1, keepdims=True)
        p = jnp.exp(s)
        p = p * pl.reciprocal(jnp.sum(p, axis=-1, keepdims=True), approx=True)

        u = jnp.dot(p, v, preferred_element_type=f32) * hmask                 # (4M, D)
        attn = jnp.dot(unpool, u, preferred_element_type=f32)                 # (M, D)

        a = jnp.dot(attn, wo[l], preferred_element_type=f32) + bo[l]
        y = _layer_norm(x + a, n1w[l], n1b[l])                                # post-norm

        # --- feed-forward ---
        h1 = jnp.maximum(
            jnp.dot(y, w1[l], preferred_element_type=f32) + b1[l], 0.0)
        h2 = jnp.dot(h1, w2[l], preferred_element_type=f32) + b2[l]
        z = _layer_norm(y + h2, n2w[l], n2b[l])

        x = z + x_in                  # module-level residual: attnX(x) + x

    # --- Flatten + fc head, as lane-dense matmuls (no in-kernel reshape) ---
    # xwide[m, s*D+d] = x[m, d] if s == m % SEQ else 0
    xwide = jnp.dot(x, repd_ref[...], preferred_element_type=f32) * selx_ref[...]   # (M, 200)
    t = jnp.dot(xwide, fw1[...], preferred_element_type=f32)                        # (M, 100)
    h = jnp.maximum(
        jnp.dot(pool_ref[...], t, preferred_element_type=f32) + fb1[...], 0.0)      # (BT, 100)
    out_ref[...] = jnp.dot(h, fw2[...], preferred_element_type=f32) + fb2[...]      # (BT, 2)


def _build_constants(bt):
    """Host-side constants for one grid step of BT batch rows (M = BT*SEQ)."""
    m = bt * SEQ

    # sinusoidal positional encoding (matches PostionalEncoding), tiled per row
    pos = jnp.arange(SEQ, dtype=jnp.float32)[:, None]
    two_i = jnp.arange(0, D_MODEL, 2, dtype=jnp.float32)
    ang = pos / (10000.0 ** (two_i / D_MODEL))                 # (SEQ, D/2)
    pe = jnp.zeros((SEQ, D_MODEL), jnp.float32)
    pe = pe.at[:, 0::2].set(jnp.sin(ang))
    pe = pe.at[:, 1::2].set(jnp.cos(ang))
    pe_big = jnp.tile(pe, (bt, 1))                             # (M, D)

    # head masks in head-major row order
    d_idx = jnp.arange(D_MODEL)
    row_h = jnp.repeat(jnp.arange(N_HEAD), m)                  # (4M,)
    hmask = (d_idx[None, :] // HEAD_DIM == row_h[:, None]).astype(jnp.float32)

    eye_m = jnp.eye(m, dtype=jnp.float32)
    rep4 = jnp.tile(eye_m, (N_HEAD, 1))                        # (4M, M)
    unpool = jnp.tile(eye_m, (1, N_HEAD))                      # (M, 4M)

    # block-diagonal "same sequence" additive bias, replicated per head
    seq_id = jnp.arange(m) // SEQ
    same = seq_id[:, None] == seq_id[None, :]
    bias_big = jnp.tile(jnp.where(same, 0.0, NEG_BIG).astype(jnp.float32),
                        (N_HEAD, 1))                           # (4M, M)

    # Flatten-as-matmul constants:
    #   repd[d, s*D+d'] = (d == d')       -> replicates the D columns SEQ times
    #   selx[m, s*D+d]  = (s == m % SEQ)  -> keeps only the block of row m's position
    #   pool[b, m]      = (m // SEQ == b) -> sums the SEQ rows of each batch row
    repd = jnp.tile(jnp.eye(D_MODEL, dtype=jnp.float32), (1, SEQ))        # (D, S*D)
    col_s = jnp.arange(SEQ * D_MODEL) // D_MODEL
    row_s = jnp.arange(m) % SEQ
    selx = (col_s[None, :] == row_s[:, None]).astype(jnp.float32)         # (M, S*D)
    pool = (seq_id[None, :] == jnp.arange(bt)[:, None]).astype(jnp.float32)  # (BT, M)

    return pe_big, hmask, rep4, unpool, bias_big, repd, selx, pool


def _full_spec(a):
    nd = a.ndim
    return pl.BlockSpec(a.shape, lambda i, nd=nd: (0,) * nd)


def attns2_forward(tokens, emb, stacked, fc):
    B, S = tokens.shape
    assert S == SEQ
    # pack 8 batch rows per grid step when possible, otherwise the whole batch
    BT = 8 if (B % 8 == 0) else B
    M = BT * SEQ

    consts = _build_constants(BT)
    tok2d = tokens.reshape(B * SEQ, 1).astype(jnp.int32)

    args = (tok2d, emb) + consts + tuple(stacked) + tuple(fc)
    in_specs = ([pl.BlockSpec((M, 1), lambda i: (i, 0)), _full_spec(emb)]
                + [_full_spec(a) for a in consts]
                + [_full_spec(a) for a in stacked]
                + [_full_spec(a) for a in fc])

    return pl.pallas_call(
        attns2_kernel,
        out_shape=jax.ShapeDtypeStruct((B, N_CLASSES), jnp.float32),
        grid=(B // BT,),
        in_specs=in_specs,
        out_specs=pl.BlockSpec((BT, N_CLASSES), lambda i: (i, 0)),
        compiler_params=pltpu.CompilerParams(
            dimension_semantics=("parallel",)),
    )(*args)


def init_params(key):
    """Deterministic synthetic parameters with the module's shapes.

    Every weight is stored pre-transposed to (in_dim, out_dim) so all in-kernel
    matmuls are plain `x @ W`.
    """
    def lin(k, fan_in, fan_out):
        bound = 1.0 / (fan_in ** 0.5)
        kw_, kb_ = jax.random.split(k)
        w = jax.random.uniform(kw_, (fan_in, fan_out), jnp.float32, -bound, bound)
        b = jax.random.uniform(kb_, (1, fan_out), jnp.float32, -bound, bound)
        return w, b

    keys = jax.random.split(key, 4)
    emb = jax.random.normal(keys[0], (VOCAB, D_MODEL), jnp.float32)

    layers = []
    for l in range(2):
        lk = jax.random.split(keys[1 + l], 6)
        wq, bq = lin(lk[0], D_MODEL, D_MODEL)      # slices of in_proj_weight.T
        wk, bk = lin(lk[1], D_MODEL, D_MODEL)
        wv, bv = lin(lk[2], D_MODEL, D_MODEL)
        wo, bo = lin(lk[3], D_MODEL, D_MODEL)      # out_proj.weight.T
        w1, b1 = lin(lk[4], D_MODEL, FF)           # linear1.weight.T
        w2, b2 = lin(lk[5], FF, D_MODEL)           # linear2.weight.T
        ones = jnp.ones((1, D_MODEL), jnp.float32)
        zeros = jnp.zeros((1, D_MODEL), jnp.float32)
        layers.append((wq, wk, wv, bq, bk, bv, wo, bo,
                       ones, zeros, ones, zeros, w1, b1, w2, b2))
    # stack layer 0 / layer 1 along a leading axis of size 2
    stacked = tuple(jnp.stack([layers[0][i], layers[1][i]]) for i in range(16))

    fk = jax.random.split(keys[3], 2)
    fw1, fb1 = lin(fk[0], SEQ * D_MODEL, HIDDEN_FC)    # fc[0].weight.T
    fw2, fb2 = lin(fk[1], HIDDEN_FC, N_CLASSES)        # fc[2].weight.T
    return emb, stacked, (fw1, fb1, fw2, fb2)


if __name__ == "__main__":
    key = jax.random.PRNGKey(0)
    pk, tk = jax.random.split(key)
    emb, stacked, fc = init_params(pk)

    B = 2
    tokens = jax.random.randint(tk, (B, SEQ), 0, VOCAB, dtype=jnp.int32)

    out = jax.jit(attns2_forward)(tokens, emb, stacked, fc)
    jax.block_until_ready(out)
    assert out.shape == (B, N_CLASSES) and out.dtype == jnp.float32
    print("KERNEL_OK")
</pallas_src>

<mosaic_0001>
module attributes {stable_mosaic.version = 11 : i64} {
  func.func @attns2_kernel(%arg0: i32, %arg1: memref<20x1xi32, #tpu.memory_space<vmem>>, %arg2: memref<20x20xf32, #tpu.memory_space<vmem>>, %arg3: memref<20x20xf32, #tpu.memory_space<vmem>>, %arg4: memref<80x20xf32, #tpu.memory_space<vmem>>, %arg5: memref<80x20xf32, #tpu.memory_space<vmem>>, %arg6: memref<20x80xf32, #tpu.memory_space<vmem>>, %arg7: memref<80x20xf32, #tpu.memory_space<vmem>>, %arg8: memref<20x200xf32, #tpu.memory_space<vmem>>, %arg9: memref<20x200xf32, #tpu.memory_space<vmem>>, %arg10: memref<2x20xf32, #tpu.memory_space<vmem>>, %arg11: memref<2x20x20xf32, #tpu.memory_space<vmem>>, %arg12: memref<2x20x20xf32, #tpu.memory_space<vmem>>, %arg13: memref<2x20x20xf32, #tpu.memory_space<vmem>>, %arg14: memref<2x1x20xf32, #tpu.memory_space<vmem>>, %arg15: memref<2x1x20xf32, #tpu.memory_space<vmem>>, %arg16: memref<2x1x20xf32, #tpu.memory_space<vmem>>, %arg17: memref<2x20x20xf32, #tpu.memory_space<vmem>>, %arg18: memref<2x1x20xf32, #tpu.memory_space<vmem>>, %arg19: memref<2x1x20xf32, #tpu.memory_space<vmem>>, %arg20: memref<2x1x20xf32, #tpu.memory_space<vmem>>, %arg21: memref<2x1x20xf32, #tpu.memory_space<vmem>>, %arg22: memref<2x1x20xf32, #tpu.memory_space<vmem>>, %arg23: memref<2x20x2048xf32, #tpu.memory_space<vmem>>, %arg24: memref<2x1x2048xf32, #tpu.memory_space<vmem>>, %arg25: memref<2x2048x20xf32, #tpu.memory_space<vmem>>, %arg26: memref<2x1x20xf32, #tpu.memory_space<vmem>>, %arg27: memref<200x100xf32, #tpu.memory_space<vmem>>, %arg28: memref<1x100xf32, #tpu.memory_space<vmem>>, %arg29: memref<100x2xf32, #tpu.memory_space<vmem>>, %arg30: memref<1x2xf32, #tpu.memory_space<vmem>>, %arg31: memref<2x2xf32, #tpu.memory_space<vmem>>) attributes {dimension_semantics = [#tpu.dimension_semantics<parallel>], iteration_bounds = array<i64: 1>, scalar_prefetch = 0 : i64, scratch_operands = 0 : i64, tpu.core_type = #tpu.core_type<tc>, window_params = [{transform_indices = @transform_0, window_bounds = array<i64: 20, 1>}, {pipeline_mode = #tpu.pipeline_mode<synchronous>, transform_indices = @transform_1, window_bounds = array<i64: 20, 20>}, {pipeline_mode = #tpu.pipeline_mode<synchronous>, transform_indices = @transform_2, window_bounds = array<i64: 20, 20>}, {pipeline_mode = #tpu.pipeline_mode<synchronous>, transform_indices = @transform_3, window_bounds = array<i64: 80, 20>}, {pipeline_mode = #tpu.pipeline_mode<synchronous>, transform_indices = @transform_4, window_bounds = array<i64: 80, 20>}, {pipeline_mode = #tpu.pipeline_mode<synchronous>, transform_indices = @transform_5, window_bounds = array<i64: 20, 80>}, {pipeline_mode = #tpu.pipeline_mode<synchronous>, transform_indices = @transform_6, window_bounds = array<i64: 80, 20>}, {pipeline_mode = #tpu.pipeline_mode<synchronous>, transform_indices = @transform_7, window_bounds = array<i64: 20, 200>}, {pipeline_mode = #tpu.pipeline_mode<synchronous>, transform_indices = @transform_8, window_bounds = array<i64: 20, 200>}, {pipeline_mode = #tpu.pipeline_mode<synchronous>, transform_indices = @transform_9, window_bounds = array<i64: 2, 20>}, {pipeline_mode = #tpu.pipeline_mode<synchronous>, transform_indices = @transform_10, window_bounds = array<i64: 2, 20, 20>}, {pipeline_mode = #tpu.pipeline_mode<synchronous>, transform_indices = @transform_11, window_bounds = array<i64: 2, 20, 20>}, {pipeline_mode = #tpu.pipeline_mode<synchronous>, transform_indices = @transform_12, window_bounds = array<i64: 2, 20, 20>}, {pipeline_mode = #tpu.pipeline_mode<synchronous>, transform_indices = @transform_13, window_bounds = array<i64: 2, 1, 20>}, {pipeline_mode = #tpu.pipeline_mode<synchronous>, transform_indices = @transform_14, window_bounds = array<i64: 2, 1, 20>}, {pipeline_mode = #tpu.pipeline_mode<synchronous>, transform_indices = @transform_15, window_bounds = array<i64: 2, 1, 20>}, {pipeline_mode = #tpu.pipeline_mode<synchronous>, transform_indices = @transform_16, window_bounds = array<i64: 2, 20, 20>}, {pipeline_mode = #tpu.pipeline_mode<synchronous>, transform_indices = @transform_17, window_bounds = array<i64: 2, 1, 20>}, {pipeline_mode = #tpu.pipeline_mode<synchronous>, transform_indices = @transform_18, window_bounds = array<i64: 2, 1, 20>}, {pipeline_mode = #tpu.pipeline_mode<synchronous>, transform_indices = @transform_19, window_bounds = array<i64: 2, 1, 20>}, {pipeline_mode = #tpu.pipeline_mode<synchronous>, transform_indices = @transform_20, window_bounds = array<i64: 2, 1, 20>}, {pipeline_mode = #tpu.pipeline_mode<synchronous>, transform_indices = @transform_21, window_bounds = array<i64: 2, 1, 20>}, {pipeline_mode = #tpu.pipeline_mode<synchronous>, transform_indices = @transform_22, window_bounds = array<i64: 2, 20, 2048>}, {pipeline_mode = #tpu.pipeline_mode<synchronous>, transform_indices = @transform_23, window_bounds = array<i64: 2, 1, 2048>}, {pipeline_mode = #tpu.pipeline_mode<synchronous>, transform_indices = @transform_24, window_bounds = array<i64: 2, 2048, 20>}, {pipeline_mode = #tpu.pipeline_mode<synchronous>, transform_indices = @transform_25, window_bounds = array<i64: 2, 1, 20>}, {pipeline_mode = #tpu.pipeline_mode<synchronous>, transform_indices = @transform_26, window_bounds = array<i64: 200, 100>}, {pipeline_mode = #tpu.pipeline_mode<synchronous>, transform_indices = @transform_27, window_bounds = array<i64: 1, 100>}, {pipeline_mode = #tpu.pipeline_mode<synchronous>, transform_indices = @transform_28, window_bounds = array<i64: 100, 2>}, {pipeline_mode = #tpu.pipeline_mode<synchronous>, transform_indices = @transform_29, window_bounds = array<i64: 1, 2>}, {transform_indices = @transform_30, window_bounds = array<i64: 2, 2>}]} {
    %c0 = arith.constant 0 : index
    %c0_0 = arith.constant 0 : index
    %0 = vector.load %arg1[%c0, %c0_0] : memref<20x1xi32, #tpu.memory_space<vmem>>, vector<20x1xi32>
    %1 = tpu.iota {dimensions = array<i32: 1>} : vector<1x20xi32>
    %2 = vector.broadcast %0 : vector<20x1xi32> to vector<20x20xi32>
    %3 = vector.broadcast %1 : vector<1x20xi32> to vector<20x20xi32>
    %4 = arith.cmpi eq, %2, %3 : vector<20x20xi32>
    %5 = arith.extui %4 : vector<20x20xi1> to vector<20x20xi32>
    %6 = arith.sitofp %5 : vector<20x20xi32> to vector<20x20xf32>
    %c0_1 = arith.constant 0 : index
    %c0_2 = arith.constant 0 : index
    %7 = vector.load %arg2[%c0_1, %c0_2] : memref<20x20xf32, #tpu.memory_space<vmem>>, vector<20x20xf32>
    %cst = arith.constant dense<0.000000e+00> : vector<20x20xf32>
    %8 = tpu.matmul %6, %7, %cst {dimension_numbers = #tpu.dot_dimension_numbers<[1], [0], [0], [1], [0, 0, 1, 1], [], []>} : vector<20x20xf32>, vector<20x20xf32>, vector<20x20xf32> -> vector<20x20xf32>
    %c0_3 = arith.constant 0 : index
    %c0_4 = arith.constant 0 : index
    %9 = vector.load %arg3[%c0_3, %c0_4] : memref<20x20xf32, #tpu.memory_space<vmem>>, vector<20x20xf32>
    %10 = arith.addf %8, %9 : vector<20x20xf32>
    %c0_5 = arith.constant 0 : index
    %c0_6 = arith.constant 0 : index
    %11 = vector.load %arg4[%c0_5, %c0_6] : memref<80x20xf32, #tpu.memory_space<vmem>>, vector<80x20xf32>
    %c0_7 = arith.constant 0 : index
    %c0_8 = arith.constant 0 : index
    %12 = vector.load %arg5[%c0_7, %c0_8] : memref<80x20xf32, #tpu.memory_space<vmem>>, vector<80x20xf32>
    %c0_9 = arith.constant 0 : index
    %c0_10 = arith.constant 0 : index
    %13 = vector.load %arg6[%c0_9, %c0_10] : memref<20x80xf32, #tpu.memory_space<vmem>>, vector<20x80xf32>
    %c0_11 = arith.constant 0 : index
    %c0_12 = arith.constant 0 : index
    %14 = vector.load %arg7[%c0_11, %c0_12] : memref<80x20xf32, #tpu.memory_space<vmem>>, vector<80x20xf32>
    %c0_13 = arith.constant 0 : index
    %c0_14 = arith.constant 0 : index
    %c0_15 = arith.constant 0 : index
    %15 = vector.load %arg11[%c0_13, %c0_14, %c0_15] : memref<2x20x20xf32, #tpu.memory_space<vmem>>, vector<1x20x20xf32>
    %16 = vector.shape_cast %15 : vector<1x20x20xf32> to vector<20x20xf32>
    %cst_16 = arith.constant dense<0.000000e+00> : vector<20x20xf32>
    %17 = tpu.matmul %10, %16, %cst_16 {dimension_numbers = #tpu.dot_dimension_numbers<[1], [0], [0], [1], [0, 0, 1, 1], [], []>} : vector<20x20xf32>, vector<20x20xf32>, vector<20x20xf32> -> vector<20x20xf32>
    %c0_17 = arith.constant 0 : index
    %c0_18 = arith.constant 0 : index
    %c0_19 = arith.constant 0 : index
    %18 = vector.load %arg14[%c0_17, %c0_18, %c0_19] : memref<2x1x20xf32, #tpu.memory_space<vmem>>, vector<1x1x20xf32>
    %19 = vector.shape_cast %18 : vector<1x1x20xf32> to vector<1x20xf32>
    %20 = vector.broadcast %19 : vector<1x20xf32> to vector<20x20xf32>
    %21 = arith.addf %17, %20 : vector<20x20xf32>
    %c0_20 = arith.constant 0 : index
    %c0_21 = arith.constant 0 : index
    %c0_22 = arith.constant 0 : index
    %22 = vector.load %arg12[%c0_20, %c0_21, %c0_22] : memref<2x20x20xf32, #tpu.memory_space<vmem>>, vector<1x20x20xf32>
    %23 = vector.shape_cast %22 : vector<1x20x20xf32> to vector<20x20xf32>
    %cst_23 = arith.constant dense<0.000000e+00> : vector<20x20xf32>
    %24 = tpu.matmul %10, %23, %cst_23 {dimension_numbers = #tpu.dot_dimension_numbers<[1], [0], [0], [1], [0, 0, 1, 1], [], []>} : vector<20x20xf32>, vector<20x20xf32>, vector<20x20xf32> -> vector<20x20xf32>
    %c0_24 = arith.constant 0 : index
    %c0_25 = arith.constant 0 : index
    %c0_26 = arith.constant 0 : index
    %25 = vector.load %arg15[%c0_24, %c0_25, %c0_26] : memref<2x1x20xf32, #tpu.memory_space<vmem>>, vector<1x1x20xf32>
    %26 = vector.shape_cast %25 : vector<1x1x20xf32> to vector<1x20xf32>
    %27 = vector.broadcast %26 : vector<1x20xf32> to vector<20x20xf32>
    %28 = arith.addf %24, %27 : vector<20x20xf32>
    %c0_27 = arith.constant 0 : index
    %c0_28 = arith.constant 0 : index
    %c0_29 = arith.constant 0 : index
    %29 = vector.load %arg13[%c0_27, %c0_28, %c0_29] : memref<2x20x20xf32, #tpu.memory_space<vmem>>, vector<1x20x20xf32>
    %30 = vector.shape_cast %29 : vector<1x20x20xf32> to vector<20x20xf32>
    %cst_30 = arith.constant dense<0.000000e+00> : vector<20x20xf32>
    %31 = tpu.matmul %10, %30, %cst_30 {dimension_numbers = #tpu.dot_dimension_numbers<[1], [0], [0], [1], [0, 0, 1, 1], [], []>} : vector<20x20xf32>, vector<20x20xf32>, vector<20x20xf32> -> vector<20x20xf32>
    %c0_31 = arith.constant 0 : index
    %c0_32 = arith.constant 0 : index
    %c0_33 = arith.constant 0 : index
    %32 = vector.load %arg16[%c0_31, %c0_32, %c0_33] : memref<2x1x20xf32, #tpu.memory_space<vmem>>, vector<1x1x20xf32>
    %33 = vector.shape_cast %32 : vector<1x1x20xf32> to vector<1x20xf32>
    %34 = vector.broadcast %33 : vector<1x20xf32> to vector<20x20xf32>
    %35 = arith.addf %31, %34 : vector<20x20xf32>
    %cst_34 = arith.constant dense<0.000000e+00> : vector<80x20xf32>
    %36 = tpu.matmul %12, %21, %cst_34 {dimension_numbers = #tpu.dot_dimension_numbers<[1], [0], [0], [1], [0, 0, 1, 1], [], []>} : vector<80x20xf32>, vector<20x20xf32>, vector<80x20xf32> -> vector<80x20xf32>
    %37 = arith.mulf %36, %11 : vector<80x20xf32>
    %cst_35 = arith.constant dense<0.000000e+00> : vector<80x20xf32>
    %38 = tpu.matmul %37, %28, %cst_35 {dimension_numbers = #tpu.dot_dimension_numbers<[1], [1], [0], [0], [0, 0, 1, 0], [], []>} : vector<80x20xf32>, vector<20x20xf32>, vector<80x20xf32> -> vector<80x20xf32>
    %cst_36 = arith.constant 0.44721359 : f32
    %39 = vector.broadcast %cst_36 : f32 to vector<80x20xf32>
    %40 = arith.mulf %38, %39 : vector<80x20xf32>
    %41 = arith.addf %40, %14 : vector<80x20xf32>
    %cst_37 = arith.constant dense<0xFF800000> : vector<80xf32>
    %42 = vector.multi_reduction <maximumf>, %41, %cst_37 [1] : vector<80x20xf32> to vector<80xf32>
    %43 = vector.shape_cast %42 : vector<80xf32> to vector<80x1xf32>
    %44 = vector.broadcast %43 : vector<80x1xf32> to vector<80x20xf32>
    %45 = arith.subf %41, %44 : vector<80x20xf32>
    %46 = math.exp %45 : vector<80x20xf32>
    %cst_38 = arith.constant dense<0.000000e+00> : vector<80xf32>
    %47 = vector.multi_reduction <add>, %46, %cst_38 [1] : vector<80x20xf32> to vector<80xf32>
    %48 = vector.shape_cast %47 : vector<80xf32> to vector<80x1xf32>
    %49 = tpu.reciprocal %48 {approx = true} : vector<80x1xf32> -> vector<80x1xf32>
    %50 = vector.broadcast %49 : vector<80x1xf32> to vector<80x20xf32>
    %51 = arith.mulf %46, %50 : vector<80x20xf32>
    %cst_39 = arith.constant dense<0.000000e+00> : vector<80x20xf32>
    %52 = tpu.matmul %51, %35, %cst_39 {dimension_numbers = #tpu.dot_dimension_numbers<[1], [0], [0], [1], [0, 0, 1, 1], [], []>} : vector<80x20xf32>, vector<20x20xf32>, vector<80x20xf32> -> vector<80x20xf32>
    %53 = arith.mulf %52, %11 : vector<80x20xf32>
    %cst_40 = arith.constant dense<0.000000e+00> : vector<20x20xf32>
    %54 = tpu.matmul %13, %53, %cst_40 {dimension_numbers = #tpu.dot_dimension_numbers<[1], [0], [0], [1], [0, 0, 1, 1], [], []>} : vector<20x80xf32>, vector<80x20xf32>, vector<20x20xf32> -> vector<20x20xf32>
    %c0_41 = arith.constant 0 : index
    %c0_42 = arith.constant 0 : index
    %c0_43 = arith.constant 0 : index
    %55 = vector.load %arg17[%c0_41, %c0_42, %c0_43] : memref<2x20x20xf32, #tpu.memory_space<vmem>>, vector<1x20x20xf32>
    %56 = vector.shape_cast %55 : vector<1x20x20xf32> to vector<20x20xf32>
    %cst_44 = arith.constant dense<0.000000e+00> : vector<20x20xf32>
    %57 = tpu.matmul %54, %56, %cst_44 {dimension_numbers = #tpu.dot_dimension_numbers<[1], [0], [0], [1], [0, 0, 1, 1], [], []>} : vector<20x20xf32>, vector<20x20xf32>, vector<20x20xf32> -> vector<20x20xf32>
    %c0_45 = arith.constant 0 : index
    %c0_46 = arith.constant 0 : index
    %c0_47 = arith.constant 0 : index
    %58 = vector.load %arg18[%c0_45, %c0_46, %c0_47] : memref<2x1x20xf32, #tpu.memory_space<vmem>>, vector<1x1x20xf32>
    %59 = vector.shape_cast %58 : vector<1x1x20xf32> to vector<1x20xf32>
    %60 = vector.broadcast %59 : vector<1x20xf32> to vector<20x20xf32>
    %61 = arith.addf %57, %60 : vector<20x20xf32>
    %62 = arith.addf %10, %61 : vector<20x20xf32>
    %c0_48 = arith.constant 0 : index
    %c0_49 = arith.constant 0 : index
    %c0_50 = arith.constant 0 : index
    %63 = vector.load %arg19[%c0_48, %c0_49, %c0_50] : memref<2x1x20xf32, #tpu.memory_space<vmem>>, vector<1x1x20xf32>
    %64 = vector.shape_cast %63 : vector<1x1x20xf32> to vector<1x20xf32>
    %c0_51 = arith.constant 0 : index
    %c0_52 = arith.constant 0 : index
    %c0_53 = arith.constant 0 : index
    %65 = vector.load %arg20[%c0_51, %c0_52, %c0_53] : memref<2x1x20xf32, #tpu.memory_space<vmem>>, vector<1x1x20xf32>
    %66 = vector.shape_cast %65 : vector<1x1x20xf32> to vector<1x20xf32>
    %cst_54 = arith.constant dense<0.000000e+00> : vector<20xf32>
    %67 = vector.multi_reduction <add>, %62, %cst_54 [1] : vector<20x20xf32> to vector<20xf32>
    %68 = vector.shape_cast %67 : vector<20xf32> to vector<20x1xf32>
    %cst_55 = arith.constant 2.000000e+01 : f32
    %69 = vector.broadcast %cst_55 : f32 to vector<20x1xf32>
    %70 = arith.divf %68, %69 : vector<20x1xf32>
    %71 = vector.broadcast %70 : vector<20x1xf32> to vector<20x20xf32>
    %72 = arith.subf %62, %71 : vector<20x20xf32>
    %73 = arith.mulf %72, %72 : vector<20x20xf32>
    %cst_56 = arith.constant dense<0.000000e+00> : vector<20xf32>
    %74 = vector.multi_reduction <add>, %73, %cst_56 [1] : vector<20x20xf32> to vector<20xf32>
    %75 = vector.shape_cast %74 : vector<20xf32> to vector<20x1xf32>
    %cst_57 = arith.constant 2.000000e+01 : f32
    %76 = vector.broadcast %cst_57 : f32 to vector<20x1xf32>
    %77 = arith.divf %75, %76 : vector<20x1xf32>
    %78 = vector.broadcast %70 : vector<20x1xf32> to vector<20x20xf32>
    %79 = arith.subf %62, %78 : vector<20x20xf32>
    %cst_58 = arith.constant 9.99999974E-6 : f32
    %80 = vector.broadcast %cst_58 : f32 to vector<20x1xf32>
    %81 = arith.addf %77, %80 : vector<20x1xf32>
    %82 = math.rsqrt %81 : vector<20x1xf32>
    %83 = vector.broadcast %82 : vector<20x1xf32> to vector<20x20xf32>
    %84 = arith.mulf %79, %83 : vector<20x20xf32>
    %85 = vector.broadcast %64 : vector<1x20xf32> to vector<20x20xf32>
    %86 = arith.mulf %84, %85 : vector<20x20xf32>
    %87 = vector.broadcast %66 : vector<1x20xf32> to vector<20x20xf32>
    %88 = arith.addf %86, %87 : vector<20x20xf32>
    %c0_59 = arith.constant 0 : index
    %c0_60 = arith.constant 0 : index
    %c0_61 = arith.constant 0 : index
    %89 = vector.load %arg23[%c0_59, %c0_60, %c0_61] : memref<2x20x2048xf32, #tpu.memory_space<vmem>>, vector<1x20x2048xf32>
    %90 = vector.shape_cast %89 : vector<1x20x2048xf32> to vector<20x2048xf32>
    %cst_62 = arith.constant dense<0.000000e+00> : vector<20x2048xf32>
    %91 = tpu.matmul %88, %90, %cst_62 {dimension_numbers = #tpu.dot_dimension_numbers<[1], [0], [0], [1], [0, 0, 1, 1], [], []>} : vector<20x20xf32>, vector<20x2048xf32>, vector<20x2048xf32> -> vector<20x2048xf32>
    %c0_63 = arith.constant 0 : index
    %c0_64 = arith.constant 0 : index
    %c0_65 = arith.constant 0 : index
    %92 = vector.load %arg24[%c0_63, %c0_64, %c0_65] : memref<2x1x2048xf32, #tpu.memory_space<vmem>>, vector<1x1x2048xf32>
    %93 = vector.shape_cast %92 : vector<1x1x2048xf32> to vector<1x2048xf32>
    %94 = vector.broadcast %93 : vector<1x2048xf32> to vector<20x2048xf32>
    %95 = arith.addf %91, %94 : vector<20x2048xf32>
    %cst_66 = arith.constant 0.000000e+00 : f32
    %96 = vector.broadcast %cst_66 : f32 to vector<20x2048xf32>
    %97 = arith.maximumf %95, %96 : vector<20x2048xf32>
    %c0_67 = arith.constant 0 : index
    %c0_68 = arith.constant 0 : index
    %c0_69 = arith.constant 0 : index
    %98 = vector.load %arg25[%c0_67, %c0_68, %c0_69] : memref<2x2048x20xf32, #tpu.memory_space<vmem>>, vector<1x2048x20xf32>
    %99 = vector.shape_cast %98 : vector<1x2048x20xf32> to vector<2048x20xf32>
    %cst_70 = arith.constant dense<0.000000e+00> : vector<20x20xf32>
    %100 = tpu.matmul %97, %99, %cst_70 {dimension_numbers = #tpu.dot_dimension_numbers<[1], [0], [0], [1], [0, 0, 1, 1], [], []>} : vector<20x2048xf32>, vector<2048x20xf32>, vector<20x20xf32> -> vector<20x20xf32>
    %c0_71 = arith.constant 0 : index
    %c0_72 = arith.constant 0 : index
    %c0_73 = arith.constant 0 : index
    %101 = vector.load %arg26[%c0_71, %c0_72, %c0_73] : memref<2x1x20xf32, #tpu.memory_space<vmem>>, vector<1x1x20xf32>
    %102 = vector.shape_cast %101 : vector<1x1x20xf32> to vector<1x20xf32>
    %103 = vector.broadcast %102 : vector<1x20xf32> to vector<20x20xf32>
    %104 = arith.addf %100, %103 : vector<20x20xf32>
    %105 = arith.addf %88, %104 : vector<20x20xf32>
    %c0_74 = arith.constant 0 : index
    %c0_75 = arith.constant 0 : index
    %c0_76 = arith.constant 0 : index
    %106 = vector.load %arg21[%c0_74, %c0_75, %c0_76] : memref<2x1x20xf32, #tpu.memory_space<vmem>>, vector<1x1x20xf32>
    %107 = vector.shape_cast %106 : vector<1x1x20xf32> to vector<1x20xf32>
    %c0_77 = arith.constant 0 : index
    %c0_78 = arith.constant 0 : index
    %c0_79 = arith.constant 0 : index
    %108 = vector.load %arg22[%c0_77, %c0_78, %c0_79] : memref<2x1x20xf32, #tpu.memory_space<vmem>>, vector<1x1x20xf32>
    %109 = vector.shape_cast %108 : vector<1x1x20xf32> to vector<1x20xf32>
    %cst_80 = arith.constant dense<0.000000e+00> : vector<20xf32>
    %110 = vector.multi_reduction <add>, %105, %cst_80 [1] : vector<20x20xf32> to vector<20xf32>
    %111 = vector.shape_cast %110 : vector<20xf32> to vector<20x1xf32>
    %cst_81 = arith.constant 2.000000e+01 : f32
    %112 = vector.broadcast %cst_81 : f32 to vector<20x1xf32>
    %113 = arith.divf %111, %112 : vector<20x1xf32>
    %114 = vector.broadcast %113 : vector<20x1xf32> to vector<20x20xf32>
    %115 = arith.subf %105, %114 : vector<20x20xf32>
    %116 = arith.mulf %115, %115 : vector<20x20xf32>
    %cst_82 = arith.constant dense<0.000000e+00> : vector<20xf32>
    %117 = vector.multi_reduction <add>, %116, %cst_82 [1] : vector<20x20xf32> to vector<20xf32>
    %118 = vector.shape_cast %117 : vector<20xf32> to vector<20x1xf32>
    %cst_83 = arith.constant 2.000000e+01 : f32
    %119 = vector.broadcast %cst_83 : f32 to vector<20x1xf32>
    %120 = arith.divf %118, %119 : vector<20x1xf32>
    %121 = vector.broadcast %113 : vector<20x1xf32> to vector<20x20xf32>
    %122 = arith.subf %105, %121 : vector<20x20xf32>
    %cst_84 = arith.constant 9.99999974E-6 : f32
    %123 = vector.broadcast %cst_84 : f32 to vector<20x1xf32>
    %124 = arith.addf %120, %123 : vector<20x1xf32>
    %125 = math.rsqrt %124 : vector<20x1xf32>
    %126 = vector.broadcast %125 : vector<20x1xf32> to vector<20x20xf32>
    %127 = arith.mulf %122, %126 : vector<20x20xf32>
    %128 = vector.broadcast %107 : vector<1x20xf32> to vector<20x20xf32>
    %129 = arith.mulf %127, %128 : vector<20x20xf32>
    %130 = vector.broadcast %109 : vector<1x20xf32> to vector<20x20xf32>
    %131 = arith.addf %129, %130 : vector<20x20xf32>
    %132 = arith.addf %131, %10 : vector<20x20xf32>
    %c1 = arith.constant 1 : index
    %c0_85 = arith.constant 0 : index
    %c0_86 = arith.constant 0 : index
    %133 = vector.load %arg11[%c1, %c0_85, %c0_86] : memref<2x20x20xf32, #tpu.memory_space<vmem>>, vector<1x20x20xf32>
    %134 = vector.shape_cast %133 : vector<1x20x20xf32> to vector<20x20xf32>
    %cst_87 = arith.constant dense<0.000000e+00> : vector<20x20xf32>
    %135 = tpu.matmul %132, %134, %cst_87 {dimension_numbers = #tpu.dot_dimension_numbers<[1], [0], [0], [1], [0, 0, 1, 1], [], []>} : vector<20x20xf32>, vector<20x20xf32>, vector<20x20xf32> -> vector<20x20xf32>
    %c1_88 = arith.constant 1 : index
    %c0_89 = arith.constant 0 : index
    %c0_90 = arith.constant 0 : index
    %136 = vector.load %arg14[%c1_88, %c0_89, %c0_90] : memref<2x1x20xf32, #tpu.memory_space<vmem>>, vector<1x1x20xf32>
    %137 = vector.shape_cast %136 : vector<1x1x20xf32> to vector<1x20xf32>
    %138 = vector.broadcast %137 : vector<1x20xf32> to vector<20x20xf32>
    %139 = arith.addf %135, %138 : vector<20x20xf32>
    %c1_91 = arith.constant 1 : index
    %c0_92 = arith.constant 0 : index
    %c0_93 = arith.constant 0 : index
    %140 = vector.load %arg12[%c1_91, %c0_92, %c0_93] : memref<2x20x20xf32, #tpu.memory_space<vmem>>, vector<1x20x20xf32>
    %141 = vector.shape_cast %140 : vector<1x20x20xf32> to vector<20x20xf32>
    %cst_94 = arith.constant dense<0.000000e+00> : vector<20x20xf32>
    %142 = tpu.matmul %132, %141, %cst_94 {dimension_numbers = #tpu.dot_dimension_numbers<[1], [0], [0], [1], [0, 0, 1, 1], [], []>} : vector<20x20xf32>, vector<20x20xf32>, vector<20x20xf32> -> vector<20x20xf32>
    %c1_95 = arith.constant 1 : index
    %c0_96 = arith.constant 0 : index
    %c0_97 = arith.constant 0 : index
    %143 = vector.load %arg15[%c1_95, %c0_96, %c0_97] : memref<2x1x20xf32, #tpu.memory_space<vmem>>, vector<1x1x20xf32>
    %144 = vector.shape_cast %143 : vector<1x1x20xf32> to vector<1x20xf32>
    %145 = vector.broadcast %144 : vector<1x20xf32> to vector<20x20xf32>
    %146 = arith.addf %142, %145 : vector<20x20xf32>
    %c1_98 = arith.constant 1 : index
    %c0_99 = arith.constant 0 : index
    %c0_100 = arith.constant 0 : index
    %147 = vector.load %arg13[%c1_98, %c0_99, %c0_100] : memref<2x20x20xf32, #tpu.memory_space<vmem>>, vector<1x20x20xf32>
    %148 = vector.shape_cast %147 : vector<1x20x20xf32> to vector<20x20xf32>
    %cst_101 = arith.constant dense<0.000000e+00> : vector<20x20xf32>
    %149 = tpu.matmul %132, %148, %cst_101 {dimension_numbers = #tpu.dot_dimension_numbers<[1], [0], [0], [1], [0, 0, 1, 1], [], []>} : vector<20x20xf32>, vector<20x20xf32>, vector<20x20xf32> -> vector<20x20xf32>
    %c1_102 = arith.constant 1 : index
    %c0_103 = arith.constant 0 : index
    %c0_104 = arith.constant 0 : index
    %150 = vector.load %arg16[%c1_102, %c0_103, %c0_104] : memref<2x1x20xf32, #tpu.memory_space<vmem>>, vector<1x1x20xf32>
    %151 = vector.shape_cast %150 : vector<1x1x20xf32> to vector<1x20xf32>
    %152 = vector.broadcast %151 : vector<1x20xf32> to vector<20x20xf32>
    %153 = arith.addf %149, %152 : vector<20x20xf32>
    %cst_105 = arith.constant dense<0.000000e+00> : vector<80x20xf32>
    %154 = tpu.matmul %12, %139, %cst_105 {dimension_numbers = #tpu.dot_dimension_numbers<[1], [0], [0], [1], [0, 0, 1, 1], [], []>} : vector<80x20xf32>, vector<20x20xf32>, vector<80x20xf32> -> vector<80x20xf32>
    %155 = arith.mulf %154, %11 : vector<80x20xf32>
    %cst_106 = arith.constant dense<0.000000e+00> : vector<80x20xf32>
    %156 = tpu.matmul %155, %146, %cst_106 {dimension_numbers = #tpu.dot_dimension_numbers<[1], [1], [0], [0], [0, 0, 1, 0], [], []>} : vector<80x20xf32>, vector<20x20xf32>, vector<80x20xf32> -> vector<80x20xf32>
    %cst_107 = arith.constant 0.44721359 : f32
    %157 = vector.broadcast %cst_107 : f32 to vector<80x20xf32>
    %158 = arith.mulf %156, %157 : vector<80x20xf32>
    %159 = arith.addf %158, %14 : vector<80x20xf32>
    %cst_108 = arith.constant dense<0xFF800000> : vector<80xf32>
    %160 = vector.multi_reduction <maximumf>, %159, %cst_108 [1] : vector<80x20xf32> to vector<80xf32>
    %161 = vector.shape_cast %160 : vector<80xf32> to vector<80x1xf32>
    %162 = vector.broadcast %161 : vector<80x1xf32> to vector<80x20xf32>
    %163 = arith.subf %159, %162 : vector<80x20xf32>
    %164 = math.exp %163 : vector<80x20xf32>
    %cst_109 = arith.constant dense<0.000000e+00> : vector<80xf32>
    %165 = vector.multi_reduction <add>, %164, %cst_109 [1] : vector<80x20xf32> to vector<80xf32>
    %166 = vector.shape_cast %165 : vector<80xf32> to vector<80x1xf32>
    %167 = tpu.reciprocal %166 {approx = true} : vector<80x1xf32> -> vector<80x1xf32>
    %168 = vector.broadcast %167 : vector<80x1xf32> to vector<80x20xf32>
    %169 = arith.mulf %164, %168 : vector<80x20xf32>
    %cst_110 = arith.constant dense<0.000000e+00> : vector<80x20xf32>
    %170 = tpu.matmul %169, %153, %cst_110 {dimension_numbers = #tpu.dot_dimension_numbers<[1], [0], [0], [1], [0, 0, 1, 1], [], []>} : vector<80x20xf32>, vector<20x20xf32>, vector<80x20xf32> -> vector<80x20xf32>
    %171 = arith.mulf %170, %11 : vector<80x20xf32>
    %cst_111 = arith.constant dense<0.000000e+00> : vector<20x20xf32>
    %172 = tpu.matmul %13, %171, %cst_111 {dimension_numbers = #tpu.dot_dimension_numbers<[1], [0], [0], [1], [0, 0, 1, 1], [], []>} : vector<20x80xf32>, vector<80x20xf32>, vector<20x20xf32> -> vector<20x20xf32>
    %c1_112 = arith.constant 1 : index
    %c0_113 = arith.constant 0 : index
    %c0_114 = arith.constant 0 : index
    %173 = vector.load %arg17[%c1_112, %c0_113, %c0_114] : memref<2x20x20xf32, #tpu.memory_space<vmem>>, vector<1x20x20xf32>
    %174 = vector.shape_cast %173 : vector<1x20x20xf32> to vector<20x20xf32>
    %cst_115 = arith.constant dense<0.000000e+00> : vector<20x20xf32>
    %175 = tpu.matmul %172, %174, %cst_115 {dimension_numbers = #tpu.dot_dimension_numbers<[1], [0], [0], [1], [0, 0, 1, 1], [], []>} : vector<20x20xf32>, vector<20x20xf32>, vector<20x20xf32> -> vector<20x20xf32>
    %c1_116 = arith.constant 1 : index
    %c0_117 = arith.constant 0 : index
    %c0_118 = arith.constant 0 : index
    %176 = vector.load %arg18[%c1_116, %c0_117, %c0_118] : memref<2x1x20xf32, #tpu.memory_space<vmem>>, vector<1x1x20xf32>
    %177 = vector.shape_cast %176 : vector<1x1x20xf32> to vector<1x20xf32>
    %178 = vector.broadcast %177 : vector<1x20xf32> to vector<20x20xf32>
    %179 = arith.addf %175, %178 : vector<20x20xf32>
    %180 = arith.addf %132, %179 : vector<20x20xf32>
    %c1_119 = arith.constant 1 : index
    %c0_120 = arith.constant 0 : index
    %c0_121 = arith.constant 0 : index
    %181 = vector.load %arg19[%c1_119, %c0_120, %c0_121] : memref<2x1x20xf32, #tpu.memory_space<vmem>>, vector<1x1x20xf32>
    %182 = vector.shape_cast %181 : vector<1x1x20xf32> to vector<1x20xf32>
    %c1_122 = arith.constant 1 : index
    %c0_123 = arith.constant 0 : index
    %c0_124 = arith.constant 0 : index
    %183 = vector.load %arg20[%c1_122, %c0_123, %c0_124] : memref<2x1x20xf32, #tpu.memory_space<vmem>>, vector<1x1x20xf32>
    %184 = vector.shape_cast %183 : vector<1x1x20xf32> to vector<1x20xf32>
    %cst_125 = arith.constant dense<0.000000e+00> : vector<20xf32>
    %185 = vector.multi_reduction <add>, %180, %cst_125 [1] : vector<20x20xf32> to vector<20xf32>
    %186 = vector.shape_cast %185 : vector<20xf32> to vector<20x1xf32>
    %cst_126 = arith.constant 2.000000e+01 : f32
    %187 = vector.broadcast %cst_126 : f32 to vector<20x1xf32>
    %188 = arith.divf %186, %187 : vector<20x1xf32>
    %189 = vector.broadcast %188 : vector<20x1xf32> to vector<20x20xf32>
    %190 = arith.subf %180, %189 : vector<20x20xf32>
    %191 = arith.mulf %190, %190 : vector<20x20xf32>
    %cst_127 = arith.constant dense<0.000000e+00> : vector<20xf32>
    %192 = vector.multi_reduction <add>, %191, %cst_127 [1] : vector<20x20xf32> to vector<20xf32>
    %193 = vector.shape_cast %192 : vector<20xf32> to vector<20x1xf32>
    %cst_128 = arith.constant 2.000000e+01 : f32
    %194 = vector.broadcast %cst_128 : f32 to vector<20x1xf32>
    %195 = arith.divf %193, %194 : vector<20x1xf32>
    %196 = vector.broadcast %188 : vector<20x1xf32> to vector<20x20xf32>
    %197 = arith.subf %180, %196 : vector<20x20xf32>
    %cst_129 = arith.constant 9.99999974E-6 : f32
    %198 = vector.broadcast %cst_129 : f32 to vector<20x1xf32>
    %199 = arith.addf %195, %198 : vector<20x1xf32>
    %200 = math.rsqrt %199 : vector<20x1xf32>
    %201 = vector.broadcast %200 : vector<20x1xf32> to vector<20x20xf32>
    %202 = arith.mulf %197, %201 : vector<20x20xf32>
    %203 = vector.broadcast %182 : vector<1x20xf32> to vector<20x20xf32>
    %204 = arith.mulf %202, %203 : vector<20x20xf32>
    %205 = vector.broadcast %184 : vector<1x20xf32> to vector<20x20xf32>
    %206 = arith.addf %204, %205 : vector<20x20xf32>
    %c1_130 = arith.constant 1 : index
    %c0_131 = arith.constant 0 : index
    %c0_132 = arith.constant 0 : index
    %207 = vector.load %arg23[%c1_130, %c0_131, %c0_132] : memref<2x20x2048xf32, #tpu.memory_space<vmem>>, vector<1x20x2048xf32>
    %208 = vector.shape_cast %207 : vector<1x20x2048xf32> to vector<20x2048xf32>
    %cst_133 = arith.constant dense<0.000000e+00> : vector<20x2048xf32>
    %209 = tpu.matmul %206, %208, %cst_133 {dimension_numbers = #tpu.dot_dimension_numbers<[1], [0], [0], [1], [0, 0, 1, 1], [], []>} : vector<20x20xf32>, vector<20x2048xf32>, vector<20x2048xf32> -> vector<20x2048xf32>
    %c1_134 = arith.constant 1 : index
    %c0_135 = arith.constant 0 : index
    %c0_136 = arith.constant 0 : index
    %210 = vector.load %arg24[%c1_134, %c0_135, %c0_136] : memref<2x1x2048xf32, #tpu.memory_space<vmem>>, vector<1x1x2048xf32>
    %211 = vector.shape_cast %210 : vector<1x1x2048xf32> to vector<1x2048xf32>
    %212 = vector.broadcast %211 : vector<1x2048xf32> to vector<20x2048xf32>
    %213 = arith.addf %209, %212 : vector<20x2048xf32>
    %cst_137 = arith.constant 0.000000e+00 : f32
    %214 = vector.broadcast %cst_137 : f32 to vector<20x2048xf32>
    %215 = arith.maximumf %213, %214 : vector<20x2048xf32>
    %c1_138 = arith.constant 1 : index
    %c0_139 = arith.constant 0 : index
    %c0_140 = arith.constant 0 : index
    %216 = vector.load %arg25[%c1_138, %c0_139, %c0_140] : memref<2x2048x20xf32, #tpu.memory_space<vmem>>, vector<1x2048x20xf32>
    %217 = vector.shape_cast %216 : vector<1x2048x20xf32> to vector<2048x20xf32>
    %cst_141 = arith.constant dense<0.000000e+00> : vector<20x20xf32>
    %218 = tpu.matmul %215, %217, %cst_141 {dimension_numbers = #tpu.dot_dimension_numbers<[1], [0], [0], [1], [0, 0, 1, 1], [], []>} : vector<20x2048xf32>, vector<2048x20xf32>, vector<20x20xf32> -> vector<20x20xf32>
    %c1_142 = arith.constant 1 : index
    %c0_143 = arith.constant 0 : index
    %c0_144 = arith.constant 0 : index
    %219 = vector.load %arg26[%c1_142, %c0_143, %c0_144] : memref<2x1x20xf32, #tpu.memory_space<vmem>>, vector<1x1x20xf32>
    %220 = vector.shape_cast %219 : vector<1x1x20xf32> to vector<1x20xf32>
    %221 = vector.broadcast %220 : vector<1x20xf32> to vector<20x20xf32>
    %222 = arith.addf %218, %221 : vector<20x20xf32>
    %223 = arith.addf %206, %222 : vector<20x20xf32>
    %c1_145 = arith.constant 1 : index
    %c0_146 = arith.constant 0 : index
    %c0_147 = arith.constant 0 : index
    %224 = vector.load %arg21[%c1_145, %c0_146, %c0_147] : memref<2x1x20xf32, #tpu.memory_space<vmem>>, vector<1x1x20xf32>
    %225 = vector.shape_cast %224 : vector<1x1x20xf32> to vector<1x20xf32>
    %c1_148 = arith.constant 1 : index
    %c0_149 = arith.constant 0 : index
    %c0_150 = arith.constant 0 : index
    %226 = vector.load %arg22[%c1_148, %c0_149, %c0_150] : memref<2x1x20xf32, #tpu.memory_space<vmem>>, vector<1x1x20xf32>
    %227 = vector.shape_cast %226 : vector<1x1x20xf32> to vector<1x20xf32>
    %cst_151 = arith.constant dense<0.000000e+00> : vector<20xf32>
    %228 = vector.multi_reduction <add>, %223, %cst_151 [1] : vector<20x20xf32> to vector<20xf32>
    %229 = vector.shape_cast %228 : vector<20xf32> to vector<20x1xf32>
    %cst_152 = arith.constant 2.000000e+01 : f32
    %230 = vector.broadcast %cst_152 : f32 to vector<20x1xf32>
    %231 = arith.divf %229, %230 : vector<20x1xf32>
    %232 = vector.broadcast %231 : vector<20x1xf32> to vector<20x20xf32>
    %233 = arith.subf %223, %232 : vector<20x20xf32>
    %234 = arith.mulf %233, %233 : vector<20x20xf32>
    %cst_153 = arith.constant dense<0.000000e+00> : vector<20xf32>
    %235 = vector.multi_reduction <add>, %234, %cst_153 [1] : vector<20x20xf32> to vector<20xf32>
    %236 = vector.shape_cast %235 : vector<20xf32> to vector<20x1xf32>
    %cst_154 = arith.constant 2.000000e+01 : f32
    %237 = vector.broadcast %cst_154 : f32 to vector<20x1xf32>
    %238 = arith.divf %236, %237 : vector<20x1xf32>
    %239 = vector.broadcast %231 : vector<20x1xf32> to vector<20x20xf32>
    %240 = arith.subf %223, %239 : vector<20x20xf32>
    %cst_155 = arith.constant 9.99999974E-6 : f32
    %241 = vector.broadcast %cst_155 : f32 to vector<20x1xf32>
    %242 = arith.addf %238, %241 : vector<20x1xf32>
    %243 = math.rsqrt %242 : vector<20x1xf32>
    %244 = vector.broadcast %243 : vector<20x1xf32> to vector<20x20xf32>
    %245 = arith.mulf %240, %244 : vector<20x20xf32>
    %246 = vector.broadcast %225 : vector<1x20xf32> to vector<20x20xf32>
    %247 = arith.mulf %245, %246 : vector<20x20xf32>
    %248 = vector.broadcast %227 : vector<1x20xf32> to vector<20x20xf32>
    %249 = arith.addf %247, %248 : vector<20x20xf32>
    %250 = arith.addf %249, %132 : vector<20x20xf32>
    %c0_156 = arith.constant 0 : index
    %c0_157 = arith.constant 0 : index
    %251 = vector.load %arg8[%c0_156, %c0_157] : memref<20x200xf32, #tpu.memory_space<vmem>>, vector<20x200xf32>
    %cst_158 = arith.constant dense<0.000000e+00> : vector<20x200xf32>
    %252 = tpu.matmul %250, %251, %cst_158 {dimension_numbers = #tpu.dot_dimension_numbers<[1], [0], [0], [1], [0, 0, 1, 1], [], []>} : vector<20x20xf32>, vector<20x200xf32>, vector<20x200xf32> -> vector<20x200xf32>
    %c0_159 = arith.constant 0 : index
    %c0_160 = arith.constant 0 : index
    %253 = vector.load %arg9[%c0_159, %c0_160] : memref<20x200xf32, #tpu.memory_space<vmem>>, vector<20x200xf32>
    %254 = arith.mulf %252, %253 : vector<20x200xf32>
    %c0_161 = arith.constant 0 : index
    %c0_162 = arith.constant 0 : index
    %255 = vector.load %arg27[%c0_161, %c0_162] : memref<200x100xf32, #tpu.memory_space<vmem>>, vector<200x100xf32>
    %cst_163 = arith.constant dense<0.000000e+00> : vector<20x100xf32>
    %256 = tpu.matmul %254, %255, %cst_163 {dimension_numbers = #tpu.dot_dimension_numbers<[1], [0], [0], [1], [0, 0, 1, 1], [], []>} : vector<20x200xf32>, vector<200x100xf32>, vector<20x100xf32> -> vector<20x100xf32>
    %c0_164 = arith.constant 0 : index
    %c0_165 = arith.constant 0 : index
    %257 = vector.load %arg10[%c0_164, %c0_165] : memref<2x20xf32, #tpu.memory_space<vmem>>, vector<2x20xf32>
    %cst_166 = arith.constant dense<0.000000e+00> : vector<2x100xf32>
    %258 = tpu.matmul %257, %256, %cst_166 {dimension_numbers = #tpu.dot_dimension_numbers<[1], [0], [0], [1], [0, 0, 1, 1], [], []>} : vector<2x20xf32>, vector<20x100xf32>, vector<2x100xf32> -> vector<2x100xf32>
    %c0_167 = arith.constant 0 : index
    %c0_168 = arith.constant 0 : index
    %259 = vector.load %arg28[%c0_167, %c0_168] : memref<1x100xf32, #tpu.memory_space<vmem>>, vector<1x100xf32>
    %260 = vector.broadcast %259 : vector<1x100xf32> to vector<2x100xf32>
    %261 = arith.addf %258, %260 : vector<2x100xf32>
    %cst_169 = arith.constant 0.000000e+00 : f32
    %262 = vector.broadcast %cst_169 : f32 to vector<2x100xf32>
    %263 = arith.maximumf %261, %262 : vector<2x100xf32>
    %c0_170 = arith.constant 0 : index
    %c0_171 = arith.constant 0 : index
    %264 = vector.load %arg29[%c0_170, %c0_171] : memref<100x2xf32, #tpu.memory_space<vmem>>, vector<100x2xf32>
    %cst_172 = arith.constant dense<0.000000e+00> : vector<2x2xf32>
    %265 = tpu.matmul %263, %264, %cst_172 {dimension_numbers = #tpu.dot_dimension_numbers<[1], [0], [0], [1], [0, 0, 1, 1], [], []>} : vector<2x100xf32>, vector<100x2xf32>, vector<2x2xf32> -> vector<2x2xf32>
    %c0_173 = arith.constant 0 : index
    %c0_174 = arith.constant 0 : index
    %266 = vector.load %arg30[%c0_173, %c0_174] : memref<1x2xf32, #tpu.memory_space<vmem>>, vector<1x2xf32>
    %267 = vector.broadcast %266 : vector<1x2xf32> to vector<2x2xf32>
    %268 = arith.addf %265, %267 : vector<2x2xf32>
    %c0_175 = arith.constant 0 : index
    %c0_176 = arith.constant 0 : index
    %269 = vector.load %arg31[%c0_175, %c0_176] : memref<2x2xf32, #tpu.memory_space<vmem>>, vector<2x2xf32>
    tpu.vector_store %arg31[%c0_175, %c0_176], %268 {strides = array<i32>} : memref<2x2xf32, #tpu.memory_space<vmem>>, vector<2x2xf32>,
    return
  }
  func.func @transform_0(%arg0: i32) -> (i32, i32) {
    %c0_i32 = arith.constant 0 : i32
    %c0_i32_0 = arith.constant 0 : i32
    return %arg0, %c0_i32 : i32, i32
  }
  func.func @transform_1(%arg0: i32) -> (i32, i32) {
    %c0_i32 = arith.constant 0 : i32
    %c0_i32_0 = arith.constant 0 : i32
    %c0_i32_1 = arith.constant 0 : i32
    return %c0_i32, %c0_i32_0 : i32, i32
  }
  func.func @transform_2(%arg0: i32) -> (i32, i32) {
    %c0_i32 = arith.constant 0 : i32
    %c0_i32_0 = arith.constant 0 : i32
    %c0_i32_1 = arith.constant 0 : i32
    return %c0_i32, %c0_i32_0 : i32, i32
  }
  func.func @transform_3(%arg0: i32) -> (i32, i32) {
    %c0_i32 = arith.constant 0 : i32
    %c0_i32_0 = arith.constant 0 : i32
    %c0_i32_1 = arith.constant 0 : i32
    return %c0_i32, %c0_i32_0 : i32, i32
  }
  func.func @transform_4(%arg0: i32) -> (i32, i32) {
    %c0_i32 = arith.constant 0 : i32
    %c0_i32_0 = arith.constant 0 : i32
    %c0_i32_1 = arith.constant 0 : i32
    return %c0_i32, %c0_i32_0 : i32, i32
  }
  func.func @transform_5(%arg0: i32) -> (i32, i32) {
    %c0_i32 = arith.constant 0 : i32
    %c0_i32_0 = arith.constant 0 : i32
    %c0_i32_1 = arith.constant 0 : i32
    return %c0_i32, %c0_i32_0 : i32, i32
  }
  func.func @transform_6(%arg0: i32) -> (i32, i32) {
    %c0_i32 = arith.constant 0 : i32
    %c0_i32_0 = arith.constant 0 : i32
    %c0_i32_1 = arith.constant 0 : i32
    return %c0_i32, %c0_i32_0 : i32, i32
  }
  func.func @transform_7(%arg0: i32) -> (i32, i32) {
    %c0_i32 = arith.constant 0 : i32
    %c0_i32_0 = arith.constant 0 : i32
    %c0_i32_1 = arith.constant 0 : i32
    return %c0_i32, %c0_i32_0 : i32, i32
  }
  func.func @transform_8(%arg0: i32) -> (i32, i32) {
    %c0_i32 = arith.constant 0 : i32
    %c0_i32_0 = arith.constant 0 : i32
    %c0_i32_1 = arith.constant 0 : i32
    return %c0_i32, %c0_i32_0 : i32, i32
  }
  func.func @transform_9(%arg0: i32) -> (i32, i32) {
    %c0_i32 = arith.constant 0 : i32
    %c0_i32_0 = arith.constant 0 : i32
    %c0_i32_1 = arith.constant 0 : i32
    return %c0_i32, %c0_i32_0 : i32, i32
  }
  func.func @transform_10(%arg0: i32) -> (i32, i32, i32) {
    %c0_i32 = arith.constant 0 : i32
    %c0_i32_0 = arith.constant 0 : i32
    %c0_i32_1 = arith.constant 0 : i32
    %c0_i32_2 = arith.constant 0 : i32
    return %c0_i32, %c0_i32_0, %c0_i32_1 : i32, i32, i32
  }
  func.func @transform_11(%arg0: i32) -> (i32, i32, i32) {
    %c0_i32 = arith.constant 0 : i32
    %c0_i32_0 = arith.constant 0 : i32
    %c0_i32_1 = arith.constant 0 : i32
    %c0_i32_2 = arith.constant 0 : i32
    return %c0_i32, %c0_i32_0, %c0_i32_1 : i32, i32, i32
  }
  func.func @transform_12(%arg0: i32) -> (i32, i32, i32) {
    %c0_i32 = arith.constant 0 : i32
    %c0_i32_0 = arith.constant 0 : i32
    %c0_i32_1 = arith.constant 0 : i32
    %c0_i32_2 = arith.constant 0 : i32
    return %c0_i32, %c0_i32_0, %c0_i32_1 : i32, i32, i32
  }
  func.func @transform_13(%arg0: i32) -> (i32, i32, i32) {
    %c0_i32 = arith.constant 0 : i32
    %c0_i32_0 = arith.constant 0 : i32
    %c0_i32_1 = arith.constant 0 : i32
    %c0_i32_2 = arith.constant 0 : i32
    return %c0_i32, %c0_i32_0, %c0_i32_1 : i32, i32, i32
  }
  func.func @transform_14(%arg0: i32) -> (i32, i32, i32) {
    %c0_i32 = arith.constant 0 : i32
    %c0_i32_0 = arith.constant 0 : i32
    %c0_i32_1 = arith.constant 0 : i32
    %c0_i32_2 = arith.constant 0 : i32
    return %c0_i32, %c0_i32_0, %c0_i32_1 : i32, i32, i32
  }
  func.func @transform_15(%arg0: i32) -> (i32, i32, i32) {
    %c0_i32 = arith.constant 0 : i32
    %c0_i32_0 = arith.constant 0 : i32
    %c0_i32_1 = arith.constant 0 : i32
    %c0_i32_2 = arith.constant 0 : i32
    return %c0_i32, %c0_i32_0, %c0_i32_1 : i32, i32, i32
  }
  func.func @transform_16(%arg0: i32) -> (i32, i32, i32) {
    %c0_i32 = arith.constant 0 : i32
    %c0_i32_0 = arith.constant 0 : i32
    %c0_i32_1 = arith.constant 0 : i32
    %c0_i32_2 = arith.constant 0 : i32
    return %c0_i32, %c0_i32_0, %c0_i32_1 : i32, i32, i32
  }
  func.func @transform_17(%arg0: i32) -> (i32, i32, i32) {
    %c0_i32 = arith.constant 0 : i32
    %c0_i32_0 = arith.constant 0 : i32
    %c0_i32_1 = arith.constant 0 : i32
    %c0_i32_2 = arith.constant 0 : i32
    return %c0_i32, %c0_i32_0, %c0_i32_1 : i32, i32, i32
  }
  func.func @transform_18(%arg0: i32) -> (i32, i32, i32) {
    %c0_i32 = arith.constant 0 : i32
    %c0_i32_0 = arith.constant 0 : i32
    %c0_i32_1 = arith.constant 0 : i32
    %c0_i32_2 = arith.constant 0 : i32
    return %c0_i32, %c0_i32_0, %c0_i32_1 : i32, i32, i32
  }
  func.func @transform_19(%arg0: i32) -> (i32, i32, i32) {
    %c0_i32 = arith.constant 0 : i32
    %c0_i32_0 = arith.constant 0 : i32
    %c0_i32_1 = arith.constant 0 : i32
    %c0_i32_2 = arith.constant 0 : i32
    return %c0_i32, %c0_i32_0, %c0_i32_1 : i32, i32, i32
  }
  func.func @transform_20(%arg0: i32) -> (i32, i32, i32) {
    %c0_i32 = arith.constant 0 : i32
    %c0_i32_0 = arith.constant 0 : i32
    %c0_i32_1 = arith.constant 0 : i32
    %c0_i32_2 = arith.constant 0 : i32
    return %c0_i32, %c0_i32_0, %c0_i32_1 : i32, i32, i32
  }
  func.func @transform_21(%arg0: i32) -> (i32, i32, i32) {
    %c0_i32 = arith.constant 0 : i32
    %c0_i32_0 = arith.constant 0 : i32
    %c0_i32_1 = arith.constant 0 : i32
    %c0_i32_2 = arith.constant 0 : i32
    return %c0_i32, %c0_i32_0, %c0_i32_1 : i32, i32, i32
  }
  func.func @transform_22(%arg0: i32) -> (i32, i32, i32) {
    %c0_i32 = arith.constant 0 : i32
    %c0_i32_0 = arith.constant 0 : i32
    %c0_i32_1 = arith.constant 0 : i32
    %c0_i32_2 = arith.constant 0 : i32
    return %c0_i32, %c0_i32_0, %c0_i32_1 : i32, i32, i32
  }
  func.func @transform_23(%arg0: i32) -> (i32, i32, i32) {
    %c0_i32 = arith.constant 0 : i32
    %c0_i32_0 = arith.constant 0 : i32
    %c0_i32_1 = arith.constant 0 : i32
    %c0_i32_2 = arith.constant 0 : i32
    return %c0_i32, %c0_i32_0, %c0_i32_1 : i32, i32, i32
  }
  func.func @transform_24(%arg0: i32) -> (i32, i32, i32) {
    %c0_i32 = arith.constant 0 : i32
    %c0_i32_0 = arith.constant 0 : i32
    %c0_i32_1 = arith.constant 0 : i32
    %c0_i32_2 = arith.constant 0 : i32
    return %c0_i32, %c0_i32_0, %c0_i32_1 : i32, i32, i32
  }
  func.func @transform_25(%arg0: i32) -> (i32, i32, i32) {
    %c0_i32 = arith.constant 0 : i32
    %c0_i32_0 = arith.constant 0 : i32
    %c0_i32_1 = arith.constant 0 : i32
    %c0_i32_2 = arith.constant 0 : i32
    return %c0_i32, %c0_i32_0, %c0_i32_1 : i32, i32, i32
  }
  func.func @transform_26(%arg0: i32) -> (i32, i32) {
    %c0_i32 = arith.constant 0 : i32
    %c0_i32_0 = arith.constant 0 : i32
    %c0_i32_1 = arith.constant 0 : i32
    return %c0_i32, %c0_i32_0 : i32, i32
  }
  func.func @transform_27(%arg0: i32) -> (i32, i32) {
    %c0_i32 = arith.constant 0 : i32
    %c0_i32_0 = arith.constant 0 : i32
    %c0_i32_1 = arith.constant 0 : i32
    return %c0_i32, %c0_i32_0 : i32, i32
  }
  func.func @transform_28(%arg0: i32) -> (i32, i32) {
    %c0_i32 = arith.constant 0 : i32
    %c0_i32_0 = arith.constant 0 : i32
    %c0_i32_1 = arith.constant 0 : i32
    return %c0_i32, %c0_i32_0 : i32, i32
  }
  func.func @transform_29(%arg0: i32) -> (i32, i32) {
    %c0_i32 = arith.constant 0 : i32
    %c0_i32_0 = arith.constant 0 : i32
    %c0_i32_1 = arith.constant 0 : i32
    return %c0_i32, %c0_i32_0 : i32, i32
  }
  func.func @transform_30(%arg0: i32) -> (i32, i32) {
    %c0_i32 = arith.constant 0 : i32
    %c0_i32_0 = arith.constant 0 : i32
    return %arg0, %c0_i32 : i32, i32
  }
}

</mosaic_0001>

<llo_original>
// kernel: eq.36
$region0: #{eq.36}
  %s0 = inlined_call_operand.vmem [shape: s32[4,20], index: 0, kind: input, shape index: {}]
  %s1 = inlined_call_operand.vmem [shape: s32[80], index: 1, kind: output, shape index: {}]
  $region1: #{eq.36} parent=0
    #allocation0 [shape = 'u8[4096]{0}', space=vmem, size = 0x1000, scoped, tag = 'scoped mem for output reshape']
    #allocation1 [shape = 'u8[4096]{0}', space=vmem, size = 0x1000, scoped, tag = 'scoped mem for input reshape']
    %s3 = ssub.s32 16, 1
    %v4 = vld [vmem:[%s0] sm:%s3]
    %5 = vst [vmem:[#allocation1] sm:%s3] %v4
    %v6 = vld [vmem:[#allocation1] sm:$0x1]
    %vm7 = vcmask 162816
    %8 = vst.msk [vmem:[#allocation0] sm:$0x1] %vm7, %v6
    %s9 = scalar_lea.vmem [#allocation1], 3
    %v10 = vld [vmem:[%s9] sm:$0x1]
    %11 = vrot.lane.b32.xlu0 %v10, 60
    %v12 = vpop.permute.xlu0 %11
    %vm13 = vcmask 654816
    %14 = vst.msk [vmem:[#allocation0] sm:$0x1] %vm13, %v12
    %s15 = scalar_lea.vmem [#allocation1], 2
    %v16 = vld [vmem:[%s15] sm:$0x1]
    %17 = vrot.lane.b32.xlu0 %v16, 40
    %v18 = vpop.permute.xlu0 %17
    %vm19 = vcmask 490816
    %20 = vst.msk [vmem:[#allocation0] sm:$0x1] %vm19, %v18
    %s21 = scalar_lea.vmem [#allocation1], 1
    %v22 = vld [vmem:[%s21] sm:$0x1]
    %23 = vrot.lane.b32.xlu0 %v22, 20
    %v24 = vpop.permute.xlu0 %23
    %vm25 = vcmask 326816
    %26 = vst.msk [vmem:[#allocation0] sm:$0x1] %vm25, %v24
    %s28 = ssub.s32 2, 1
    %v29 = vld [vmem:[#allocation0] sm:%s28]
    %s31 = ssub.s32 2, 1
    %32 = vst [vmem:[%s1] sm:%s31] %v29

// kernel: tile.29
$region0: #{tile.29}
  %s0 = inlined_call_operand.vmem [shape: f32[2,10,20], index: 0, kind: input, shape index: {}]
  %s1 = inlined_call_operand.vmem [shape: f32[20,20], index: 1, kind: output, shape index: {}]
  %v2 = vld [vmem:[%s0] sm:$0xff]
  %vm3 = vcmask 162816
  %4 = vst.msk [vmem:[%s1] sm:$0xff] %vm3, %v2
  %s5 = scalar_lea.vmem %s0, 8
  %v6 = vld [vmem:[%s5] sm:$0x3]
  %vm7 = vcmask 162816
  %s8 = scalar_lea.vmem %s1, 8
  %9 = vst.msk [vmem:[%s8] sm:$0x3] %vm7, %v6
  %s10 = scalar_lea.vmem %s0, 16
  %v11 = vld [vmem:[%s10] sm:$0xff]
  %vm12 = vcmask 162816
  %s13 = scalar_lea.vmem %s1, 10
  %14 = vst.msk [vmem:[%s13] sm:$0xff] %vm12, %v11
  %s15 = scalar_lea.vmem %s0, 24
  %v16 = vld [vmem:[%s15] sm:$0x3]
  %vm17 = vcmask 162816
  %s18 = scalar_lea.vmem %s1, 18
  %19 = vst.msk [vmem:[%s18] sm:$0x3] %vm17, %v16

// kernel: tile.34
$region0: #{tile.34}
  %s0 = inlined_call_operand.vmem [shape: f32[4,20,20], index: 0, kind: input, shape index: {}]
  %s1 = inlined_call_operand.vmem [shape: f32[80,20], index: 1, kind: output, shape index: {}]
  $region1: #{tile.34} parent=0
    #allocation0 [shape = 'u8[81920]{0}', space=vmem, size = 0x14000, scoped, tag = 'scoped mem for input reshape']
    %s3 = ssub.s32 16, 1
    %s4 = scalar_lea.vmem %s0, 76
    %v5 = vld [vmem:[%s4] sm:%s3]
    %s6 = scalar_lea.vmem [#allocation0], 152
    %7 = vst [vmem:[%s6] sm:%s3] %v5
    %s8 = scalar_lea.vmem %s0, 72
    %v9 = vld [vmem:[%s8] sm:%s3]
    %s10 = scalar_lea.vmem [#allocation0], 144
    %11 = vst [vmem:[%s10] sm:%s3] %v9
    %s12 = scalar_lea.vmem %s0, 68
    %v13 = vld [vmem:[%s12] sm:%s3]
    %s14 = scalar_lea.vmem [#allocation0], 136
    %15 = vst [vmem:[%s14] sm:%s3] %v13
    %s16 = scalar_lea.vmem %s0, 64
    %v17 = vld [vmem:[%s16] sm:%s3]
    %s18 = scalar_lea.vmem [#allocation0], 128
    %19 = vst [vmem:[%s18] sm:%s3] %v17
    %s20 = scalar_lea.vmem %s0, 60
    %v21 = vld [vmem:[%s20] sm:%s3]
    %s22 = scalar_lea.vmem [#allocation0], 120
    %23 = vst [vmem:[%s22] sm:%s3] %v21
    %s24 = scalar_lea.vmem %s0, 56
    %v25 = vld [vmem:[%s24] sm:%s3]
    %s26 = scalar_lea.vmem [#allocation0], 112
    %27 = vst [vmem:[%s26] sm:%s3] %v25
    %s28 = scalar_lea.vmem %s0, 52
    %v29 = vld [vmem:[%s28] sm:%s3]
    %s30 = scalar_lea.vmem [#allocation0], 104
    %31 = vst [vmem:[%s30] sm:%s3] %v29
    %s32 = scalar_lea.vmem %s0, 48
    %v33 = vld [vmem:[%s32] sm:%s3]
    %s34 = scalar_lea.vmem [#allocation0], 96
    %35 = vst [vmem:[%s34] sm:%s3] %v33
    %s36 = scalar_lea.vmem %s0, 44
    %v37 = vld [vmem:[%s36] sm:%s3]
    %s38 = scalar_lea.vmem [#allocation0], 88
    %39 = vst [vmem:[%s38] sm:%s3] %v37
    %s40 = scalar_lea.vmem %s0, 40
    %v41 = vld [vmem:[%s40] sm:%s3]
    %s42 = scalar_lea.vmem [#allocation0], 80
    %43 = vst [vmem:[%s42] sm:%s3] %v41
    %s44 = scalar_lea.vmem %s0, 36
    %v45 = vld [vmem:[%s44] sm:%s3]
    %s46 = scalar_lea.vmem [#allocation0], 72
    %47 = vst [vmem:[%s46] sm:%s3] %v45
    %s48 = scalar_lea.vmem %s0, 32
    %v49 = vld [vmem:[%s48] sm:%s3]
    %s50 = scalar_lea.vmem [#allocation0], 64
    %51 = vst [vmem:[%s50] sm:%s3] %v49
    %s52 = scalar_lea.vmem %s0, 28
    %v53 = vld [vmem:[%s52] sm:%s3]
    %s54 = scalar_lea.vmem [#allocation0], 56
    %55 = vst [vmem:[%s54] sm:%s3] %v53
    %s56 = scalar_lea.vmem %s0, 24
    %v57 = vld [vmem:[%s56] sm:%s3]
    %s58 = scalar_lea.vmem [#allocation0], 48
    %59 = vst [vmem:[%s58] sm:%s3] %v57
    %s60 = scalar_lea.vmem %s0, 20
    %v61 = vld [vmem:[%s60] sm:%s3]
    %s62 = scalar_lea.vmem [#allocation0], 40
    %63 = vst [vmem:[%s62] sm:%s3] %v61
    %s64 = scalar_lea.vmem %s0, 16
    %v65 = vld [vmem:[%s64] sm:%s3]
    %s66 = scalar_lea.vmem [#allocation0], 32
    %67 = vst [vmem:[%s66] sm:%s3] %v65
    %s68 = scalar_lea.vmem %s0, 12
    %v69 = vld [vmem:[%s68] sm:%s3]
    %s70 = scalar_lea.vmem [#allocation0], 24
    %71 = vst [vmem:[%s70] sm:%s3] %v69
    %s72 = scalar_lea.vmem %s0, 8
    %v73 = vld [vmem:[%s72] sm:%s3]
    %s74 = scalar_lea.vmem [#allocation0], 16
    %75 = vst [vmem:[%s74] sm:%s3] %v73
    %s76 = scalar_lea.vmem %s0, 4
    %v77 = vld [vmem:[%s76] sm:%s3]
    %s78 = scalar_lea.vmem [#allocation0], 8
    %79 = vst [vmem:[%s78] sm:%s3] %v77
    %v80 = vld [vmem:[%s0] sm:%s3]
    %81 = vst [vmem:[#allocation0] sm:%s3] %v80
    %v82 = vld [vmem:[#allocation0] ss:$8 sm:$0xf]
    %v83 = vld [vmem:[#allocation0] ss:$8 sm:$0xf0]
    %vm84 = vcmask 1047556
    %v85 = vsel %vm84, %v83, %v82
    %vm86 = vcmask 162816
    %87 = vst.msk [vmem:[%s1] sm:$0xff] %vm86, %v85
    %s88 = scalar_lea.vmem [#allocation0], 64
    %v89 = vld [vmem:[%s88] ss:$8 sm:$0xf]
    %s90 = scalar_lea.vmem [#allocation0], 64
    %v91 = vld [vmem:[%s90] ss:$8 sm:$0xf0]
    %vm92 = vcmask 1047556
    %v93 = vsel %vm92, %v91, %v89
    %vm94 = vcmask 162816
    %s95 = scalar_lea.vmem %s1, 8
    %96 = vst.msk [vmem:[%s95] sm:$0xff] %vm94, %v93
    %s97 = scalar_lea.vmem [#allocation0], 128
    %v98 = vld [vmem:[%s97] ss:$8 sm:$0xf]
    %vm99 = vcmask 162816
    %s100 = scalar_lea.vmem %s1, 16
    %101 = vst.msk [vmem:[%s100] sm:$0xf] %vm99, %v98
    %s102 = scalar_lea.vmem [#allocation0], 3
    %v103 = vld [vmem:[%s102] ss:$8 sm:$0xf]
    %s104 = scalar_lea.vmem [#allocation0], 3
    %v105 = vld [vmem:[%s104] ss:$8 sm:$0xf0]
    %vm106 = vcmask 1047556
    %v107 = vsel %vm106, %v105, %v103
    %108 = vrot.lane.b32.xlu0 %v107, 60
    %v109 = vpop.permute.xlu0 %108
    %vm110 = vcmask 654816
    %111 = vst.msk [vmem:[%s1] sm:$0xff] %vm110, %v109
    %s112 = scalar_lea.vmem [#allocation0], 67
    %v113 = vld [vmem:[%s112] ss:$8 sm:$0xf]
    %s114 = scalar_lea.vmem [#allocation0], 67
    %v115 = vld [vmem:[%s114] ss:$8 sm:$0xf0]
    %vm116 = vcmask 1047556
    %v117 = vsel %vm116, %v115, %v113
    %118 = vrot.lane.b32.xlu0 %v117, 60
    %v119 = vpop.permute.xlu0 %118
    %vm120 = vcmask 654816
    %s121 = scalar_lea.vmem %s1, 8
    %122 = vst.msk [vmem:[%s121] sm:$0xff] %vm120, %v119
    %s123 = scalar_lea.vmem [#allocation0], 131
    %v124 = vld [vmem:[%s123] ss:$8 sm:$0xf]
    %125 = vrot.lane.b32.xlu0 %v124, 60
    %v126 = vpop.permute.xlu0 %125
    %vm127 = vcmask 654816
    %s128 = scalar_lea.vmem %s1, 16
    %129 = vst.msk [vmem:[%s128] sm:$0xf] %vm127, %v126
    %s130 = scalar_lea.vmem [#allocation0], 2
    %v131 = vld [vmem:[%s130] ss:$8 sm:$0xf]
    %s132 = scalar_lea.vmem [#allocation0], 2
    %v133 = vld [vmem:[%s132] ss:$8 sm:$0xf0]
    %vm134 = vcmask 1047556
    %v135 = vsel %vm134, %v133, %v131
    %136 = vrot.lane.b32.xlu0 %v135, 40
    %v137 = vpop.permute.xlu0 %136
    %vm138 = vcmask 490816
    %139 = vst.msk [vmem:[%s1] sm:$0xff] %vm138, %v137
    %s140 = scalar_lea.vmem [#allocation0], 66
    %v141 = vld [vmem:[%s140] ss:$8 sm:$0xf]
    %s142 = scalar_lea.vmem [#allocation0], 66
    %v143 = vld [vmem:[%s142] ss:$8 sm:$0xf0]
    %vm144 = vcmask 1047556
    %v145 = vsel %vm144, %v143, %v141
    %146 = vrot.lane.b32.xlu0 %v145, 40
    %v147 = vpop.permute.xlu0 %146
    %vm148 = vcmask 490816
    %s149 = scalar_lea.vmem %s1, 8
    %150 = vst.msk [vmem:[%s149] sm:$0xff] %vm148, %v147
    %s151 = scalar_lea.vmem [#allocation0], 130
    %v152 = vld [vmem:[%s151] ss:$8 sm:$0xf]
    %153 = vrot.lane.b32.xlu0 %v152, 40
    %v154 = vpop.permute.xlu0 %153
    %vm155 = vcmask 490816
    %s156 = scalar_lea.vmem %s1, 16
    %157 = vst.msk [vmem:[%s156] sm:$0xf] %vm155, %v154
    %s158 = scalar_lea.vmem [#allocation0], 1
    %v159 = vld [vmem:[%s158] ss:$8 sm:$0xf]
    %s160 = scalar_lea.vmem [#allocation0], 1
    %v161 = vld [vmem:[%s160] ss:$8 sm:$0xf0]
    %vm162 = vcmask 1047556
    %v163 = vsel %vm162, %v161, %v159
    %164 = vrot.lane.b32.xlu0 %v163, 20
    %v165 = vpop.permute.xlu0 %164
    %vm166 = vcmask 326816
    %167 = vst.msk [vmem:[%s1] sm:$0xff] %vm166, %v165
    %s168 = scalar_lea.vmem [#allocation0], 65
    %v169 = vld [vmem:[%s168] ss:$8 sm:$0xf]
    %s170 = scalar_lea.vmem [#allocation0], 65
    %v171 = vld [vmem:[%s170] ss:$8 sm:$0xf0]
    %vm172 = vcmask 1047556
    %v173 = vsel %vm172, %v171, %v169
    %174 = vrot.lane.b32.xlu0 %v173, 20
    %v175 = vpop.permute.xlu0 %174
    %vm176 = vcmask 326816
    %s177 = scalar_lea.vmem %s1, 8
    %178 = vst.msk [vmem:[%s177] sm:$0xff] %vm176, %v175
    %s179 = scalar_lea.vmem [#allocation0], 129
    %v180 = vld [vmem:[%s179] ss:$8 sm:$0xf]
    %181 = vrot.lane.b32.xlu0 %v180, 20
    %v182 = vpop.permute.xlu0 %181
    %vm183 = vcmask 326816
    %s184 = scalar_lea.vmem %s1, 16
    %185 = vst.msk [vmem:[%s184] sm:$0xf] %vm183, %v182

// kernel: tile.39
$region0: #{tile.39}
  %s0 = inlined_call_operand.vmem [shape: f32[20,4,20], index: 0, kind: input, shape index: {}]
  %s1 = inlined_call_operand.vmem [shape: f32[20,80], index: 1, kind: output, shape index: {}]
  $region1: #{tile.39} parent=0
    #allocation0 [shape = 'u8[81920]{0}', space=vmem, size = 0x14000, scoped, tag = 'scoped mem for input reshape']
    %s3 = ssub.s32 16, 1
    %s4 = scalar_lea.vmem %s0, 76
    %v5 = vld [vmem:[%s4] sm:%s3]
    %s6 = scalar_lea.vmem [#allocation0], 152
    %7 = vst [vmem:[%s6] sm:%s3] %v5
    %s8 = scalar_lea.vmem %s0, 72
    %v9 = vld [vmem:[%s8] sm:%s3]
    %s10 = scalar_lea.vmem [#allocation0], 144
    %11 = vst [vmem:[%s10] sm:%s3] %v9
    %s12 = scalar_lea.vmem %s0, 68
    %v13 = vld [vmem:[%s12] sm:%s3]
    %s14 = scalar_lea.vmem [#allocation0], 136
    %15 = vst [vmem:[%s14] sm:%s3] %v13
    %s16 = scalar_lea.vmem %s0, 64
    %v17 = vld [vmem:[%s16] sm:%s3]
    %s18 = scalar_lea.vmem [#allocation0], 128
    %19 = vst [vmem:[%s18] sm:%s3] %v17
    %s20 = scalar_lea.vmem %s0, 60
    %v21 = vld [vmem:[%s20] sm:%s3]
    %s22 = scalar_lea.vmem [#allocation0], 120
    %23 = vst [vmem:[%s22] sm:%s3] %v21
    %s24 = scalar_lea.vmem %s0, 56
    %v25 = vld [vmem:[%s24] sm:%s3]
    %s26 = scalar_lea.vmem [#allocation0], 112
    %27 = vst [vmem:[%s26] sm:%s3] %v25
    %s28 = scalar_lea.vmem %s0, 52
    %v29 = vld [vmem:[%s28] sm:%s3]
    %s30 = scalar_lea.vmem [#allocation0], 104
    %31 = vst [vmem:[%s30] sm:%s3] %v29
    %s32 = scalar_lea.vmem %s0, 48
    %v33 = vld [vmem:[%s32] sm:%s3]
    %s34 = scalar_lea.vmem [#allocation0], 96
    %35 = vst [vmem:[%s34] sm:%s3] %v33
    %s36 = scalar_lea.vmem %s0, 44
    %v37 = vld [vmem:[%s36] sm:%s3]
    %s38 = scalar_lea.vmem [#allocation0], 88
    %39 = vst [vmem:[%s38] sm:%s3] %v37
    %s40 = scalar_lea.vmem %s0, 40
    %v41 = vld [vmem:[%s40] sm:%s3]
    %s42 = scalar_lea.vmem [#allocation0], 80
    %43 = vst [vmem:[%s42] sm:%s3] %v41
    %s44 = scalar_lea.vmem %s0, 36
    %v45 = vld [vmem:[%s44] sm:%s3]
    %s46 = scalar_lea.vmem [#allocation0], 72
    %47 = vst [vmem:[%s46] sm:%s3] %v45
    %s48 = scalar_lea.vmem %s0, 32
    %v49 = vld [vmem:[%s48] sm:%s3]
    %s50 = scalar_lea.vmem [#allocation0], 64
    %51 = vst [vmem:[%s50] sm:%s3] %v49
    %s52 = scalar_lea.vmem %s0, 28
    %v53 = vld [vmem:[%s52] sm:%s3]
    %s54 = scalar_lea.vmem [#allocation0], 56
    %55 = vst [vmem:[%s54] sm:%s3] %v53
    %s56 = scalar_lea.vmem %s0, 24
    %v57 = vld [vmem:[%s56] sm:%s3]
    %s58 = scalar_lea.vmem [#allocation0], 48
    %59 = vst [vmem:[%s58] sm:%s3] %v57
    %s60 = scalar_lea.vmem %s0, 20
    %v61 = vld [vmem:[%s60] sm:%s3]
    %s62 = scalar_lea.vmem [#allocation0], 40
    %63 = vst [vmem:[%s62] sm:%s3] %v61
    %s64 = scalar_lea.vmem %s0, 16
    %v65 = vld [vmem:[%s64] sm:%s3]
    %s66 = scalar_lea.vmem [#allocation0], 32
    %67 = vst [vmem:[%s66] sm:%s3] %v65
    %s68 = scalar_lea.vmem %s0, 12
    %v69 = vld [vmem:[%s68] sm:%s3]
    %s70 = scalar_lea.vmem [#allocation0], 24
    %71 = vst [vmem:[%s70] sm:%s3] %v69
    %s72 = scalar_lea.vmem %s0, 8
    %v73 = vld [vmem:[%s72] sm:%s3]
    %s74 = scalar_lea.vmem [#allocation0], 16
    %75 = vst [vmem:[%s74] sm:%s3] %v73
    %s76 = scalar_lea.vmem %s0, 4
    %v77 = vld [vmem:[%s76] sm:%s3]
    %s78 = scalar_lea.vmem [#allocation0], 8
    %79 = vst [vmem:[%s78] sm:%s3] %v77
    %v80 = vld [vmem:[%s0] sm:%s3]
    %81 = vst [vmem:[#allocation0] sm:%s3] %v80
    %v82 = vld [vmem:[#allocation0] ss:$8 sm:$0xf]
    %v83 = vld [vmem:[#allocation0] ss:$8 sm:$0xf0]
    %vm84 = vcmask 1047556
    %v85 = vsel %vm84, %v83, %v82
    %vm86 = vcmask 162816
    %87 = vst.msk [vmem:[%s1] sm:$0xff] %vm86, %v85
    %s88 = scalar_lea.vmem [#allocation0], 64
    %v89 = vld [vmem:[%s88] ss:$8 sm:$0xf]
    %s90 = scalar_lea.vmem [#allocation0], 64
    %v91 = vld [vmem:[%s90] ss:$8 sm:$0xf0]
    %vm92 = vcmask 1047556
    %v93 = vsel %vm92, %v91, %v89
    %vm94 = vcmask 162816
    %s95 = scalar_lea.vmem %s1, 8
    %96 = vst.msk [vmem:[%s95] sm:$0xff] %vm94, %v93
    %s97 = scalar_lea.vmem [#allocation0], 128
    %v98 = vld [vmem:[%s97] ss:$8 sm:$0xf]
    %vm99 = vcmask 162816
    %s100 = scalar_lea.vmem %s1, 16
    %101 = vst.msk [vmem:[%s100] sm:$0xf] %vm99, %v98
    %s102 = scalar_lea.vmem [#allocation0], 3
    %v103 = vld [vmem:[%s102] ss:$8 sm:$0xf]
    %s104 = scalar_lea.vmem [#allocation0], 3
    %v105 = vld [vmem:[%s104] ss:$8 sm:$0xf0]
    %vm106 = vcmask 1047556
    %v107 = vsel %vm106, %v105, %v103
    %108 = vrot.lane.b32.xlu0 %v107, 60
    %v109 = vpop.permute.xlu0 %108
    %vm110 = vcmask 654816
    %111 = vst.msk [vmem:[%s1] sm:$0xff] %vm110, %v109
    %s112 = scalar_lea.vmem [#allocation0], 67
    %v113 = vld [vmem:[%s112] ss:$8 sm:$0xf]
    %s114 = scalar_lea.vmem [#allocation0], 67
    %v115 = vld [vmem:[%s114] ss:$8 sm:$0xf0]
    %vm116 = vcmask 1047556
    %v117 = vsel %vm116, %v115, %v113
    %118 = vrot.lane.b32.xlu0 %v117, 60
    %v119 = vpop.permute.xlu0 %118
    %vm120 = vcmask 654816
    %s121 = scalar_lea.vmem %s1, 8
    %122 = vst.msk [vmem:[%s121] sm:$0xff] %vm120, %v119
    %s123 = scalar_lea.vmem [#allocation0], 131
    %v124 = vld [vmem:[%s123] ss:$8 sm:$0xf]
    %125 = vrot.lane.b32.xlu0 %v124, 60
    %v126 = vpop.permute.xlu0 %125
    %vm127 = vcmask 654816
    %s128 = scalar_lea.vmem %s1, 16
    %129 = vst.msk [vmem:[%s128] sm:$0xf] %vm127, %v126
    %s130 = scalar_lea.vmem [#allocation0], 2
    %v131 = vld [vmem:[%s130] ss:$8 sm:$0xf]
    %s132 = scalar_lea.vmem [#allocation0], 2
    %v133 = vld [vmem:[%s132] ss:$8 sm:$0xf0]
    %vm134 = vcmask 1047556
    %v135 = vsel %vm134, %v133, %v131
    %136 = vrot.lane.b32.xlu0 %v135, 40
    %v137 = vpop.permute.xlu0 %136
    %vm138 = vcmask 490816
    %139 = vst.msk [vmem:[%s1] sm:$0xff] %vm138, %v137
    %s140 = scalar_lea.vmem [#allocation0], 66
    %v141 = vld [vmem:[%s140] ss:$8 sm:$0xf]
    %s142 = scalar_lea.vmem [#allocation0], 66
    %v143 = vld [vmem:[%s142] ss:$8 sm:$0xf0]
    %vm144 = vcmask 1047556
    %v145 = vsel %vm144, %v143, %v141
    %146 = vrot.lane.b32.xlu0 %v145, 40
    %v147 = vpop.permute.xlu0 %146
    %vm148 = vcmask 490816
    %s149 = scalar_lea.vmem %s1, 8
    %150 = vst.msk [vmem:[%s149] sm:$0xff] %vm148, %v147
    %s151 = scalar_lea.vmem [#allocation0], 130
    %v152 = vld [vmem:[%s151] ss:$8 sm:$0xf]
    %153 = vrot.lane.b32.xlu0 %v152, 40
    %v154 = vpop.permute.xlu0 %153
    %vm155 = vcmask 490816
    %s156 = scalar_lea.vmem %s1, 16
    %157 = vst.msk [vmem:[%s156] sm:$0xf] %vm155, %v154
    %s158 = scalar_lea.vmem [#allocation0], 1
    %v159 = vld [vmem:[%s158] ss:$8 sm:$0xf]
    %s160 = scalar_lea.vmem [#allocation0], 1
    %v161 = vld [vmem:[%s160] ss:$8 sm:$0xf0]
    %vm162 = vcmask 1047556
    %v163 = vsel %vm162, %v161, %v159
    %164 = vrot.lane.b32.xlu0 %v163, 20
    %v165 = vpop.permute.xlu0 %164
    %vm166 = vcmask 326816
    %167 = vst.msk [vmem:[%s1] sm:$0xff] %vm166, %v165
    %s168 = scalar_lea.vmem [#allocation0], 65
    %v169 = vld [vmem:[%s168] ss:$8 sm:$0xf]
    %s170 = scalar_lea.vmem [#allocation0], 65
    %v171 = vld [vmem:[%s170] ss:$8 sm:$0xf0]
    %vm172 = vcmask 1047556
    %v173 = vsel %vm172, %v171, %v169
    %174 = vrot.lane.b32.xlu0 %v173, 20
    %v175 = vpop.permute.xlu0 %174
    %vm176 = vcmask 326816
    %s177 = scalar_lea.vmem %s1, 8
    %178 = vst.msk [vmem:[%s177] sm:$0xff] %vm176, %v175
    %s179 = scalar_lea.vmem [#allocation0], 129
    %v180 = vld [vmem:[%s179] ss:$8 sm:$0xf]
    %181 = vrot.lane.b32.xlu0 %v180, 20
    %v182 = vpop.permute.xlu0 %181
    %vm183 = vcmask 326816
    %s184 = scalar_lea.vmem %s1, 16
    %185 = vst.msk [vmem:[%s184] sm:$0xf] %vm183, %v182

// kernel: tile.49
$region0: #{tile.49}
  %s0 = inlined_call_operand.vmem [shape: f32[20,10,20], index: 0, kind: input, shape index: {}]
  %s1 = inlined_call_operand.vmem [shape: f32[20,200], index: 1, kind: output, shape index: {}]
  %s2 = smov 3
  %v3 = vld [vmem:[%s0] ss:$16 sm:%s2]
  %s4 = smov 12
  %v5 = vld [vmem:[%s0] ss:$16 sm:%s4]
  %vm6 = vcmask 1043458
  %v7 = vsel %vm6, %v5, %v3
  %s8 = smov 48
  %v9 = vld [vmem:[%s0] ss:$16 sm:%s8]
  %vm10 = vcmask 1045508
  %v11 = vsel %vm10, %v9, %v7
  %s12 = smov 192
  %v13 = vld [vmem:[%s0] ss:$16 sm:%s12]
  %vm14 = vcmask 1047558
  %v15 = vsel %vm14, %v13, %v11
  %vm16 = vcmask 162816
  %17 = vst.msk [vmem:[%s1] sm:$0xff] %vm16, %v15
  %s18 = scalar_lea.vmem %s0, 128
  %s19 = smov 3
  %v20 = vld [vmem:[%s18] ss:$16 sm:%s19]
  %s21 = scalar_lea.vmem %s0, 128
  %s22 = smov 12
  %v23 = vld [vmem:[%s21] ss:$16 sm:%s22]
  %vm24 = vcmask 1043458
  %v25 = vsel %vm24, %v23, %v20
  %s26 = scalar_lea.vmem %s0, 128
  %s27 = smov 48
  %v28 = vld [vmem:[%s26] ss:$16 sm:%s27]
  %vm29 = vcmask 1045508
  %v30 = vsel %vm29, %v28, %v25
  %s31 = scalar_lea.vmem %s0, 128
  %s32 = smov 192
  %v33 = vld [vmem:[%s31] ss:$16 sm:%s32]
  %vm34 = vcmask 1047558
  %v35 = vsel %vm34, %v33, %v30
  %vm36 = vcmask 162816
  %s37 = scalar_lea.vmem %s1, 16
  %38 = vst.msk [vmem:[%s37] sm:$0xff] %vm36, %v35
  %s39 = scalar_lea.vmem %s0, 256
  %s40 = smov 3
  %v41 = vld [vmem:[%s39] ss:$16 sm:%s40]
  %s42 = scalar_lea.vmem %s0, 256
  %s43 = smov 12
  %v44 = vld [vmem:[%s42] ss:$16 sm:%s43]
  %vm45 = vcmask 1043458
  %v46 = vsel %vm45, %v44, %v41
  %vm47 = vcmask 162816
  %s48 = scalar_lea.vmem %s1, 32
  %49 = vst.msk [vmem:[%s48] sm:$0xf] %vm47, %v46
  %s50 = scalar_lea.vmem %s0, 6
  %s51 = smov 3
  %v52 = vld [vmem:[%s50] ss:$16 sm:%s51]
  %s53 = scalar_lea.vmem %s0, 6
  %s54 = smov 12
  %v55 = vld [vmem:[%s53] ss:$16 sm:%s54]
  %vm56 = vcmask 1043458
  %v57 = vsel %vm56, %v55, %v52
  %s58 = scalar_lea.vmem %s0, 6
  %s59 = smov 48
  %v60 = vld [vmem:[%s58] ss:$16 sm:%s59]
  %vm61 = vcmask 1045508
  %v62 = vsel %vm61, %v60, %v57
  %s63 = scalar_lea.vmem %s0, 6
  %s64 = smov 192
  %v65 = vld [vmem:[%s63] ss:$16 sm:%s64]
  %vm66 = vcmask 1047558
  %v67 = vsel %vm66, %v65, %v62
  %s68 = scalar_lea.vmem %s0, 6
  %s69 = smov 3
  %v70 = vld [vmem:[%s68] ss:$16 sm:%s69]
  %s71 = scalar_lea.vmem %s0, 6
  %s72 = smov 12
  %v73 = vld [vmem:[%s71] ss:$16 sm:%s72]
  %vm74 = vcmask 1043458
  %v75 = vsel %vm74, %v73, %v70
  %s76 = scalar_lea.vmem %s0, 6
  %s77 = smov 48
  %v78 = vld [vmem:[%s76] ss:$16 sm:%s77]
  %vm79 = vcmask 1045508
  %v80 = vsel %vm79, %v78, %v75
  %s81 = scalar_lea.vmem %s0, 6
  %s82 = smov 192
  %v83 = vld [vmem:[%s81] ss:$16 sm:%s82]
  %vm84 = vcmask 1047558
  %v85 = vsel %vm84, %v83, %v80
  %vm86 = vcmask 64512
  %v87 = vsel %vm86, %v85, %v67
  %88 = vrot.lane.b32.xlu0 %v87, 120
  %v89 = vpop.permute.xlu0 %88
  %vm90 = vcmask 97280
  %s91 = scalar_lea.vmem %s1, 8
  %92 = vst.msk [vmem:[%s91] sm:$0xff] %vm90, %v89
  %vm93 = vcmask 1048512
  %94 = vst.msk [vmem:[%s1] sm:$0xff] %vm93, %v89
  %s95 = scalar_lea.vmem %s0, 262
  %s96 = smov 3
  %v97 = vld [vmem:[%s95] ss:$16 sm:%s96]
  %s98 = scalar_lea.vmem %s0, 262
  %s99 = smov 12
  %v100 = vld [vmem:[%s98] ss:$16 sm:%s99]
  %vm101 = vcmask 1043458
  %v102 = vsel %vm101, %v100, %v97
  %s103 = scalar_lea.vmem %s0, 70
  %s104 = smov 48
  %v105 = vld [vmem:[%s103] ss:$16 sm:%s104]
  %vm106 = vcmask 1045508
  %v107 = vsel %vm106, %v105, %v102
  %s108 = scalar_lea.vmem %s0, 70
  %s109 = smov 192
  %v110 = vld [vmem:[%s108] ss:$16 sm:%s109]
  %vm111 = vcmask 1047558
  %v112 = vsel %vm111, %v110, %v107
  %s113 = scalar_lea.vmem %s0, 262
  %s114 = smov 3
  %v115 = vld [vmem:[%s113] ss:$16 sm:%s114]
  %s116 = scalar_lea.vmem %s0, 262
  %s117 = smov 12
  %v118 = vld [vmem:[%s116] ss:$16 sm:%s117]
  %vm119 = vcmask 1043458
  %v120 = vsel %vm119, %v118, %v115
  %s121 = scalar_lea.vmem %s0, 70
  %s122 = smov 48
  %v123 = vld [vmem:[%s121] ss:$16 sm:%s122]
  %vm124 = vcmask 1045508
  %v125 = vsel %vm124, %v123, %v120
  %s126 = scalar_lea.vmem %s0, 70
  %s127 = smov 192
  %v128 = vld [vmem:[%s126] ss:$16 sm:%s127]
  %vm129 = vcmask 1047558
  %v130 = vsel %vm129, %v128, %v125
  %vm131 = vcmask 64512
  %v132 = vsel %vm131, %v130, %v112
  %133 = vrot.lane.b32.xlu0 %v132, 120
  %v134 = vpop.permute.xlu0 %133
  %vm135 = vcmask 97280
  %s136 = scalar_lea.vmem %s1, 40
  %137 = vst.msk [vmem:[%s136] sm:$0xf] %vm135, %v134
  %s138 = scalar_lea.vmem %s1, 20
  %139 = vst.msk [vmem:[%s138] sm:$0xf0] %vm135, %v134
  %vm140 = vcmask 1048512
  %s141 = scalar_lea.vmem %s1, 32
  %142 = vst.msk [vmem:[%s141] sm:$0xf] %vm140, %v134
  %s143 = scalar_lea.vmem %s1, 12
  %144 = vst.msk [vmem:[%s143] sm:$0xf0] %vm140, %v134
  %s145 = scalar_lea.vmem %s0, 198
  %s146 = smov 3
  %v147 = vld [vmem:[%s145] ss:$16 sm:%s146]
  %s148 = scalar_lea.vmem %s0, 198
  %s149 = smov 12
  %v150 = vld [vmem:[%s148] ss:$16 sm:%s149]
  %vm151 = vcmask 1043458
  %v152 = vsel %vm151, %v150, %v147
  %s153 = scalar_lea.vmem %s0, 198
  %s154 = smov 3
  %v155 = vld [vmem:[%s153] ss:$16 sm:%s154]
  %s156 = scalar_lea.vmem %s0, 198
  %s157 = smov 12
  %v158 = vld [vmem:[%s156] ss:$16 sm:%s157]
  %vm159 = vcmask 1043458
  %v160 = vsel %vm159, %v158, %v155
  %vm161 = vcmask 64512
  %v162 = vsel %vm161, %v160, %v152
  %163 = vrot.lane.b32.xlu0 %v162, 120
  %v164 = vpop.permute.xlu0 %163
  %vm165 = vcmask 97280
  %s166 = scalar_lea.vmem %s1, 28
  %167 = vst.msk [vmem:[%s166] sm:$0xf] %vm165, %v164
  %vm168 = vcmask 1048512
  %s169 = scalar_lea.vmem %s1, 20
  %170 = vst.msk [vmem:[%s169] sm:$0xf] %vm168, %v164
  %s171 = scalar_lea.vmem %s0, 5
  %s172 = smov 3
  %v173 = vld [vmem:[%s171] ss:$16 sm:%s172]
  %s174 = scalar_lea.vmem %s0, 5
  %s175 = smov 12
  %v176 = vld [vmem:[%s174] ss:$16 sm:%s175]
  %vm177 = vcmask 1043458
  %v178 = vsel %vm177, %v176, %v173
  %s179 = scalar_lea.vmem %s0, 5
  %s180 = smov 48
  %v181 = vld [vmem:[%s179] ss:$16 sm:%s180]
  %vm182 = vcmask 1045508
  %v183 = vsel %vm182, %v181, %v178
  %s184 = scalar_lea.vmem %s0, 5
  %s185 = smov 192
  %v186 = vld [vmem:[%s184] ss:$16 sm:%s185]
  %vm187 = vcmask 1047558
  %v188 = vsel %vm187, %v186, %v183
  %189 = vrot.lane.b32.xlu0 %v188, 100
  %v190 = vpop.permute.xlu0 %189
  %vm191 = vcmask 982816
  %192 = vst.msk [vmem:[%s1] sm:$0xff] %vm191, %v190
  %s193 = scalar_lea.vmem %s0, 261
  %s194 = smov 3
  %v195 = vld [vmem:[%s193] ss:$16 sm:%s194]
  %s196 = scalar_lea.vmem %s0, 261
  %s197 = smov 12
  %v198 = vld [vmem:[%s196] ss:$16 sm:%s197]
  %vm199 = vcmask 1043458
  %v200 = vsel %vm199, %v198, %v195
  %s201 = scalar_lea.vmem %s0, 69
  %s202 = smov 48
  %v203 = vld [vmem:[%s201] ss:$16 sm:%s202]
  %vm204 = vcmask 1045508
  %v205 = vsel %vm204, %v203, %v200
  %s206 = scalar_lea.vmem %s0, 69
  %s207 = smov 192
  %v208 = vld [vmem:[%s206] ss:$16 sm:%s207]
  %vm209 = vcmask 1047558
  %v210 = vsel %vm209, %v208, %v205
  %211 = vrot.lane.b32.xlu0 %v210, 100
  %v212 = vpop.permute.xlu0 %211
  %vm213 = vcmask 982816
  %s214 = scalar_lea.vmem %s1, 32
  %215 = vst.msk [vmem:[%s214] sm:$0xf] %vm213, %v212
  %s216 = scalar_lea.vmem %s1, 12
  %217 = vst.msk [vmem:[%s216] sm:$0xf0] %vm213, %v212
  %s218 = scalar_lea.vmem %s0, 197
  %s219 = smov 3
  %v220 = vld [vmem:[%s218] ss:$16 sm:%s219]
  %s221 = scalar_lea.vmem %s0, 197
  %s222 = smov 12
  %v223 = vld [vmem:[%s221] ss:$16 sm:%s222]
  %vm224 = vcmask 1043458
  %v225 = vsel %vm224, %v223, %v220
  %226 = vrot.lane.b32.xlu0 %v225, 100
  %v227 = vpop.permute.xlu0 %226
  %vm228 = vcmask 982816
  %s229 = scalar_lea.vmem %s1, 20
  %230 = vst.msk [vmem:[%s229] sm:$0xf] %vm228, %v227
  %s231 = scalar_lea.vmem %s0, 4
  %s232 = smov 3
  %v233 = vld [vmem:[%s231] ss:$16 sm:%s232]
  %s234 = scalar_lea.vmem %s0, 4
  %s235 = smov 12
  %v236 = vld [vmem:[%s234] ss:$16 sm:%s235]
  %vm237 = vcmask 1043458
  %v238 = vsel %vm237, %v236, %v233
  %s239 = scalar_lea.vmem %s0, 4
  %s240 = smov 48
  %v241 = vld [vmem:[%s239] ss:$16 sm:%s240]
  %vm242 = vcmask 1045508
  %v243 = vsel %vm242, %v241, %v238
  %s244 = scalar_lea.vmem %s0, 4
  %s245 = smov 192
  %v246 = vld [vmem:[%s244] ss:$16 sm:%s245]
  %vm247 = vcmask 1047558
  %v248 = vsel %vm247, %v246, %v243
  %249 = vrot.lane.b32.xlu0 %v248, 80
  %v250 = vpop.permute.xlu0 %249
  %vm251 = vcmask 818816
  %252 = vst.msk [vmem:[%s1] sm:$0xff] %vm251, %v250
  %s253 = scalar_lea.vmem %s0, 260
  %s254 = smov 3
  %v255 = vld [vmem:[%s253] ss:$16 sm:%s254]
  %s256 = scalar_lea.vmem %s0, 260
  %s257 = smov 12
  %v258 = vld [vmem:[%s256] ss:$16 sm:%s257]
  %vm259 = vcmask 1043458
  %v260 = vsel %vm259, %v258, %v255
  %s261 = scalar_lea.vmem %s0, 68
  %s262 = smov 48
  %v263 = vld [vmem:[%s261] ss:$16 sm:%s262]
  %vm264 = vcmask 1045508
  %v265 = vsel %vm264, %v263, %v260
  %s266 = scalar_lea.vmem %s0, 68
  %s267 = smov 192
  %v268 = vld [vmem:[%s266] ss:$16 sm:%s267]
  %vm269 = vcmask 1047558
  %v270 = vsel %vm269, %v268, %v265
  %271 = vrot.lane.b32.xlu0 %v270, 80
  %v272 = vpop.permute.xlu0 %271
  %vm273 = vcmask 818816
  %s274 = scalar_lea.vmem %s1, 32
  %275 = vst.msk [vmem:[%s274] sm:$0xf] %vm273, %v272
  %s276 = scalar_lea.vmem %s1, 12
  %277 = vst.msk [vmem:[%s276] sm:$0xf0] %vm273, %v272
  %s278 = scalar_lea.vmem %s0, 196
  %s279 = smov 3
  %v280 = vld [vmem:[%s278] ss:$16 sm:%s279]
  %s281 = scalar_lea.vmem %s0, 196
  %s282 = smov 12
  %v283 = vld [vmem:[%s281] ss:$16 sm:%s282]
  %vm284 = vcmask 1043458
  %v285 = vsel %vm284, %v283, %v280
  %286 = vrot.lane.b32.xlu0 %v285, 80
  %v287 = vpop.permute.xlu0 %286
  %vm288 = vcmask 818816
  %s289 = scalar_lea.vmem %s1, 20
  %290 = vst.msk [vmem:[%s289] sm:$0xf] %vm288, %v287
  %s291 = scalar_lea.vmem %s0, 3
  %s292 = smov 3
  %v293 = vld [vmem:[%s291] ss:$16 sm:%s292]
  %s294 = scalar_lea.vmem %s0, 3
  %s295 = smov 12
  %v296 = vld [vmem:[%s294] ss:$16 sm:%s295]
  %vm297 = vcmask 1043458
  %v298 = vsel %vm297, %v296, %v293
  %s299 = scalar_lea.vmem %s0, 3
  %s300 = smov 48
  %v301 = vld [vmem:[%s299] ss:$16 sm:%s300]
  %vm302 = vcmask 1045508
  %v303 = vsel %vm302, %v301, %v298
  %s304 = scalar_lea.vmem %s0, 3
  %s305 = smov 192
  %v306 = vld [vmem:[%s304] ss:$16 sm:%s305]
  %vm307 = vcmask 1047558
  %v308 = vsel %vm307, %v306, %v303
  %309 = vrot.lane.b32.xlu0 %v308, 60
  %v310 = vpop.permute.xlu0 %309
  %vm311 = vcmask 654816
  %312 = vst.msk [vmem:[%s1] sm:$0xff] %vm311, %v310
  %s313 = scalar_lea.vmem %s0, 259
  %s314 = smov 3
  %v315 = vld [vmem:[%s313] ss:$16 sm:%s314]
  %s316 = scalar_lea.vmem %s0, 259
  %s317 = smov 12
  %v318 = vld [vmem:[%s316] ss:$16 sm:%s317]
  %vm319 = vcmask 1043458
  %v320 = vsel %vm319, %v318, %v315
  %s321 = scalar_lea.vmem %s0, 67
  %s322 = smov 48
  %v323 = vld [vmem:[%s321] ss:$16 sm:%s322]
  %vm324 = vcmask 1045508
  %v325 = vsel %vm324, %v323, %v320
  %s326 = scalar_lea.vmem %s0, 67
  %s327 = smov 192
  %v328 = vld [vmem:[%s326] ss:$16 sm:%s327]
  %vm329 = vcmask 1047558
  %v330 = vsel %vm329, %v328, %v325
  %331 = vrot.lane.b32.xlu0 %v330, 60
  %v332 = vpop.permute.xlu0 %331
  %vm333 = vcmask 654816
  %s334 = scalar_lea.vmem %s1, 32
  %335 = vst.msk [vmem:[%s334] sm:$0xf] %vm333, %v332
  %s336 = scalar_lea.vmem %s1, 12
  %337 = vst.msk [vmem:[%s336] sm:$0xf0] %vm333, %v332
  %s338 = scalar_lea.vmem %s0, 195
  %s339 = smov 3
  %v340 = vld [vmem:[%s338] ss:$16 sm:%s339]
  %s341 = scalar_lea.vmem %s0, 195
  %s342 = smov 12
  %v343 = vld [vmem:[%s341] ss:$16 sm:%s342]
  %vm344 = vcmask 1043458
  %v345 = vsel %vm344, %v343, %v340
  %346 = vrot.lane.b32.xlu0 %v345, 60
  %v347 = vpop.permute.xlu0 %346
  %vm348 = vcmask 654816
  %s349 = scalar_lea.vmem %s1, 20
  %350 = vst.msk [vmem:[%s349] sm:$0xf] %vm348, %v347
  %s351 = scalar_lea.vmem %s0, 9
  %s352 = smov 3
  %v353 = vld [vmem:[%s351] ss:$16 sm:%s352]
  %s354 = scalar_lea.vmem %s0, 9
  %s355 = smov 12
  %v356 = vld [vmem:[%s354] ss:$16 sm:%s355]
  %vm357 = vcmask 1043458
  %v358 = vsel %vm357, %v356, %v353
  %s359 = scalar_lea.vmem %s0, 9
  %s360 = smov 48
  %v361 = vld [vmem:[%s359] ss:$16 sm:%s360]
  %vm362 = vcmask 1045508
  %v363 = vsel %vm362, %v361, %v358
  %s364 = scalar_lea.vmem %s0, 9
  %s365 = smov 192
  %v366 = vld [vmem:[%s364] ss:$16 sm:%s365]
  %vm367 = vcmask 1047558
  %v368 = vsel %vm367, %v366, %v363
  %369 = vrot.lane.b32.xlu0 %v368, 52
  %v370 = vpop.permute.xlu0 %369
  %vm371 = vcmask 589216
  %s372 = scalar_lea.vmem %s1, 8
  %373 = vst.msk [vmem:[%s372] sm:$0xff] %vm371, %v370
  %s374 = scalar_lea.vmem %s0, 265
  %s375 = smov 3
  %v376 = vld [vmem:[%s374] ss:$16 sm:%s375]
  %s377 = scalar_lea.vmem %s0, 265
  %s378 = smov 12
  %v379 = vld [vmem:[%s377] ss:$16 sm:%s378]
  %vm380 = vcmask 1043458
  %v381 = vsel %vm380, %v379, %v376
  %s382 = scalar_lea.vmem %s0, 73
  %s383 = smov 48
  %v384 = vld [vmem:[%s382] ss:$16 sm:%s383]
  %vm385 = vcmask 1045508
  %v386 = vsel %vm385, %v384, %v381
  %s387 = scalar_lea.vmem %s0, 73
  %s388 = smov 192
  %v389 = vld [vmem:[%s387] ss:$16 sm:%s388]
  %vm390 = vcmask 1047558
  %v391 = vsel %vm390, %v389, %v386
  %392 = vrot.lane.b32.xlu0 %v391, 52
  %v393 = vpop.permute.xlu0 %392
  %vm394 = vcmask 589216
  %s395 = scalar_lea.vmem %s1, 40
  %396 = vst.msk [vmem:[%s395] sm:$0xf] %vm394, %v393
  %s397 = scalar_lea.vmem %s1, 20
  %398 = vst.msk [vmem:[%s397] sm:$0xf0] %vm394, %v393
  %s399 = scalar_lea.vmem %s0, 201
  %s400 = smov 3
  %v401 = vld [vmem:[%s399] ss:$16 sm:%s400]
  %s402 = scalar_lea.vmem %s0, 201
  %s403 = smov 12
  %v404 = vld [vmem:[%s402] ss:$16 sm:%s403]
  %vm405 = vcmask 1043458
  %v406 = vsel %vm405, %v404, %v401
  %407 = vrot.lane.b32.xlu0 %v406, 52
  %v408 = vpop.permute.xlu0 %407
  %vm409 = vcmask 589216
  %s410 = scalar_lea.vmem %s1, 28
  %411 = vst.msk [vmem:[%s410] sm:$0xf] %vm409, %v408
  %s412 = scalar_lea.vmem %s0, 2
  %s413 = smov 3
  %v414 = vld [vmem:[%s412] ss:$16 sm:%s413]
  %s415 = scalar_lea.vmem %s0, 2
  %s416 = smov 12
  %v417 = vld [vmem:[%s415] ss:$16 sm:%s416]
  %vm418 = vcmask 1043458
  %v419 = vsel %vm418, %v417, %v414
  %s420 = scalar_lea.vmem %s0, 2
  %s421 = smov 48
  %v422 = vld [vmem:[%s420] ss:$16 sm:%s421]
  %vm423 = vcmask 1045508
  %v424 = vsel %vm423, %v422, %v419
  %s425 = scalar_lea.vmem %s0, 2
  %s426 = smov 192
  %v427 = vld [vmem:[%s425] ss:$16 sm:%s426]
  %vm428 = vcmask 1047558
  %v429 = vsel %vm428, %v427, %v424
  %430 = vrot.lane.b32.xlu0 %v429, 40
  %v431 = vpop.permute.xlu0 %430
  %vm432 = vcmask 490816
  %433 = vst.msk [vmem:[%s1] sm:$0xff] %vm432, %v431
  %s434 = scalar_lea.vmem %s0, 258
  %s435 = smov 3
  %v436 = vld [vmem:[%s434] ss:$16 sm:%s435]
  %s437 = scalar_lea.vmem %s0, 258
  %s438 = smov 12
  %v439 = vld [vmem:[%s437] ss:$16 sm:%s438]
  %vm440 = vcmask 1043458
  %v441 = vsel %vm440, %v439, %v436
  %s442 = scalar_lea.vmem %s0, 66
  %s443 = smov 48
  %v444 = vld [vmem:[%s442] ss:$16 sm:%s443]
  %vm445 = vcmask 1045508
  %v446 = vsel %vm445, %v444, %v441
  %s447 = scalar_lea.vmem %s0, 66
  %s448 = smov 192
  %v449 = vld [vmem:[%s447] ss:$16 sm:%s448]
  %vm450 = vcmask 1047558
  %v451 = vsel %vm450, %v449, %v446
  %452 = vrot.lane.b32.xlu0 %v451, 40
  %v453 = vpop.permute.xlu0 %452
  %vm454 = vcmask 490816
  %s455 = scalar_lea.vmem %s1, 32
  %456 = vst.msk [vmem:[%s455] sm:$0xf] %vm454, %v453
  %s457 = scalar_lea.vmem %s1, 12
  %458 = vst.msk [vmem:[%s457] sm:$0xf0] %vm454, %v453
  %s459 = scalar_lea.vmem %s0, 194
  %s460 = smov 3
  %v461 = vld [vmem:[%s459] ss:$16 sm:%s460]
  %s462 = scalar_lea.vmem %s0, 194
  %s463 = smov 12
  %v464 = vld [vmem:[%s462] ss:$16 sm:%s463]
  %vm465 = vcmask 1043458
  %v466 = vsel %vm465, %v464, %v461
  %467 = vrot.lane.b32.xlu0 %v466, 40
  %v468 = vpop.permute.xlu0 %467
  %vm469 = vcmask 490816
  %s470 = scalar_lea.vmem %s1, 20
  %471 = vst.msk [vmem:[%s470] sm:$0xf] %vm469, %v468
  %s472 = scalar_lea.vmem %s0, 8
  %s473 = smov 3
  %v474 = vld [vmem:[%s472] ss:$16 sm:%s473]
  %s475 = scalar_lea.vmem %s0, 8
  %s476 = smov 12
  %v477 = vld [vmem:[%s475] ss:$16 sm:%s476]
  %vm478 = vcmask 1043458
  %v479 = vsel %vm478, %v477, %v474
  %s480 = scalar_lea.vmem %s0, 8
  %s481 = smov 48
  %v482 = vld [vmem:[%s480] ss:$16 sm:%s481]
  %vm483 = vcmask 1045508
  %v484 = vsel %vm483, %v482, %v479
  %s485 = scalar_lea.vmem %s0, 8
  %s486 = smov 192
  %v487 = vld [vmem:[%s485] ss:$16 sm:%s486]
  %vm488 = vcmask 1047558
  %v489 = vsel %vm488, %v487, %v484
  %490 = vrot.lane.b32.xlu0 %v489, 32
  %v491 = vpop.permute.xlu0 %490
  %vm492 = vcmask 425216
  %s493 = scalar_lea.vmem %s1, 8
  %494 = vst.msk [vmem:[%s493] sm:$0xff] %vm492, %v491
  %s495 = scalar_lea.vmem %s0, 264
  %s496 = smov 3
  %v497 = vld [vmem:[%s495] ss:$16 sm:%s496]
  %s498 = scalar_lea.vmem %s0, 264
  %s499 = smov 12
  %v500 = vld [vmem:[%s498] ss:$16 sm:%s499]
  %vm501 = vcmask 1043458
  %v502 = vsel %vm501, %v500, %v497
  %s503 = scalar_lea.vmem %s0, 72
  %s504 = smov 48
  %v505 = vld [vmem:[%s503] ss:$16 sm:%s504]
  %vm506 = vcmask 1045508
  %v507 = vsel %vm506, %v505, %v502
  %s508 = scalar_lea.vmem %s0, 72
  %s509 = smov 192
  %v510 = vld [vmem:[%s508] ss:$16 sm:%s509]
  %vm511 = vcmask 1047558
  %v512 = vsel %vm511, %v510, %v507
  %513 = vrot.lane.b32.xlu0 %v512, 32
  %v514 = vpop.permute.xlu0 %513
  %vm515 = vcmask 425216
  %s516 = scalar_lea.vmem %s1, 40
  %517 = vst.msk [vmem:[%s516] sm:$0xf] %vm515, %v514
  %s518 = scalar_lea.vmem %s1, 20
  %519 = vst.msk [vmem:[%s518] sm:$0xf0] %vm515, %v514
  %s520 = scalar_lea.vmem %s0, 200
  %s521 = smov 3
  %v522 = vld [vmem:[%s520] ss:$16 sm:%s521]
  %s523 = scalar_lea.vmem %s0, 200
  %s524 = smov 12
  %v525 = vld [vmem:[%s523] ss:$16 sm:%s524]
  %vm526 = vcmask 1043458
  %v527 = vsel %vm526, %v525, %v522
  %528 = vrot.lane.b32.xlu0 %v527, 32
  %v529 = vpop.permute.xlu0 %528
  %vm530 = vcmask 425216
  %s531 = scalar_lea.vmem %s1, 28
  %532 = vst.msk [vmem:[%s531] sm:$0xf] %vm530, %v529
  %s533 = scalar_lea.vmem %s0, 1
  %s534 = smov 3
  %v535 = vld [vmem:[%s533] ss:$16 sm:%s534]
  %s536 = scalar_lea.vmem %s0, 1
  %s537 = smov 12
  %v538 = vld [vmem:[%s536] ss:$16 sm:%s537]
  %vm539 = vcmask 1043458
  %v540 = vsel %vm539, %v538, %v535
  %s541 = scalar_lea.vmem %s0, 1
  %s542 = smov 48
  %v543 = vld [vmem:[%s541] ss:$16 sm:%s542]
  %vm544 = vcmask 1045508
  %v545 = vsel %vm544, %v543, %v540
  %s546 = scalar_lea.vmem %s0, 1
  %s547 = smov 192
  %v548 = vld [vmem:[%s546] ss:$16 sm:%s547]
  %vm549 = vcmask 1047558
  %v550 = vsel %vm549, %v548, %v545
  %551 = vrot.lane.b32.xlu0 %v550, 20
  %v552 = vpop.permute.xlu0 %551
  %vm553 = vcmask 326816
  %554 = vst.msk [vmem:[%s1] sm:$0xff] %vm553, %v552
  %s555 = scalar_lea.vmem %s0, 257
  %s556 = smov 3
  %v557 = vld [vmem:[%s555] ss:$16 sm:%s556]
  %s558 = scalar_lea.vmem %s0, 257
  %s559 = smov 12
  %v560 = vld [vmem:[%s558] ss:$16 sm:%s559]
  %vm561 = vcmask 1043458
  %v562 = vsel %vm561, %v560, %v557
  %s563 = scalar_lea.vmem %s0, 65
  %s564 = smov 48
  %v565 = vld [vmem:[%s563] ss:$16 sm:%s564]
  %vm566 = vcmask 1045508
  %v567 = vsel %vm566, %v565, %v562
  %s568 = scalar_lea.vmem %s0, 65
  %s569 = smov 192
  %v570 = vld [vmem:[%s568] ss:$16 sm:%s569]
  %vm571 = vcmask 1047558
  %v572 = vsel %vm571, %v570, %v567
  %573 = vrot.lane.b32.xlu0 %v572, 20
  %v574 = vpop.permute.xlu0 %573
  %vm575 = vcmask 326816
  %s576 = scalar_lea.vmem %s1, 32
  %577 = vst.msk [vmem:[%s576] sm:$0xf] %vm575, %v574
  %s578 = scalar_lea.vmem %s1, 12
  %579 = vst.msk [vmem:[%s578] sm:$0xf0] %vm575, %v574
  %s580 = scalar_lea.vmem %s0, 193
  %s581 = smov 3
  %v582 = vld [vmem:[%s580] ss:$16 sm:%s581]
  %s583 = scalar_lea.vmem %s0, 193
  %s584 = smov 12
  %v585 = vld [vmem:[%s583] ss:$16 sm:%s584]
  %vm586 = vcmask 1043458
  %v587 = vsel %vm586, %v585, %v582
  %588 = vrot.lane.b32.xlu0 %v587, 20
  %v589 = vpop.permute.xlu0 %588
  %vm590 = vcmask 326816
  %s591 = scalar_lea.vmem %s1, 20
  %592 = vst.msk [vmem:[%s591] sm:$0xf] %vm590, %v589
  %s593 = scalar_lea.vmem %s0, 7
  %s594 = smov 3
  %v595 = vld [vmem:[%s593] ss:$16 sm:%s594]
  %s596 = scalar_lea.vmem %s0, 7
  %s597 = smov 12
  %v598 = vld [vmem:[%s596] ss:$16 sm:%s597]
  %vm599 = vcmask 1043458
  %v600 = vsel %vm599, %v598, %v595
  %s601 = scalar_lea.vmem %s0, 7
  %s602 = smov 48
  %v603 = vld [vmem:[%s601] ss:$16 sm:%s602]
  %vm604 = vcmask 1045508
  %v605 = vsel %vm604, %v603, %v600
  %s606 = scalar_lea.vmem %s0, 7
  %s607 = smov 192
  %v608 = vld [vmem:[%s606] ss:$16 sm:%s607]
  %vm609 = vcmask 1047558
  %v610 = vsel %vm609, %v608, %v605
  %611 = vrot.lane.b32.xlu0 %v610, 12
  %v612 = vpop.permute.xlu0 %611
  %vm613 = vcmask 261216
  %s614 = scalar_lea.vmem %s1, 8
  %615 = vst.msk [vmem:[%s614] sm:$0xff] %vm613, %v612
  %s616 = scalar_lea.vmem %s0, 263
  %s617 = smov 3
  %v618 = vld [vmem:[%s616] ss:$16 sm:%s617]
  %s619 = scalar_lea.vmem %s0, 263
  %s620 = smov 12
  %v621 = vld [vmem:[%s619] ss:$16 sm:%s620]
  %vm622 = vcmask 1043458
  %v623 = vsel %vm622, %v621, %v618
  %s624 = scalar_lea.vmem %s0, 71
  %s625 = smov 48
  %v626 = vld [vmem:[%s624] ss:$16 sm:%s625]
  %vm627 = vcmask 1045508
  %v628 = vsel %vm627, %v626, %v623
  %s629 = scalar_lea.vmem %s0, 71
  %s630 = smov 192
  %v631 = vld [vmem:[%s629] ss:$16 sm:%s630]
  %vm632 = vcmask 1047558
  %v633 = vsel %vm632, %v631, %v628
  %634 = vrot.lane.b32.xlu0 %v633, 12
  %v635 = vpop.permute.xlu0 %634
  %vm636 = vcmask 261216
  %s637 = scalar_lea.vmem %s1, 40
  %638 = vst.msk [vmem:[%s637] sm:$0xf] %vm636, %v635
  %s639 = scalar_lea.vmem %s1, 20
  %640 = vst.msk [vmem:[%s639] sm:$0xf0] %vm636, %v635
  %s641 = scalar_lea.vmem %s0, 199
  %s642 = smov 3
  %v643 = vld [vmem:[%s641] ss:$16 sm:%s642]
  %s644 = scalar_lea.vmem %s0, 199
  %s645 = smov 12
  %v646 = vld [vmem:[%s644] ss:$16 sm:%s645]
  %vm647 = vcmask 1043458
  %v648 = vsel %vm647, %v646, %v643
  %649 = vrot.lane.b32.xlu0 %v648, 12
  %v650 = vpop.permute.xlu0 %649
  %vm651 = vcmask 261216
  %s652 = scalar_lea.vmem %s1, 28
  %653 = vst.msk [vmem:[%s652] sm:$0xf] %vm651, %v650

// kernel: attns2_forward.1
$region0: #{attns2_forward.1}
  #allocation0 [shape = 'u32[]', space=smem, size = 0x4, offset = 0x4, fixed_abs, tag = 'smem constant byte address 0x4 - core index']
  #allocation1 [shape = 'u32[72,128]{1,0:T(1,128)}', space=vmem, size = 0x9000, scoped, tag = 'internal scratch']
  %s0 = inlined_call_operand.smem [shape: u32[31], index: -1, kind: input, shape index: {}]
  %s1 = sld [smem:[%s0]]
  %s2 = scalar_lea.smem %s0, 1
  %s3 = sld [smem:[%s2]]
  %s4 = scalar_lea.smem %s0, 2
  %s5 = sld [smem:[%s4]]
  %s6 = scalar_lea.smem %s0, 3
  %s7 = sld [smem:[%s6]]
  %s8 = scalar_lea.smem %s0, 4
  %s9 = sld [smem:[%s8]]
  %s10 = scalar_lea.smem %s0, 5
  %s11 = sld [smem:[%s10]]
  %s12 = scalar_lea.smem %s0, 6
  %s13 = sld [smem:[%s12]]
  %s14 = scalar_lea.smem %s0, 7
  %s15 = sld [smem:[%s14]]
  %s16 = scalar_lea.smem %s0, 8
  %s17 = sld [smem:[%s16]]
  %s18 = scalar_lea.smem %s0, 9
  %s19 = sld [smem:[%s18]]
  %s20 = scalar_lea.smem %s0, 10
  %s21 = sld [smem:[%s20]]
  %s22 = scalar_lea.smem %s0, 11
  %s23 = sld [smem:[%s22]]
  %s24 = scalar_lea.smem %s0, 12
  %s25 = sld [smem:[%s24]]
  %s26 = scalar_lea.smem %s0, 13
  %s27 = sld [smem:[%s26]]
  %s28 = scalar_lea.smem %s0, 14
  %s29 = sld [smem:[%s28]]
  %s30 = scalar_lea.smem %s0, 15
  %s31 = sld [smem:[%s30]]
  %s32 = scalar_lea.smem %s0, 16
  %s33 = sld [smem:[%s32]]
  %s34 = scalar_lea.smem %s0, 17
  %s35 = sld [smem:[%s34]]
  %s36 = scalar_lea.smem %s0, 18
  %s37 = sld [smem:[%s36]]
  %s38 = scalar_lea.smem %s0, 19
  %s39 = sld [smem:[%s38]]
  %s40 = scalar_lea.smem %s0, 20
  %s41 = sld [smem:[%s40]]
  %s42 = scalar_lea.smem %s0, 21
  %s43 = sld [smem:[%s42]]
  %s44 = scalar_lea.smem %s0, 22
  %s45 = sld [smem:[%s44]]
  %s46 = scalar_lea.smem %s0, 23
  %s47 = sld [smem:[%s46]]
  %s48 = scalar_lea.smem %s0, 24
  %s49 = sld [smem:[%s48]]
  %s50 = scalar_lea.smem %s0, 25
  %s51 = sld [smem:[%s50]]
  %s52 = scalar_lea.smem %s0, 26
  %s53 = sld [smem:[%s52]]
  %s54 = scalar_lea.smem %s0, 27
  %s55 = sld [smem:[%s54]]
  %s56 = scalar_lea.smem %s0, 28
  %s57 = sld [smem:[%s56]]
  %s58 = scalar_lea.smem %s0, 29
  %s59 = sld [smem:[%s58]]
  %s60 = scalar_lea.smem %s0, 30
  %s61 = sld [smem:[%s60]]
  %s62 = sld [smem:[#allocation0]]
  $region130: #{attns2_forward.1} parent=0
    _
  %s64 = ssub.s32 1, %s62
  %s65 = scalar_select 0, %s64, %s62
  $region1: #{attns2_forward.1} parent=0
    #allocation2 [shape = 'u8[1024]{0}', space=vmem, size = 0x400, scoped, tag = 'output window, operand 0, single buffered']
    #allocation3 [shape = 's32[1]{0}', space=sflag, size = 0x4, scoped, tag = 'scoped memory for attns2_forward.1']
    %66 = vsyncpa [#allocation3], 0
    // Predicated region
    $region2: #{attns2_forward.1} parent=1 // pred_check
      _
    $region3: #{attns2_forward.1} parent=1 // pred_check_branch
      %68 = sbr.rel (0) target = $region5
    $region4: #{attns2_forward.1} parent=1 // pred_region
      _
    $region5: #{attns2_forward.1} parent=1 // pred_fallthru
      _
    // Predicated region
    $region6: #{attns2_forward.1} parent=1 // pred_check
      _
    $region7: #{attns2_forward.1} parent=1 // pred_check_branch
      %70 = sbr.rel (0) target = $region9
    $region8: #{attns2_forward.1} parent=1 // pred_region
      _
    $region9: #{attns2_forward.1} parent=1 // pred_fallthru
      _
    // Predicated region
    $region10: #{attns2_forward.1} parent=1 // pred_check
      _
    $region11: #{attns2_forward.1} parent=1 // pred_check_branch
      %72 = sbr.rel (0) target = $region13
    $region12: #{attns2_forward.1} parent=1 // pred_region
      _
    $region13: #{attns2_forward.1} parent=1 // pred_fallthru
      _
    // Predicated region
    $region14: #{attns2_forward.1} parent=1 // pred_check
      _
    $region15: #{attns2_forward.1} parent=1 // pred_check_branch
      %74 = sbr.rel (0) target = $region17
    $region16: #{attns2_forward.1} parent=1 // pred_region
      _
    $region17: #{attns2_forward.1} parent=1 // pred_fallthru
      _
    // Predicated region
    $region18: #{attns2_forward.1} parent=1 // pred_check
      _
    $region19: #{attns2_forward.1} parent=1 // pred_check_branch
      %76 = sbr.rel (0) target = $region21
    $region20: #{attns2_forward.1} parent=1 // pred_region
      _
    $region21: #{attns2_forward.1} parent=1 // pred_fallthru
      _
    // Predicated region
    $region22: #{attns2_forward.1} parent=1 // pred_check
      _
    $region23: #{attns2_forward.1} parent=1 // pred_check_branch
      %78 = sbr.rel (0) target = $region25
    $region24: #{attns2_forward.1} parent=1 // pred_region
      _
    $region25: #{attns2_forward.1} parent=1 // pred_fallthru
      _
    // Predicated region
    $region26: #{attns2_forward.1} parent=1 // pred_check
      _
    $region27: #{attns2_forward.1} parent=1 // pred_check_branch
      %80 = sbr.rel (0) target = $region29
    $region28: #{attns2_forward.1} parent=1 // pred_region
      _
    $region29: #{attns2_forward.1} parent=1 // pred_fallthru
      _
    // Predicated region
    $region30: #{attns2_forward.1} parent=1 // pred_check
      _
    $region31: #{attns2_forward.1} parent=1 // pred_check_branch
      %82 = sbr.rel (0) target = $region33
    $region32: #{attns2_forward.1} parent=1 // pred_region
      _
    $region33: #{attns2_forward.1} parent=1 // pred_fallthru
      _
    // Predicated region
    $region34: #{attns2_forward.1} parent=1 // pred_check
      _
    $region35: #{attns2_forward.1} parent=1 // pred_check_branch
      %84 = sbr.rel (0) target = $region37
    $region36: #{attns2_forward.1} parent=1 // pred_region
      _
    $region37: #{attns2_forward.1} parent=1 // pred_fallthru
      _
    // Predicated region
    $region38: #{attns2_forward.1} parent=1 // pred_check
      _
    $region39: #{attns2_forward.1} parent=1 // pred_check_branch
      %86 = sbr.rel (0) target = $region41
    $region40: #{attns2_forward.1} parent=1 // pred_region
      _
    $region41: #{attns2_forward.1} parent=1 // pred_fallthru
      _
    // Predicated region
    $region42: #{attns2_forward.1} parent=1 // pred_check
      _
    $region43: #{attns2_forward.1} parent=1 // pred_check_branch
      %88 = sbr.rel (0) target = $region45
    $region44: #{attns2_forward.1} parent=1 // pred_region
      _
    $region45: #{attns2_forward.1} parent=1 // pred_fallthru
      _
    // Predicated region
    $region46: #{attns2_forward.1} parent=1 // pred_check
      _
    $region47: #{attns2_forward.1} parent=1 // pred_check_branch
      %90 = sbr.rel (0) target = $region49
    $region48: #{attns2_forward.1} parent=1 // pred_region
      _
    $region49: #{attns2_forward.1} parent=1 // pred_fallthru
      _
    // Predicated region
    $region50: #{attns2_forward.1} parent=1 // pred_check
      _
    $region51: #{attns2_forward.1} parent=1 // pred_check_branch
      %92 = sbr.rel (0) target = $region53
    $region52: #{attns2_forward.1} parent=1 // pred_region
      _
    $region53: #{attns2_forward.1} parent=1 // pred_fallthru
      _
    // Predicated region
    $region54: #{attns2_forward.1} parent=1 // pred_check
      _
    $region55: #{attns2_forward.1} parent=1 // pred_check_branch
      %94 = sbr.rel (0) target = $region57
    $region56: #{attns2_forward.1} parent=1 // pred_region
      _
    $region57: #{attns2_forward.1} parent=1 // pred_fallthru
      _
    // Predicated region
    $region58: #{attns2_forward.1} parent=1 // pred_check
      _
    $region59: #{attns2_forward.1} parent=1 // pred_check_branch
      %96 = sbr.rel (0) target = $region61
    $region60: #{attns2_forward.1} parent=1 // pred_region
      _
    $region61: #{attns2_forward.1} parent=1 // pred_fallthru
      _
    // Predicated region
    $region62: #{attns2_forward.1} parent=1 // pred_check
      _
    $region63: #{attns2_forward.1} parent=1 // pred_check_branch
      %98 = sbr.rel (0) target = $region65
    $region64: #{attns2_forward.1} parent=1 // pred_region
      _
    $region65: #{attns2_forward.1} parent=1 // pred_fallthru
      _
    // Predicated region
    $region66: #{attns2_forward.1} parent=1 // pred_check
      _
    $region67: #{attns2_forward.1} parent=1 // pred_check_branch
      %100 = sbr.rel (0) target = $region69
    $region68: #{attns2_forward.1} parent=1 // pred_region
      _
    $region69: #{attns2_forward.1} parent=1 // pred_fallthru
      _
    // Predicated region
    $region70: #{attns2_forward.1} parent=1 // pred_check
      _
    $region71: #{attns2_forward.1} parent=1 // pred_check_branch
      %102 = sbr.rel (0) target = $region73
    $region72: #{attns2_forward.1} parent=1 // pred_region
      _
    $region73: #{attns2_forward.1} parent=1 // pred_fallthru
      _
    // Predicated region
    $region74: #{attns2_forward.1} parent=1 // pred_check
      _
    $region75: #{attns2_forward.1} parent=1 // pred_check_branch
      %104 = sbr.rel (0) target = $region77
    $region76: #{attns2_forward.1} parent=1 // pred_region
      _
    $region77: #{attns2_forward.1} parent=1 // pred_fallthru
      _
    // Predicated region
    $region78: #{attns2_forward.1} parent=1 // pred_check
      _
    $region79: #{attns2_forward.1} parent=1 // pred_check_branch
      %106 = sbr.rel (0) target = $region81
    $region80: #{attns2_forward.1} parent=1 // pred_region
      _
    $region81: #{attns2_forward.1} parent=1 // pred_fallthru
      _
    // Predicated region
    $region82: #{attns2_forward.1} parent=1 // pred_check
      _
    $region83: #{attns2_forward.1} parent=1 // pred_check_branch
      %108 = sbr.rel (0) target = $region85
    $region84: #{attns2_forward.1} parent=1 // pred_region
      _
    $region85: #{attns2_forward.1} parent=1 // pred_fallthru
      _
    // Predicated region
    $region86: #{attns2_forward.1} parent=1 // pred_check
      _
    $region87: #{attns2_forward.1} parent=1 // pred_check_branch
      %110 = sbr.rel (0) target = $region89
    $region88: #{attns2_forward.1} parent=1 // pred_region
      _
    $region89: #{attns2_forward.1} parent=1 // pred_fallthru
      _
    // Predicated region
    $region90: #{attns2_forward.1} parent=1 // pred_check
      _
    $region91: #{attns2_forward.1} parent=1 // pred_check_branch
      %112 = sbr.rel (0) target = $region93
    $region92: #{attns2_forward.1} parent=1 // pred_region
      _
    $region93: #{attns2_forward.1} parent=1 // pred_fallthru
      _
    // Predicated region
    $region94: #{attns2_forward.1} parent=1 // pred_check
      _
    $region95: #{attns2_forward.1} parent=1 // pred_check_branch
      %114 = sbr.rel (0) target = $region97
    $region96: #{attns2_forward.1} parent=1 // pred_region
      _
    $region97: #{attns2_forward.1} parent=1 // pred_fallthru
      _
    // Predicated region
    $region98: #{attns2_forward.1} parent=1 // pred_check
      _
    $region99: #{attns2_forward.1} parent=1 // pred_check_branch
      %116 = sbr.rel (0) target = $region101
    $region100: #{attns2_forward.1} parent=1 // pred_region
      _
    $region101: #{attns2_forward.1} parent=1 // pred_fallthru
      _
    // Predicated region
    $region102: #{attns2_forward.1} parent=1 // pred_check
      _
    $region103: #{attns2_forward.1} parent=1 // pred_check_branch
      %118 = sbr.rel (0) target = $region105
    $region104: #{attns2_forward.1} parent=1 // pred_region
      _
    $region105: #{attns2_forward.1} parent=1 // pred_fallthru
      _
    // Predicated region
    $region106: #{attns2_forward.1} parent=1 // pred_check
      _
    $region107: #{attns2_forward.1} parent=1 // pred_check_branch
      %120 = sbr.rel (0) target = $region109
    $region108: #{attns2_forward.1} parent=1 // pred_region
      _
    $region109: #{attns2_forward.1} parent=1 // pred_fallthru
      _
    // Predicated region
    $region110: #{attns2_forward.1} parent=1 // pred_check
      _
    $region111: #{attns2_forward.1} parent=1 // pred_check_branch
      %122 = sbr.rel (0) target = $region113
    $region112: #{attns2_forward.1} parent=1 // pred_region
      _
    $region113: #{attns2_forward.1} parent=1 // pred_fallthru
      _
    // Predicated region
    $region114: #{attns2_forward.1} parent=1 // pred_check
      _
    $region115: #{attns2_forward.1} parent=1 // pred_check_branch
      %124 = sbr.rel (0) target = $region117
    $region116: #{attns2_forward.1} parent=1 // pred_region
      _
    $region117: #{attns2_forward.1} parent=1 // pred_fallthru
      _
    // Predicated region
    $region118: #{attns2_forward.1} parent=1 // pred_check
      _
    $region119: #{attns2_forward.1} parent=1 // pred_check_branch
      %126 = sbr.rel (0) target = $region121
    $region120: #{attns2_forward.1} parent=1 // pred_region
      _
    $region121: #{attns2_forward.1} parent=1 // pred_fallthru
      _
    %v127 = vld [vmem:[%s1] sm:$0xff]
    %v128 = vld [vmem:[%s1 + $0x8] sm:$0xff]
    %v129 = vld [vmem:[%s1 + $0x10] sm:$0xf]
    %v130 = vlaneseq
    %v131 = vand.u32 %v130, 127
    %132 = vset.pattern.permute.xlu0 0
    %133 = vperm.xlu0 %132, %v127
    %v134 = vpop.permute.xlu0 %133
    %135 = vset.pattern.permute.xlu0 0
    %136 = vperm.xlu0 %135, %v128
    %v137 = vpop.permute.xlu0 %136
    %138 = vset.pattern.permute.xlu0 0
    %139 = vperm.xlu0 %138, %v129
    %v140 = vpop.permute.xlu0 %139
    %vm141 = vcmp.eq.s32.totalorder %v134, %v131
    %vm142 = vcmp.eq.s32.totalorder %v137, %v131
    %vm143 = vcmp.eq.s32.totalorder %v140, %v131
    %v144 = vsel %vm141, 1, 0
    %v145 = vsel %vm142, 1, 0
    %v146 = vsel %vm143, 1, 0
    %v147 = vcvt.s32.f32 %v144
    %v148 = vcvt.s32.f32 %v145
    %v149 = vcvt.s32.f32 %v146
    %v150 = vld [vmem:[%s3] sm:$0xff]
    %v151 = vld [vmem:[%s3 + $0x8] sm:$0xff]
    %v152 = vld [vmem:[%s3 + $0x10] sm:$0xf]
    %v153 = vld [vmem:[%s5] sm:$0xff]
    %v154 = vld [vmem:[%s5 + $0x8] sm:$0xff]
    %v155 = vld [vmem:[%s5 + $0x10] sm:$0xf]
    %vm156 = vcmask 162816
    %v158 = vsel %vm156, %v147, 0
    %v161 = vsel %vm156, %v148, 0
    %v164 = vsel %vm156, %v149, 0
    %vm166 = vcmask 1043456
    %v168 = vsel %vm166, %v152, 0
    %170 = vmatpush.msra.mxu0 0.0
    %171 = vmatpush.msra.mxu0 0.0
    %172 = vmatpush.msra.mxu0 0.0
    %173 = vmatpush.msra.mxu0 0.0
    %174 = vmatpush.msra.mxu0 0.0
    %175 = vmatpush.msra.mxu0 0.0
    %176 = vmatpush.msra.mxu0 0.0
    %177 = vmatpush.msra.mxu0 0.0
    %178 = vmatpush.msra.mxu0 0.0
    %179 = vmatpush.msra.mxu0 0.0
    %180 = vmatpush.msra.mxu0 0.0
    %181 = vmatpush.msra.mxu0 0.0
    %182 = vmatpush.msra.mxu0 0.0
    %183 = vmatpush.msra.mxu0 %v168
    %184 = vmatpush.msra.mxu0 %v151
    %185 = vmatpush.msra.mxu0 %v150
    %186 = vmatmul.f32.gmra.mxu0 %v158
    %v187 = vpop.f32.mrf.mxu0
    %v188 = vadd.f32 %v153, %v187
    %189 = vmatmul.f32.gmra.mxu0 %v161
    %v190 = vpop.f32.mrf.mxu0
    %v191 = vadd.f32 %v154, %v190
    %192 = vmatmul.f32.gmra.mxu0 %v164
    %v193 = vpop.f32.mrf.mxu0
    %v194 = vadd.f32 %v155, %v193
    %195 = vdwg.mxu0
    %v196 = vld [vmem:[%s7] sm:$0xff]
    %v197 = vld [vmem:[%s7 + $0x8] sm:$0xff]
    %v198 = vld [vmem:[%s7 + $0x10] sm:$0xff]
    %v199 = vld [vmem:[%s7 + $0x18] sm:$0xff]
    %v200 = vld [vmem:[%s7 + $0x20] sm:$0xff]
    %v201 = vld [vmem:[%s7 + $0x28] sm:$0xff]
    %v202 = vld [vmem:[%s7 + $0x30] sm:$0xff]
    %v203 = vld [vmem:[%s7 + $0x38] sm:$0xff]
    %v204 = vld [vmem:[%s7 + $0x40] sm:$0xff]
    %v205 = vld [vmem:[%s7 + $0x48] sm:$0xff]
    %v206 = vld [vmem:[%s9] sm:$0xff]
    %v207 = vld [vmem:[%s9 + $0x8] sm:$0xff]
    %v208 = vld [vmem:[%s9 + $0x10] sm:$0xff]
    %v209 = vld [vmem:[%s9 + $0x18] sm:$0xff]
    %v210 = vld [vmem:[%s9 + $0x20] sm:$0xff]
    %v211 = vld [vmem:[%s9 + $0x28] sm:$0xff]
    %v212 = vld [vmem:[%s9 + $0x30] sm:$0xff]
    %v213 = vld [vmem:[%s9 + $0x38] sm:$0xff]
    %v214 = vld [vmem:[%s9 + $0x40] sm:$0xff]
    %v215 = vld [vmem:[%s9 + $0x48] sm:$0xff]
    %v216 = vld [vmem:[%s11] sm:$0xff]
    %v217 = vld [vmem:[%s11 + $0x8] sm:$0xff]
    %v218 = vld [vmem:[%s11 + $0x10] sm:$0xf]
    %v219 = vld [vmem:[%s13] sm:$0xff]
    %v220 = vld [vmem:[%s13 + $0x8] sm:$0xff]
    %v221 = vld [vmem:[%s13 + $0x10] sm:$0xff]
    %v222 = vld [vmem:[%s13 + $0x18] sm:$0xff]
    %v223 = vld [vmem:[%s13 + $0x20] sm:$0xff]
    %v224 = vld [vmem:[%s13 + $0x28] sm:$0xff]
    %v225 = vld [vmem:[%s13 + $0x30] sm:$0xff]
    %v226 = vld [vmem:[%s13 + $0x38] sm:$0xff]
    %v227 = vld [vmem:[%s13 + $0x40] sm:$0xff]
    %v228 = vld [vmem:[%s13 + $0x48] sm:$0xff]
    %v229 = vld [vmem:[%s21] sm:$0xff]
    %v230 = vld [vmem:[%s21 + $0x8] sm:$0xff]
    %v231 = vld [vmem:[%s21 + $0x10] sm:$0xf]
    %v232 = vld [vmem:[%s27] sm:$0x1]
    %v234 = vperm.slane %v232, 0
    %v237 = vsel %vm156, %v188, 0
    %v240 = vsel %vm156, %v191, 0
    %v243 = vsel %vm156, %v194, 0
    %v246 = vsel %vm166, %v231, 0
    %248 = vmatpush.msra.mxu0 0.0
    %249 = vmatpush.msra.mxu0 0.0
    %250 = vmatpush.msra.mxu0 0.0
    %251 = vmatpush.msra.mxu0 0.0
    %252 = vmatpush.msra.mxu0 0.0
    %253 = vmatpush.msra.mxu0 0.0
    %254 = vmatpush.msra.mxu0 0.0
    %255 = vmatpush.msra.mxu0 0.0
    %256 = vmatpush.msra.mxu0 0.0
    %257 = vmatpush.msra.mxu0 0.0
    %258 = vmatpush.msra.mxu0 0.0
    %259 = vmatpush.msra.mxu0 0.0
    %260 = vmatpush.msra.mxu0 0.0
    %261 = vmatpush.msra.mxu0 %v246
    %262 = vmatpush.msra.mxu0 %v230
    %263 = vmatpush.msra.mxu0 %v229
    %264 = vmatmul.f32.gmra.mxu0 %v237
    %v265 = vpop.f32.mrf.mxu0
    %v266 = vadd.f32 %v234, %v265
    %267 = vmatmul.f32.gmra.mxu0 %v240
    %v268 = vpop.f32.mrf.mxu0
    %v269 = vadd.f32 %v234, %v268
    %270 = vmatmul.f32.gmra.mxu0 %v243
    %v271 = vpop.f32.mrf.mxu0
    %v272 = vadd.f32 %v234, %v271
    %273 = vdwg.mxu0
    %v274 = vld [vmem:[%s23] sm:$0xff]
    %v275 = vld [vmem:[%s23 + $0x8] sm:$0xff]
    %v276 = vld [vmem:[%s23 + $0x10] sm:$0xf]
    %v277 = vld [vmem:[%s29] sm:$0x1]
    %v279 = vperm.slane %v277, 0
    %v282 = vsel %vm166, %v276, 0
    %284 = vmatpush.msra.mxu0 0.0
    %285 = vmatpush.msra.mxu0 0.0
    %286 = vmatpush.msra.mxu0 0.0
    %287 = vmatpush.msra.mxu0 0.0
    %288 = vmatpush.msra.mxu0 0.0
    %289 = vmatpush.msra.mxu0 0.0
    %290 = vmatpush.msra.mxu0 0.0
    %291 = vmatpush.msra.mxu0 0.0
    %292 = vmatpush.msra.mxu0 0.0
    %293 = vmatpush.msra.mxu0 0.0
    %294 = vmatpush.msra.mxu0 0.0
    %295 = vmatpush.msra.mxu0 0.0
    %296 = vmatpush.msra.mxu0 0.0
    %297 = vmatpush.msra.mxu0 %v282
    %298 = vmatpush.msra.mxu0 %v275
    %299 = vmatpush.msra.mxu0 %v274
    %300 = vmatmul.f32.gmra.mxu0 %v237
    %v301 = vpop.f32.mrf.mxu0
    %v302 = vadd.f32 %v279, %v301
    %303 = vmatmul.f32.gmra.mxu0 %v240
    %v304 = vpop.f32.mrf.mxu0
    %v305 = vadd.f32 %v279, %v304
    %306 = vmatmul.f32.gmra.mxu0 %v243
    %v307 = vpop.f32.mrf.mxu0
    %v308 = vadd.f32 %v279, %v307
    %309 = vdwg.mxu0
    %v310 = vld [vmem:[%s25] sm:$0xff]
    %v311 = vld [vmem:[%s25 + $0x8] sm:$0xff]
    %v312 = vld [vmem:[%s25 + $0x10] sm:$0xf]
    %v313 = vld [vmem:[%s31] sm:$0x1]
    %v315 = vperm.slane %v313, 0
    %v318 = vsel %vm166, %v312, 0
    %320 = vmatpush.msra.mxu0 0.0
    %321 = vmatpush.msra.mxu0 0.0
    %322 = vmatpush.msra.mxu0 0.0
    %323 = vmatpush.msra.mxu0 0.0
    %324 = vmatpush.msra.mxu0 0.0
    %325 = vmatpush.msra.mxu0 0.0
    %326 = vmatpush.msra.mxu0 0.0
    %327 = vmatpush.msra.mxu0 0.0
    %328 = vmatpush.msra.mxu0 0.0
    %329 = vmatpush.msra.mxu0 0.0
    %330 = vmatpush.msra.mxu0 0.0
    %331 = vmatpush.msra.mxu0 0.0
    %332 = vmatpush.msra.mxu0 0.0
    %333 = vmatpush.msra.mxu0 %v318
    %334 = vmatpush.msra.mxu0 %v311
    %335 = vmatpush.msra.mxu0 %v310
    %336 = vmatmul.f32.gmra.mxu0 %v237
    %v337 = vpop.f32.mrf.mxu0
    %v338 = vadd.f32 %v315, %v337
    %339 = vmatmul.f32.gmra.mxu0 %v240
    %v340 = vpop.f32.mrf.mxu0
    %v341 = vadd.f32 %v315, %v340
    %342 = vmatmul.f32.gmra.mxu0 %v243
    %v343 = vpop.f32.mrf.mxu0
    %v344 = vadd.f32 %v315, %v343
    %345 = vdwg.mxu0
    %v347 = vsel %vm156, %v206, 0
    %v350 = vsel %vm156, %v207, 0
    %v353 = vsel %vm156, %v208, 0
    %v356 = vsel %vm156, %v209, 0
    %v359 = vsel %vm156, %v210, 0
    %v362 = vsel %vm156, %v211, 0
    %v365 = vsel %vm156, %v212, 0
    %v368 = vsel %vm156, %v213, 0
    %v371 = vsel %vm156, %v214, 0
    %v374 = vsel %vm156, %v215, 0
    %v377 = vsel %vm166, %v272, 0
    %379 = vmatpush.msra.mxu0 0.0
    %380 = vmatpush.msra.mxu0 0.0
    %381 = vmatpush.msra.mxu0 0.0
    %382 = vmatpush.msra.mxu0 0.0
    %383 = vmatpush.msra.mxu0 0.0
    %384 = vmatpush.msra.mxu0 0.0
    %385 = vmatpush.msra.mxu0 0.0
    %386 = vmatpush.msra.mxu0 0.0
    %387 = vmatpush.msra.mxu0 0.0
    %388 = vmatpush.msra.mxu0 0.0
    %389 = vmatpush.msra.mxu0 0.0
    %390 = vmatpush.msra.mxu0 0.0
    %391 = vmatpush.msra.mxu0 0.0
    %392 = vmatpush.msra.mxu0 %v377
    %393 = vmatpush.msra.mxu0 %v269
    %394 = vmatpush.msra.mxu0 %v266
    %395 = vmatmul.f32.gmra.mxu0 %v347
    %v396 = vpop.f32.mrf.mxu0
    %v397 = vadd.f32 0.0, %v396
    %398 = vmatmul.f32.gmra.mxu0 %v350
    %v399 = vpop.f32.mrf.mxu0
    %v400 = vadd.f32 0.0, %v399
    %401 = vmatmul.f32.gmra.mxu0 %v353
    %v402 = vpop.f32.mrf.mxu0
    %v403 = vadd.f32 0.0, %v402
    %404 = vmatmul.f32.gmra.mxu0 %v356
    %v405 = vpop.f32.mrf.mxu0
    %v406 = vadd.f32 0.0, %v405
    %407 = vmatmul.f32.gmra.mxu0 %v359
    %v408 = vpop.f32.mrf.mxu0
    %v409 = vadd.f32 0.0, %v408
    %410 = vmatmul.f32.gmra.mxu0 %v362
    %v411 = vpop.f32.mrf.mxu0
    %v412 = vadd.f32 0.0, %v411
    %413 = vmatmul.f32.gmra.mxu0 %v365
    %v414 = vpop.f32.mrf.mxu0
    %v415 = vadd.f32 0.0, %v414
    %416 = vmatmul.f32.gmra.mxu0 %v368
    %v417 = vpop.f32.mrf.mxu0
    %v418 = vadd.f32 0.0, %v417
    %419 = vmatmul.f32.gmra.mxu0 %v371
    %v420 = vpop.f32.mrf.mxu0
    %v421 = vadd.f32 0.0, %v420
    %422 = vmatmul.f32.gmra.mxu0 %v374
    %v423 = vpop.f32.mrf.mxu0
    %v424 = vadd.f32 0.0, %v423
    %425 = vdwg.mxu0
    %v426 = vmul.f32 %v397, %v196
    %v427 = vmul.f32 %v400, %v197
    %v428 = vmul.f32 %v403, %v198
    %v429 = vmul.f32 %v406, %v199
    %v430 = vmul.f32 %v409, %v200
    %v431 = vmul.f32 %v412, %v201
    %v432 = vmul.f32 %v415, %v202
    %v433 = vmul.f32 %v418, %v203
    %v434 = vmul.f32 %v421, %v204
    %v435 = vmul.f32 %v424, %v205
    %v437 = vsel %vm156, %v426, 0
    %v440 = vsel %vm156, %v427, 0
    %v443 = vsel %vm156, %v428, 0
    %v446 = vsel %vm156, %v429, 0
    %v449 = vsel %vm156, %v430, 0
    %v452 = vsel %vm156, %v431, 0
    %v455 = vsel %vm156, %v432, 0
    %v458 = vsel %vm156, %v433, 0
    %v461 = vsel %vm156, %v434, 0
    %v464 = vsel %vm156, %v435, 0
    %v467 = vsel %vm156, %v302, 0
    %v470 = vsel %vm156, %v305, 0
    %v473 = vsel %vm156, %v308, 0
    %475 = vmatpush.xpose.msra.mxu0 0.0
    %476 = vmatpush.xpose.msra.mxu0 0.0
    %477 = vmatpush.xpose.msra.mxu0 0.0
    %478 = vmatpush.xpose.msra.mxu0 0.0
    %479 = vmatpush.xpose.msra.mxu0 0.0
    %480 = vmatpush.xpose.msra.mxu0 0.0
    %481 = vmatpush.xpose.msra.mxu0 0.0
    %482 = vmatpush.xpose.msra.mxu0 0.0
    %483 = vmatpush.xpose.msra.mxu0 0.0
    %484 = vmatpush.xpose.msra.mxu0 0.0
    %485 = vmatpush.xpose.msra.mxu0 0.0
    %486 = vmatpush.xpose.msra.mxu0 0.0
    %487 = vmatpush.xpose.msra.mxu0 0.0
    %488 = vmatpush.xpose.msra.mxu0 %v473
    %489 = vmatpush.xpose.msra.mxu0 %v470
    %490 = vmatpush.xpose.msra.mxu0 %v467
    %491 = vmatmul.f32.gmra.mxu0 %v437
    %v492 = vpop.f32.mrf.mxu0
    %v493 = vadd.f32 0.0, %v492
    %494 = vmatmul.f32.gmra.mxu0 %v440
    %v495 = vpop.f32.mrf.mxu0
    %v496 = vadd.f32 0.0, %v495
    %497 = vmatmul.f32.gmra.mxu0 %v443
    %v498 = vpop.f32.mrf.mxu0
    %v499 = vadd.f32 0.0, %v498
    %500 = vmatmul.f32.gmra.mxu0 %v446
    %v501 = vpop.f32.mrf.mxu0
    %v502 = vadd.f32 0.0, %v501
    %503 = vmatmul.f32.gmra.mxu0 %v449
    %v504 = vpop.f32.mrf.mxu0
    %v505 = vadd.f32 0.0, %v504
    %506 = vmatmul.f32.gmra.mxu0 %v452
    %v507 = vpop.f32.mrf.mxu0
    %v508 = vadd.f32 0.0, %v507
    %509 = vmatmul.f32.gmra.mxu0 %v455
    %v510 = vpop.f32.mrf.mxu0
    %v511 = vadd.f32 0.0, %v510
    %512 = vmatmul.f32.gmra.mxu0 %v458
    %v513 = vpop.f32.mrf.mxu0
    %v514 = vadd.f32 0.0, %v513
    %515 = vmatmul.f32.gmra.mxu0 %v461
    %v516 = vpop.f32.mrf.mxu0
    %v517 = vadd.f32 0.0, %v516
    %518 = vmatmul.f32.gmra.mxu0 %v464
    %v519 = vpop.f32.mrf.mxu0
    %v520 = vadd.f32 0.0, %v519
    %521 = vdwg.mxu0
    %v522 = vmul.f32 %v493, 0.4472136
    %v523 = vmul.f32 %v496, 0.4472136
    %v524 = vmul.f32 %v499, 0.4472136
    %v525 = vmul.f32 %v502, 0.4472136
    %v526 = vmul.f32 %v505, 0.4472136
    %v527 = vmul.f32 %v508, 0.4472136
    %v528 = vmul.f32 %v511, 0.4472136
    %v529 = vmul.f32 %v514, 0.4472136
    %v530 = vmul.f32 %v517, 0.4472136
    %v531 = vmul.f32 %v520, 0.4472136
    %v532 = vadd.f32 %v522, %v219
    %v533 = vadd.f32 %v523, %v220
    %v534 = vadd.f32 %v524, %v221
    %v535 = vadd.f32 %v525, %v222
    %v536 = vadd.f32 %v526, %v223
    %v537 = vadd.f32 %v527, %v224
    %v538 = vadd.f32 %v528, %v225
    %v539 = vadd.f32 %v529, %v226
    %v540 = vadd.f32 %v530, %v227
    %v541 = vadd.f32 %v531, %v228
    %v542 = vsel %vm156, %v532, -inf
    %543 = vmax.xlane.f32.xlu0 %v542
    %v544 = vpop.xlane.xlu0 %543
    %v545 = vsel %vm156, %v533, -inf
    %546 = vmax.xlane.f32.xlu0 %v545
    %v547 = vpop.xlane.xlu0 %546
    %v548 = vsel %vm156, %v534, -inf
    %549 = vmax.xlane.f32.xlu0 %v548
    %v550 = vpop.xlane.xlu0 %549
    %v551 = vsel %vm156, %v535, -inf
    %552 = vmax.xlane.f32.xlu0 %v551
    %v553 = vpop.xlane.xlu0 %552
    %v554 = vsel %vm156, %v536, -inf
    %555 = vmax.xlane.f32.xlu0 %v554
    %v556 = vpop.xlane.xlu0 %555
    %v557 = vsel %vm156, %v537, -inf
    %558 = vmax.xlane.f32.xlu0 %v557
    %v559 = vpop.xlane.xlu0 %558
    %v560 = vsel %vm156, %v538, -inf
    %561 = vmax.xlane.f32.xlu0 %v560
    %v562 = vpop.xlane.xlu0 %561
    %v563 = vsel %vm156, %v539, -inf
    %564 = vmax.xlane.f32.xlu0 %v563
    %v565 = vpop.xlane.xlu0 %564
    %v566 = vsel %vm156, %v540, -inf
    %567 = vmax.xlane.f32.xlu0 %v566
    %v568 = vpop.xlane.xlu0 %567
    %v569 = vsel %vm156, %v541, -inf
    %570 = vmax.xlane.f32.xlu0 %v569
    %v571 = vpop.xlane.xlu0 %570
    %v572 = vsub.f32 %v532, %v544
    %v573 = vsub.f32 %v533, %v547
    %v574 = vsub.f32 %v534, %v550
    %v575 = vsub.f32 %v535, %v553
    %v576 = vsub.f32 %v536, %v556
    %v577 = vsub.f32 %v537, %v559
    %v578 = vsub.f32 %v538, %v562
    %v579 = vsub.f32 %v539, %v565
    %v580 = vsub.f32 %v540, %v568
    %v581 = vsub.f32 %v541, %v571
    %v582 = vmul.f32 %v572, 1.442695
    %v583 = vpow.pop %v582
    %v584 = vmul.f32 %v573, 1.442695
    %v585 = vpow.pop %v584
    %v586 = vmul.f32 %v574, 1.442695
    %v587 = vpow.pop %v586
    %v588 = vmul.f32 %v575, 1.442695
    %v589 = vpow.pop %v588
    %v590 = vmul.f32 %v576, 1.442695
    %v591 = vpow.pop %v590
    %v592 = vmul.f32 %v577, 1.442695
    %v593 = vpow.pop %v592
    %v594 = vmul.f32 %v578, 1.442695
    %v595 = vpow.pop %v594
    %v596 = vmul.f32 %v579, 1.442695
    %v597 = vpow.pop %v596
    %v598 = vmul.f32 %v580, 1.442695
    %v599 = vpow.pop %v598
    %v600 = vmul.f32 %v581, 1.442695
    %v601 = vpow.pop %v600
    %v602 = vsel %vm156, %v583, 0.0
    %603 = vadd.xlane.f32.xlu0 %v602
    %v604 = vpop.xlane.xlu0 %603
    %v605 = vsel %vm156, %v585, 0.0
    %606 = vadd.xlane.f32.xlu0 %v605
    %v607 = vpop.xlane.xlu0 %606
    %v608 = vsel %vm156, %v587, 0.0
    %609 = vadd.xlane.f32.xlu0 %v608
    %v610 = vpop.xlane.xlu0 %609
    %v611 = vsel %vm156, %v589, 0.0
    %612 = vadd.xlane.f32.xlu0 %v611
    %v613 = vpop.xlane.xlu0 %612
    %v614 = vsel %vm156, %v591, 0.0
    %615 = vadd.xlane.f32.xlu0 %v614
    %v616 = vpop.xlane.xlu0 %615
    %v617 = vsel %vm156, %v593, 0.0
    %618 = vadd.xlane.f32.xlu0 %v617
    %v619 = vpop.xlane.xlu0 %618
    %v620 = vsel %vm156, %v595, 0.0
    %621 = vadd.xlane.f32.xlu0 %v620
    %v622 = vpop.xlane.xlu0 %621
    %v623 = vsel %vm156, %v597, 0.0
    %624 = vadd.xlane.f32.xlu0 %v623
    %v625 = vpop.xlane.xlu0 %624
    %v626 = vsel %vm156, %v599, 0.0
    %627 = vadd.xlane.f32.xlu0 %v626
    %v628 = vpop.xlane.xlu0 %627
    %v629 = vsel %vm156, %v601, 0.0
    %630 = vadd.xlane.f32.xlu0 %v629
    %v631 = vpop.xlane.xlu0 %630
    %v632 = vrcp.pop %v604
    %v633 = vrcp.pop %v607
    %v634 = vrcp.pop %v610
    %v635 = vrcp.pop %v613
    %v636 = vrcp.pop %v616
    %v637 = vrcp.pop %v619
    %v638 = vrcp.pop %v622
    %v639 = vrcp.pop %v625
    %v640 = vrcp.pop %v628
    %v641 = vrcp.pop %v631
    %v642 = vmul.f32 %v583, %v632
    %v643 = vmul.f32 %v585, %v633
    %v644 = vmul.f32 %v587, %v634
    %v645 = vmul.f32 %v589, %v635
    %v646 = vmul.f32 %v591, %v636
    %v647 = vmul.f32 %v593, %v637
    %v648 = vmul.f32 %v595, %v638
    %v649 = vmul.f32 %v597, %v639
    %v650 = vmul.f32 %v599, %v640
    %v651 = vmul.f32 %v601, %v641
    %v653 = vsel %vm156, %v642, 0
    %v656 = vsel %vm156, %v643, 0
    %v659 = vsel %vm156, %v644, 0
    %v662 = vsel %vm156, %v645, 0
    %v665 = vsel %vm156, %v646, 0
    %v668 = vsel %vm156, %v647, 0
    %v671 = vsel %vm156, %v648, 0
    %v674 = vsel %vm156, %v649, 0
    %v677 = vsel %vm156, %v650, 0
    %v680 = vsel %vm156, %v651, 0
    %v683 = vsel %vm166, %v344, 0
    %685 = vmatpush.msra.mxu0 0.0
    %686 = vmatpush.msra.mxu0 0.0
    %687 = vmatpush.msra.mxu0 0.0
    %688 = vmatpush.msra.mxu0 0.0
    %689 = vmatpush.msra.mxu0 0.0
    %690 = vmatpush.msra.mxu0 0.0
    %691 = vmatpush.msra.mxu0 0.0
    %692 = vmatpush.msra.mxu0 0.0
    %693 = vmatpush.msra.mxu0 0.0
    %694 = vmatpush.msra.mxu0 0.0
    %695 = vmatpush.msra.mxu0 0.0
    %696 = vmatpush.msra.mxu0 0.0
    %697 = vmatpush.msra.mxu0 0.0
    %698 = vmatpush.msra.mxu0 %v683
    %699 = vmatpush.msra.mxu0 %v341
    %700 = vmatpush.msra.mxu0 %v338
    %701 = vmatmul.f32.gmra.mxu0 %v653
    %v702 = vpop.f32.mrf.mxu0
    %v703 = vadd.f32 0.0, %v702
    %704 = vmatmul.f32.gmra.mxu0 %v656
    %v705 = vpop.f32.mrf.mxu0
    %v706 = vadd.f32 0.0, %v705
    %707 = vmatmul.f32.gmra.mxu0 %v659
    %v708 = vpop.f32.mrf.mxu0
    %v709 = vadd.f32 0.0, %v708
    %710 = vmatmul.f32.gmra.mxu0 %v662
    %v711 = vpop.f32.mrf.mxu0
    %v712 = vadd.f32 0.0, %v711
    %713 = vmatmul.f32.gmra.mxu0 %v665
    %v714 = vpop.f32.mrf.mxu0
    %v715 = vadd.f32 0.0, %v714
    %716 = vmatmul.f32.gmra.mxu0 %v668
    %v717 = vpop.f32.mrf.mxu0
    %v718 = vadd.f32 0.0, %v717
    %719 = vmatmul.f32.gmra.mxu0 %v671
    %v720 = vpop.f32.mrf.mxu0
    %v721 = vadd.f32 0.0, %v720
    %722 = vmatmul.f32.gmra.mxu0 %v674
    %v723 = vpop.f32.mrf.mxu0
    %v724 = vadd.f32 0.0, %v723
    %725 = vmatmul.f32.gmra.mxu0 %v677
    %v726 = vpop.f32.mrf.mxu0
    %v727 = vadd.f32 0.0, %v726
    %728 = vmatmul.f32.gmra.mxu0 %v680
    %v729 = vpop.f32.mrf.mxu0
    %v730 = vadd.f32 0.0, %v729
    %731 = vdwg.mxu0
    %v732 = vmul.f32 %v703, %v196
    %v733 = vmul.f32 %v706, %v197
    %v734 = vmul.f32 %v709, %v198
    %v735 = vmul.f32 %v712, %v199
    %v736 = vmul.f32 %v715, %v200
    %v737 = vmul.f32 %v718, %v201
    %v738 = vmul.f32 %v721, %v202
    %v739 = vmul.f32 %v724, %v203
    %v740 = vmul.f32 %v727, %v204
    %v741 = vmul.f32 %v730, %v205
    %vm742 = vcmask 654336
    %v744 = vsel %vm742, %v216, 0
    %v747 = vsel %vm742, %v217, 0
    %v750 = vsel %vm742, %v218, 0
    %752 = vmatpush.msra.mxu0 0.0
    %753 = vmatpush.msra.mxu0 0.0
    %754 = vmatpush.msra.mxu0 0.0
    %755 = vmatpush.msra.mxu0 0.0
    %756 = vmatpush.msra.mxu0 0.0
    %757 = vmatpush.msra.mxu0 0.0
    %758 = vmatpush.msra.mxu0 %v741
    %759 = vmatpush.msra.mxu0 %v740
    %760 = vmatpush.msra.mxu0 %v739
    %761 = vmatpush.msra.mxu0 %v738
    %762 = vmatpush.msra.mxu0 %v737
    %763 = vmatpush.msra.mxu0 %v736
    %764 = vmatpush.msra.mxu0 %v735
    %765 = vmatpush.msra.mxu0 %v734
    %766 = vmatpush.msra.mxu0 %v733
    %767 = vmatpush.msra.mxu0 %v732
    %768 = vmatmul.f32.gmra.mxu0 %v744
    %v769 = vpop.f32.mrf.mxu0
    %v770 = vadd.f32 0.0, %v769
    %771 = vmatmul.f32.gmra.mxu0 %v747
    %v772 = vpop.f32.mrf.mxu0
    %v773 = vadd.f32 0.0, %v772
    %774 = vmatmul.f32.gmra.mxu0 %v750
    %v775 = vpop.f32.mrf.mxu0
    %v776 = vadd.f32 0.0, %v775
    %777 = vdwg.mxu0
    %v778 = vld [vmem:[%s33] sm:$0xff]
    %v779 = vld [vmem:[%s33 + $0x8] sm:$0xff]
    %v780 = vld [vmem:[%s33 + $0x10] sm:$0xf]
    %v781 = vld [vmem:[%s35] sm:$0x1]
    %v783 = vperm.slane %v781, 0
    %v786 = vsel %vm156, %v770, 0
    %v789 = vsel %vm156, %v773, 0
    %v792 = vsel %vm156, %v776, 0
    %v795 = vsel %vm166, %v780, 0
    %797 = vmatpush.msra.mxu0 0.0
    %798 = vmatpush.msra.mxu0 0.0
    %799 = vmatpush.msra.mxu0 0.0
    %800 = vmatpush.msra.mxu0 0.0
    %801 = vmatpush.msra.mxu0 0.0
    %802 = vmatpush.msra.mxu0 0.0
    %803 = vmatpush.msra.mxu0 0.0
    %804 = vmatpush.msra.mxu0 0.0
    %805 = vmatpush.msra.mxu0 0.0
    %806 = vmatpush.msra.mxu0 0.0
    %807 = vmatpush.msra.mxu0 0.0
    %808 = vmatpush.msra.mxu0 0.0
    %809 = vmatpush.msra.mxu0 0.0
    %810 = vmatpush.msra.mxu0 %v795
    %811 = vmatpush.msra.mxu0 %v779
    %812 = vmatpush.msra.mxu0 %v778
    %813 = vmatmul.f32.gmra.mxu0 %v786
    %v814 = vpop.f32.mrf.mxu0
    %v815 = vadd.f32 %v783, %v814
    %816 = vmatmul.f32.gmra.mxu0 %v789
    %v817 = vpop.f32.mrf.mxu0
    %v818 = vadd.f32 %v783, %v817
    %819 = vmatmul.f32.gmra.mxu0 %v792
    %v820 = vpop.f32.mrf.mxu0
    %v821 = vadd.f32 %v783, %v820
    %822 = vdwg.mxu0
    %v823 = vadd.f32 %v188, %v815
    %v824 = vadd.f32 %v191, %v818
    %v825 = vadd.f32 %v194, %v821
    %v826 = vld [vmem:[%s37] sm:$0x1]
    %v827 = vld [vmem:[%s39] sm:$0x1]
    %v828 = vsel %vm156, %v823, 0.0
    %829 = vadd.xlane.f32.xlu0 %v828
    %v830 = vpop.xlane.xlu0 %829
    %v831 = vsel %vm156, %v824, 0.0
    %832 = vadd.xlane.f32.xlu0 %v831
    %v833 = vpop.xlane.xlu0 %832
    %vm834 = vcmask 158720
    %v835 = vsel %vm834, %v825, 0.0
    %836 = vadd.xlane.f32.xlu0 %v835
    %v837 = vpop.xlane.xlu0 %836
    %v838 = vrcp.pop 20.0
    %v839 = vmul.f32 20.0, %v838
    %v840 = vsub.f32 1.0, %v839
    %v841 = vmul.f32 %v838, %v840
    %v842 = vadd.f32 %v838, %v841
    %vm843 = vweird.f32 %v838
    %v844 = vsel %vm843, %v838, %v842
    %v845 = vmul.f32 %v830, %v844
    %v846 = vmul.f32 %v833, %v844
    %v847 = vmul.f32 %v837, %v844
    %v848 = vsub.f32 %v823, %v845
    %v849 = vsub.f32 %v824, %v846
    %v850 = vsub.f32 %v825, %v847
    %v851 = vmul.f32 %v848, %v848
    %v852 = vmul.f32 %v849, %v849
    %v853 = vmul.f32 %v850, %v850
    %v854 = vsel %vm156, %v851, 0.0
    %855 = vadd.xlane.f32.xlu0 %v854
    %v856 = vpop.xlane.xlu0 %855
    %v857 = vsel %vm156, %v852, 0.0
    %858 = vadd.xlane.f32.xlu0 %v857
    %v859 = vpop.xlane.xlu0 %858
    %v860 = vsel %vm834, %v853, 0.0
    %861 = vadd.xlane.f32.xlu0 %v860
    %v862 = vpop.xlane.xlu0 %861
    %v863 = vmul.f32 %v856, %v844
    %v864 = vmul.f32 %v859, %v844
    %v865 = vmul.f32 %v862, %v844
    %v866 = vadd.f32 %v863, 1e-05
    %v867 = vadd.f32 %v864, 1e-05
    %v868 = vadd.f32 %v865, 1e-05
    %v869 = vrsqrt.pop %v866
    %v870 = vmul.f32 %v869, %v866
    %v871 = vmul.f32 %v870, %v869
    %v872 = vmul.f32 0.5, %v871
    %v873 = vsub.f32 1.5, %v872
    %v874 = vmul.f32 %v869, %v873
    %vm875 = vweird.f32 %v866
    %vm876 = vweird.f32 %v869
    %vm877 = vmor %vm875, %vm876
    %v878 = vsel %vm877, %v869, %v874
    %v879 = vrsqrt.pop %v867
    %v880 = vmul.f32 %v879, %v867
    %v881 = vmul.f32 %v880, %v879
    %v882 = vmul.f32 0.5, %v881
    %v883 = vsub.f32 1.5, %v882
    %v884 = vmul.f32 %v879, %v883
    %vm885 = vweird.f32 %v867
    %vm886 = vweird.f32 %v879
    %vm887 = vmor %vm885, %vm886
    %v888 = vsel %vm887, %v879, %v884
    %v889 = vrsqrt.pop %v868
    %v890 = vmul.f32 %v889, %v868
    %v891 = vmul.f32 %v890, %v889
    %v892 = vmul.f32 0.5, %v891
    %v893 = vsub.f32 1.5, %v892
    %v894 = vmul.f32 %v889, %v893
    %vm895 = vweird.f32 %v868
    %vm896 = vweird.f32 %v889
    %vm897 = vmor %vm895, %vm896
    %v898 = vsel %vm897, %v889, %v894
    %v899 = vmul.f32 %v848, %v878
    %v900 = vmul.f32 %v849, %v888
    %v901 = vmul.f32 %v850, %v898
    %v903 = vperm.slane %v826, 0
    %v905 = vmul.f32 %v899, %v903
    %v906 = vmul.f32 %v900, %v903
    %v907 = vmul.f32 %v901, %v903
    %v909 = vperm.slane %v827, 0
    %v911 = vadd.f32 %v905, %v909
    %v912 = vadd.f32 %v906, %v909
    %v913 = vadd.f32 %v907, %v909
    %v914 = vld [vmem:[%s45] sm:$0xff]
    %v915 = vld [vmem:[%s45 + $0x8] sm:$0xff]
    %v916 = vld [vmem:[%s45 + $0x10] sm:$0xff]
    %v917 = vld [vmem:[%s45 + $0x18] sm:$0xff]
    %v918 = vld [vmem:[%s45 + $0x20] sm:$0xff]
    %v919 = vld [vmem:[%s45 + $0x28] sm:$0xff]
    %v920 = vld [vmem:[%s45 + $0x30] sm:$0xff]
    %v921 = vld [vmem:[%s45 + $0x38] sm:$0xff]
    %v922 = vld [vmem:[%s45 + $0x40] sm:$0xff]
    %v923 = vld [vmem:[%s45 + $0x48] sm:$0xff]
    %v924 = vld [vmem:[%s45 + $0x50] sm:$0xff]
    %v925 = vld [vmem:[%s45 + $0x58] sm:$0xff]
    %v926 = vld [vmem:[%s45 + $0x60] sm:$0xff]
    %v927 = vld [vmem:[%s45 + $0x68] sm:$0xff]
    %v928 = vld [vmem:[%s45 + $0x70] sm:$0xff]
    %v929 = vld [vmem:[%s45 + $0x78] sm:$0xff]
    %v930 = vld [vmem:[%s45 + $0x80] sm:$0xff]
    %v931 = vld [vmem:[%s45 + $0x88] sm:$0xff]
    %v932 = vld [vmem:[%s45 + $0x90] sm:$0xff]
    %v933 = vld [vmem:[%s45 + $0x98] sm:$0xff]
    %v934 = vld [vmem:[%s45 + $0xa0] sm:$0xff]
    %v935 = vld [vmem:[%s45 + $0xa8] sm:$0xff]
    %v936 = vld [vmem:[%s45 + $0xb0] sm:$0xff]
    %v937 = vld [vmem:[%s45 + $0xb8] sm:$0xff]
    %v938 = vld [vmem:[%s45 + $0xc0] sm:$0xff]
    %v939 = vld [vmem:[%s45 + $0xc8] sm:$0xff]
    %v940 = vld [vmem:[%s45 + $0xd0] sm:$0xff]
    %v941 = vld [vmem:[%s45 + $0xd8] sm:$0xff]
    %v942 = vld [vmem:[%s45 + $0xe0] sm:$0xff]
    %v943 = vld [vmem:[%s45 + $0xe8] sm:$0xff]
    %v944 = vld [vmem:[%s45 + $0xf0] sm:$0xff]
    %v945 = vld [vmem:[%s45 + $0xf8] sm:$0xff]
    %v946 = vld [vmem:[%s45 + $0x100] sm:$0xf]
    %v947 = vld [vmem:[%s45 + $0x108] sm:$0xf]
    %v948 = vld [vmem:[%s45 + $0x110] sm:$0xf]
    %v949 = vld [vmem:[%s45 + $0x118] sm:$0xf]
    %v950 = vld [vmem:[%s45 + $0x120] sm:$0xf]
    %v951 = vld [vmem:[%s45 + $0x128] sm:$0xf]
    %v952 = vld [vmem:[%s45 + $0x130] sm:$0xf]
    %v953 = vld [vmem:[%s45 + $0x138] sm:$0xf]
    %v954 = vld [vmem:[%s45 + $0x140] sm:$0xf]
    %v955 = vld [vmem:[%s45 + $0x148] sm:$0xf]
    %v956 = vld [vmem:[%s45 + $0x150] sm:$0xf]
    %v957 = vld [vmem:[%s45 + $0x158] sm:$0xf]
    %v958 = vld [vmem:[%s45 + $0x160] sm:$0xf]
    %v959 = vld [vmem:[%s45 + $0x168] sm:$0xf]
    %v960 = vld [vmem:[%s45 + $0x170] sm:$0xf]
    %v961 = vld [vmem:[%s45 + $0x178] sm:$0xf]
    %v962 = vld [vmem:[%s47] sm:$0xff]
    %v963 = vld [vmem:[%s47 + $0x8] sm:$0xff]
    %v966 = vperm.slane %v962, 0
    %v967 = vperm.slane %v962, 1
    %v968 = vperm.slane %v962, 2
    %v969 = vperm.slane %v962, 3
    %v970 = vperm.slane %v962, 4
    %v971 = vperm.slane %v962, 5
    %v972 = vperm.slane %v962, 6
    %v973 = vperm.slane %v962, 7
    %v974 = vperm.slane %v963, 0
    %v975 = vperm.slane %v963, 1
    %v976 = vperm.slane %v963, 2
    %v977 = vperm.slane %v963, 3
    %v978 = vperm.slane %v963, 4
    %v979 = vperm.slane %v963, 5
    %v980 = vperm.slane %v963, 6
    %v981 = vperm.slane %v963, 7
    %v999 = vsel %vm156, %v911, 0
    %v1002 = vsel %vm156, %v912, 0
    %v1005 = vsel %vm156, %v913, 0
    %v1008 = vsel %vm166, %v946, 0
    %v1011 = vsel %vm166, %v947, 0
    %v1014 = vsel %vm166, %v948, 0
    %v1017 = vsel %vm166, %v949, 0
    %v1020 = vsel %vm166, %v950, 0
    %v1023 = vsel %vm166, %v951, 0
    %v1026 = vsel %vm166, %v952, 0
    %v1029 = vsel %vm166, %v953, 0
    %v1032 = vsel %vm166, %v954, 0
    %v1035 = vsel %vm166, %v955, 0
    %v1038 = vsel %vm166, %v956, 0
    %v1041 = vsel %vm166, %v957, 0
    %v1044 = vsel %vm166, %v958, 0
    %v1047 = vsel %vm166, %v959, 0
    %v1050 = vsel %vm166, %v960, 0
    %v1053 = vsel %vm166, %v961, 0
    %1055 = vmatpush.msra.mxu0 0.0
    %1056 = vmatpush.msra.mxu0 0.0
    %1057 = vmatpush.msra.mxu0 0.0
    %1058 = vmatpush.msra.mxu0 0.0
    %1059 = vmatpush.msra.mxu0 0.0
    %1060 = vmatpush.msra.mxu0 0.0
    %1061 = vmatpush.msra.mxu0 0.0
    %1062 = vmatpush.msra.mxu0 0.0
    %1063 = vmatpush.msra.mxu0 0.0
    %1064 = vmatpush.msra.mxu0 0.0
    %1065 = vmatpush.msra.mxu0 0.0
    %1066 = vmatpush.msra.mxu0 0.0
    %1067 = vmatpush.msra.mxu0 0.0
    %1068 = vmatpush.msra.mxu0 %v1008
    %1069 = vmatpush.msra.mxu0 %v930
    %1070 = vmatpush.msra.mxu0 %v914
    %1071 = vmatmul.f32.gmra.mxu0 %v999
    %v1072 = vpop.f32.mrf.mxu0
    %v1073 = vadd.f32 %v966, %v1072
    %1074 = vmatmul.f32.gmra.mxu0 %v1002
    %v1075 = vpop.f32.mrf.mxu0
    %v1076 = vadd.f32 %v966, %v1075
    %1077 = vmatmul.f32.gmra.mxu0 %v1005
    %v1078 = vpop.f32.mrf.mxu0
    %v1079 = vadd.f32 %v966, %v1078
    %1080 = vdwg.mxu0
    %1081 = vmatpush.msra.mxu0 0.0
    %1082 = vmatpush.msra.mxu0 0.0
    %1083 = vmatpush.msra.mxu0 0.0
    %1084 = vmatpush.msra.mxu0 0.0
    %1085 = vmatpush.msra.mxu0 0.0
    %1086 = vmatpush.msra.mxu0 0.0
    %1087 = vmatpush.msra.mxu0 0.0
    %1088 = vmatpush.msra.mxu0 0.0
    %1089 = vmatpush.msra.mxu0 0.0
    %1090 = vmatpush.msra.mxu0 0.0
    %1091 = vmatpush.msra.mxu0 0.0
    %1092 = vmatpush.msra.mxu0 0.0
    %1093 = vmatpush.msra.mxu0 0.0
    %1094 = vmatpush.msra.mxu0 %v1011
    %1095 = vmatpush.msra.mxu0 %v931
    %1096 = vmatpush.msra.mxu0 %v915
    %1097 = vmatmul.f32.gmra.mxu0 %v999
    %v1098 = vpop.f32.mrf.mxu0
    %v1099 = vadd.f32 %v967, %v1098
    %1100 = vmatmul.f32.gmra.mxu0 %v1002
    %v1101 = vpop.f32.mrf.mxu0
    %v1102 = vadd.f32 %v967, %v1101
    %1103 = vmatmul.f32.gmra.mxu0 %v1005
    %v1104 = vpop.f32.mrf.mxu0
    %v1105 = vadd.f32 %v967, %v1104
    %1106 = vdwg.mxu0
    %1107 = vmatpush.msra.mxu0 0.0
    %1108 = vmatpush.msra.mxu0 0.0
    %1109 = vmatpush.msra.mxu0 0.0
    %1110 = vmatpush.msra.mxu0 0.0
    %1111 = vmatpush.msra.mxu0 0.0
    %1112 = vmatpush.msra.mxu0 0.0
    %1113 = vmatpush.msra.mxu0 0.0
    %1114 = vmatpush.msra.mxu0 0.0
    %1115 = vmatpush.msra.mxu0 0.0
    %1116 = vmatpush.msra.mxu0 0.0
    %1117 = vmatpush.msra.mxu0 0.0
    %1118 = vmatpush.msra.mxu0 0.0
    %1119 = vmatpush.msra.mxu0 0.0
    %1120 = vmatpush.msra.mxu0 %v1014
    %1121 = vmatpush.msra.mxu0 %v932
    %1122 = vmatpush.msra.mxu0 %v916
    %1123 = vmatmul.f32.gmra.mxu0 %v999
    %v1124 = vpop.f32.mrf.mxu0
    %v1125 = vadd.f32 %v968, %v1124
    %1126 = vmatmul.f32.gmra.mxu0 %v1002
    %v1127 = vpop.f32.mrf.mxu0
    %v1128 = vadd.f32 %v968, %v1127
    %1129 = vmatmul.f32.gmra.mxu0 %v1005
    %v1130 = vpop.f32.mrf.mxu0
    %v1131 = vadd.f32 %v968, %v1130
    %1132 = vdwg.mxu0
    %1133 = vmatpush.msra.mxu0 0.0
    %1134 = vmatpush.msra.mxu0 0.0
    %1135 = vmatpush.msra.mxu0 0.0
    %1136 = vmatpush.msra.mxu0 0.0
    %1137 = vmatpush.msra.mxu0 0.0
    %1138 = vmatpush.msra.mxu0 0.0
    %1139 = vmatpush.msra.mxu0 0.0
    %1140 = vmatpush.msra.mxu0 0.0
    %1141 = vmatpush.msra.mxu0 0.0
    %1142 = vmatpush.msra.mxu0 0.0
    %1143 = vmatpush.msra.mxu0 0.0
    %1144 = vmatpush.msra.mxu0 0.0
    %1145 = vmatpush.msra.mxu0 0.0
    %1146 = vmatpush.msra.mxu0 %v1017
    %1147 = vmatpush.msra.mxu0 %v933
    %1148 = vmatpush.msra.mxu0 %v917
    %1149 = vmatmul.f32.gmra.mxu0 %v999
    %v1150 = vpop.f32.mrf.mxu0
    %v1151 = vadd.f32 %v969, %v1150
    %1152 = vmatmul.f32.gmra.mxu0 %v1002
    %v1153 = vpop.f32.mrf.mxu0
    %v1154 = vadd.f32 %v969, %v1153
    %1155 = vmatmul.f32.gmra.mxu0 %v1005
    %v1156 = vpop.f32.mrf.mxu0
    %v1157 = vadd.f32 %v969, %v1156
    %1158 = vdwg.mxu0
    %1159 = vmatpush.msra.mxu0 0.0
    %1160 = vmatpush.msra.mxu0 0.0
    %1161 = vmatpush.msra.mxu0 0.0
    %1162 = vmatpush.msra.mxu0 0.0
    %1163 = vmatpush.msra.mxu0 0.0
    %1164 = vmatpush.msra.mxu0 0.0
    %1165 = vmatpush.msra.mxu0 0.0
    %1166 = vmatpush.msra.mxu0 0.0
    %1167 = vmatpush.msra.mxu0 0.0
    %1168 = vmatpush.msra.mxu0 0.0
    %1169 = vmatpush.msra.mxu0 0.0
    %1170 = vmatpush.msra.mxu0 0.0
    %1171 = vmatpush.msra.mxu0 0.0
    %1172 = vmatpush.msra.mxu0 %v1020
    %1173 = vmatpush.msra.mxu0 %v934
    %1174 = vmatpush.msra.mxu0 %v918
    %1175 = vmatmul.f32.gmra.mxu0 %v999
    %v1176 = vpop.f32.mrf.mxu0
    %v1177 = vadd.f32 %v970, %v1176
    %1178 = vmatmul.f32.gmra.mxu0 %v1002
    %v1179 = vpop.f32.mrf.mxu0
    %v1180 = vadd.f32 %v970, %v1179
    %1181 = vmatmul.f32.gmra.mxu0 %v1005
    %v1182 = vpop.f32.mrf.mxu0
    %v1183 = vadd.f32 %v970, %v1182
    %1184 = vdwg.mxu0
    %1185 = vmatpush.msra.mxu0 0.0
    %1186 = vmatpush.msra.mxu0 0.0
    %1187 = vmatpush.msra.mxu0 0.0
    %1188 = vmatpush.msra.mxu0 0.0
    %1189 = vmatpush.msra.mxu0 0.0
    %1190 = vmatpush.msra.mxu0 0.0
    %1191 = vmatpush.msra.mxu0 0.0
    %1192 = vmatpush.msra.mxu0 0.0
    %1193 = vmatpush.msra.mxu0 0.0
    %1194 = vmatpush.msra.mxu0 0.0
    %1195 = vmatpush.msra.mxu0 0.0
    %1196 = vmatpush.msra.mxu0 0.0
    %1197 = vmatpush.msra.mxu0 0.0
    %1198 = vmatpush.msra.mxu0 %v1023
    %1199 = vmatpush.msra.mxu0 %v935
    %1200 = vmatpush.msra.mxu0 %v919
    %1201 = vmatmul.f32.gmra.mxu0 %v999
    %v1202 = vpop.f32.mrf.mxu0
    %v1203 = vadd.f32 %v971, %v1202
    %1204 = vmatmul.f32.gmra.mxu0 %v1002
    %v1205 = vpop.f32.mrf.mxu0
    %v1206 = vadd.f32 %v971, %v1205
    %1207 = vmatmul.f32.gmra.mxu0 %v1005
    %v1208 = vpop.f32.mrf.mxu0
    %v1209 = vadd.f32 %v971, %v1208
    %1210 = vdwg.mxu0
    %1211 = vmatpush.msra.mxu0 0.0
    %1212 = vmatpush.msra.mxu0 0.0
    %1213 = vmatpush.msra.mxu0 0.0
    %1214 = vmatpush.msra.mxu0 0.0
    %1215 = vmatpush.msra.mxu0 0.0
    %1216 = vmatpush.msra.mxu0 0.0
    %1217 = vmatpush.msra.mxu0 0.0
    %1218 = vmatpush.msra.mxu0 0.0
    %1219 = vmatpush.msra.mxu0 0.0
    %1220 = vmatpush.msra.mxu0 0.0
    %1221 = vmatpush.msra.mxu0 0.0
    %1222 = vmatpush.msra.mxu0 0.0
    %1223 = vmatpush.msra.mxu0 0.0
    %1224 = vmatpush.msra.mxu0 %v1026
    %1225 = vmatpush.msra.mxu0 %v936
    %1226 = vmatpush.msra.mxu0 %v920
    %1227 = vmatmul.f32.gmra.mxu0 %v999
    %v1228 = vpop.f32.mrf.mxu0
    %v1229 = vadd.f32 %v972, %v1228
    %1230 = vmatmul.f32.gmra.mxu0 %v1002
    %v1231 = vpop.f32.mrf.mxu0
    %v1232 = vadd.f32 %v972, %v1231
    %1233 = vmatmul.f32.gmra.mxu0 %v1005
    %v1234 = vpop.f32.mrf.mxu0
    %v1235 = vadd.f32 %v972, %v1234
    %1236 = vdwg.mxu0
    %1237 = vmatpush.msra.mxu0 0.0
    %1238 = vmatpush.msra.mxu0 0.0
    %1239 = vmatpush.msra.mxu0 0.0
    %1240 = vmatpush.msra.mxu0 0.0
    %1241 = vmatpush.msra.mxu0 0.0
    %1242 = vmatpush.msra.mxu0 0.0
    %1243 = vmatpush.msra.mxu0 0.0
    %1244 = vmatpush.msra.mxu0 0.0
    %1245 = vmatpush.msra.mxu0 0.0
    %1246 = vmatpush.msra.mxu0 0.0
    %1247 = vmatpush.msra.mxu0 0.0
    %1248 = vmatpush.msra.mxu0 0.0
    %1249 = vmatpush.msra.mxu0 0.0
    %1250 = vmatpush.msra.mxu0 %v1029
    %1251 = vmatpush.msra.mxu0 %v937
    %1252 = vmatpush.msra.mxu0 %v921
    %1253 = vmatmul.f32.gmra.mxu0 %v999
    %v1254 = vpop.f32.mrf.mxu0
    %v1255 = vadd.f32 %v973, %v1254
    %1256 = vmatmul.f32.gmra.mxu0 %v1002
    %v1257 = vpop.f32.mrf.mxu0
    %v1258 = vadd.f32 %v973, %v1257
    %1259 = vmatmul.f32.gmra.mxu0 %v1005
    %v1260 = vpop.f32.mrf.mxu0
    %v1261 = vadd.f32 %v973, %v1260
    %1262 = vdwg.mxu0
    %1263 = vmatpush.msra.mxu0 0.0
    %1264 = vmatpush.msra.mxu0 0.0
    %1265 = vmatpush.msra.mxu0 0.0
    %1266 = vmatpush.msra.mxu0 0.0
    %1267 = vmatpush.msra.mxu0 0.0
    %1268 = vmatpush.msra.mxu0 0.0
    %1269 = vmatpush.msra.mxu0 0.0
    %1270 = vmatpush.msra.mxu0 0.0
    %1271 = vmatpush.msra.mxu0 0.0
    %1272 = vmatpush.msra.mxu0 0.0
    %1273 = vmatpush.msra.mxu0 0.0
    %1274 = vmatpush.msra.mxu0 0.0
    %1275 = vmatpush.msra.mxu0 0.0
    %1276 = vmatpush.msra.mxu0 %v1032
    %1277 = vmatpush.msra.mxu0 %v938
    %1278 = vmatpush.msra.mxu0 %v922
    %1279 = vmatmul.f32.gmra.mxu0 %v999
    %v1280 = vpop.f32.mrf.mxu0
    %v1281 = vadd.f32 %v974, %v1280
    %1282 = vmatmul.f32.gmra.mxu0 %v1002
    %v1283 = vpop.f32.mrf.mxu0
    %v1284 = vadd.f32 %v974, %v1283
    %1285 = vmatmul.f32.gmra.mxu0 %v1005
    %v1286 = vpop.f32.mrf.mxu0
    %v1287 = vadd.f32 %v974, %v1286
    %1288 = vdwg.mxu0
    %1289 = vmatpush.msra.mxu0 0.0
    %1290 = vmatpush.msra.mxu0 0.0
    %1291 = vmatpush.msra.mxu0 0.0
    %1292 = vmatpush.msra.mxu0 0.0
    %1293 = vmatpush.msra.mxu0 0.0
    %1294 = vmatpush.msra.mxu0 0.0
    %1295 = vmatpush.msra.mxu0 0.0
    %1296 = vmatpush.msra.mxu0 0.0
    %1297 = vmatpush.msra.mxu0 0.0
    %1298 = vmatpush.msra.mxu0 0.0
    %1299 = vmatpush.msra.mxu0 0.0
    %1300 = vmatpush.msra.mxu0 0.0
    %1301 = vmatpush.msra.mxu0 0.0
    %1302 = vmatpush.msra.mxu0 %v1035
    %1303 = vmatpush.msra.mxu0 %v939
    %1304 = vmatpush.msra.mxu0 %v923
    %1305 = vmatmul.f32.gmra.mxu0 %v999
    %v1306 = vpop.f32.mrf.mxu0
    %v1307 = vadd.f32 %v975, %v1306
    %1308 = vmatmul.f32.gmra.mxu0 %v1002
    %v1309 = vpop.f32.mrf.mxu0
    %v1310 = vadd.f32 %v975, %v1309
    %1311 = vmatmul.f32.gmra.mxu0 %v1005
    %v1312 = vpop.f32.mrf.mxu0
    %v1313 = vadd.f32 %v975, %v1312
    %1314 = vdwg.mxu0
    %1315 = vmatpush.msra.mxu0 0.0
    %1316 = vmatpush.msra.mxu0 0.0
    %1317 = vmatpush.msra.mxu0 0.0
    %1318 = vmatpush.msra.mxu0 0.0
    %1319 = vmatpush.msra.mxu0 0.0
    %1320 = vmatpush.msra.mxu0 0.0
    %1321 = vmatpush.msra.mxu0 0.0
    %1322 = vmatpush.msra.mxu0 0.0
    %1323 = vmatpush.msra.mxu0 0.0
    %1324 = vmatpush.msra.mxu0 0.0
    %1325 = vmatpush.msra.mxu0 0.0
    %1326 = vmatpush.msra.mxu0 0.0
    %1327 = vmatpush.msra.mxu0 0.0
    %1328 = vmatpush.msra.mxu0 %v1038
    %1329 = vmatpush.msra.mxu0 %v940
    %1330 = vmatpush.msra.mxu0 %v924
    %1331 = vmatmul.f32.gmra.mxu0 %v999
    %v1332 = vpop.f32.mrf.mxu0
    %v1333 = vadd.f32 %v976, %v1332
    %1334 = vmatmul.f32.gmra.mxu0 %v1002
    %v1335 = vpop.f32.mrf.mxu0
    %v1336 = vadd.f32 %v976, %v1335
    %1337 = vmatmul.f32.gmra.mxu0 %v1005
    %v1338 = vpop.f32.mrf.mxu0
    %v1339 = vadd.f32 %v976, %v1338
    %1340 = vdwg.mxu0
    %1341 = vmatpush.msra.mxu0 0.0
    %1342 = vmatpush.msra.mxu0 0.0
    %1343 = vmatpush.msra.mxu0 0.0
    %1344 = vmatpush.msra.mxu0 0.0
    %1345 = vmatpush.msra.mxu0 0.0
    %1346 = vmatpush.msra.mxu0 0.0
    %1347 = vmatpush.msra.mxu0 0.0
    %1348 = vmatpush.msra.mxu0 0.0
    %1349 = vmatpush.msra.mxu0 0.0
    %1350 = vmatpush.msra.mxu0 0.0
    %1351 = vmatpush.msra.mxu0 0.0
    %1352 = vmatpush.msra.mxu0 0.0
    %1353 = vmatpush.msra.mxu0 0.0
    %1354 = vmatpush.msra.mxu0 %v1041
    %1355 = vmatpush.msra.mxu0 %v941
    %1356 = vmatpush.msra.mxu0 %v925
    %1357 = vmatmul.f32.gmra.mxu0 %v999
    %v1358 = vpop.f32.mrf.mxu0
    %v1359 = vadd.f32 %v977, %v1358
    %1360 = vmatmul.f32.gmra.mxu0 %v1002
    %v1361 = vpop.f32.mrf.mxu0
    %v1362 = vadd.f32 %v977, %v1361
    %1363 = vmatmul.f32.gmra.mxu0 %v1005
    %v1364 = vpop.f32.mrf.mxu0
    %v1365 = vadd.f32 %v977, %v1364
    %1366 = vdwg.mxu0
    %1367 = vmatpush.msra.mxu0 0.0
    %1368 = vmatpush.msra.mxu0 0.0
    %1369 = vmatpush.msra.mxu0 0.0
    %1370 = vmatpush.msra.mxu0 0.0
    %1371 = vmatpush.msra.mxu0 0.0
    %1372 = vmatpush.msra.mxu0 0.0
    %1373 = vmatpush.msra.mxu0 0.0
    %1374 = vmatpush.msra.mxu0 0.0
    %1375 = vmatpush.msra.mxu0 0.0
    %1376 = vmatpush.msra.mxu0 0.0
    %1377 = vmatpush.msra.mxu0 0.0
    %1378 = vmatpush.msra.mxu0 0.0
    %1379 = vmatpush.msra.mxu0 0.0
    %1380 = vmatpush.msra.mxu0 %v1044
    %1381 = vmatpush.msra.mxu0 %v942
    %1382 = vmatpush.msra.mxu0 %v926
    %1383 = vmatmul.f32.gmra.mxu0 %v999
    %v1384 = vpop.f32.mrf.mxu0
    %v1385 = vadd.f32 %v978, %v1384
    %1386 = vmatmul.f32.gmra.mxu0 %v1002
    %v1387 = vpop.f32.mrf.mxu0
    %v1388 = vadd.f32 %v978, %v1387
    %1389 = vmatmul.f32.gmra.mxu0 %v1005
    %v1390 = vpop.f32.mrf.mxu0
    %v1391 = vadd.f32 %v978, %v1390
    %1392 = vdwg.mxu0
    %1393 = vmatpush.msra.mxu0 0.0
    %1394 = vmatpush.msra.mxu0 0.0
    %1395 = vmatpush.msra.mxu0 0.0
    %1396 = vmatpush.msra.mxu0 0.0
    %1397 = vmatpush.msra.mxu0 0.0
    %1398 = vmatpush.msra.mxu0 0.0
    %1399 = vmatpush.msra.mxu0 0.0
    %1400 = vmatpush.msra.mxu0 0.0
    %1401 = vmatpush.msra.mxu0 0.0
    %1402 = vmatpush.msra.mxu0 0.0
    %1403 = vmatpush.msra.mxu0 0.0
    %1404 = vmatpush.msra.mxu0 0.0
    %1405 = vmatpush.msra.mxu0 0.0
    %1406 = vmatpush.msra.mxu0 %v1047
    %1407 = vmatpush.msra.mxu0 %v943
    %1408 = vmatpush.msra.mxu0 %v927
    %1409 = vmatmul.f32.gmra.mxu0 %v999
    %v1410 = vpop.f32.mrf.mxu0
    %v1411 = vadd.f32 %v979, %v1410
    %1412 = vmatmul.f32.gmra.mxu0 %v1002
    %v1413 = vpop.f32.mrf.mxu0
    %v1414 = vadd.f32 %v979, %v1413
    %1415 = vmatmul.f32.gmra.mxu0 %v1005
    %v1416 = vpop.f32.mrf.mxu0
    %v1417 = vadd.f32 %v979, %v1416
    %1418 = vdwg.mxu0
    %1419 = vmatpush.msra.mxu0 0.0
    %1420 = vmatpush.msra.mxu0 0.0
    %1421 = vmatpush.msra.mxu0 0.0
    %1422 = vmatpush.msra.mxu0 0.0
    %1423 = vmatpush.msra.mxu0 0.0
    %1424 = vmatpush.msra.mxu0 0.0
    %1425 = vmatpush.msra.mxu0 0.0
    %1426 = vmatpush.msra.mxu0 0.0
    %1427 = vmatpush.msra.mxu0 0.0
    %1428 = vmatpush.msra.mxu0 0.0
    %1429 = vmatpush.msra.mxu0 0.0
    %1430 = vmatpush.msra.mxu0 0.0
    %1431 = vmatpush.msra.mxu0 0.0
    %1432 = vmatpush.msra.mxu0 %v1050
    %1433 = vmatpush.msra.mxu0 %v944
    %1434 = vmatpush.msra.mxu0 %v928
    %1435 = vmatmul.f32.gmra.mxu0 %v999
    %v1436 = vpop.f32.mrf.mxu0
    %v1437 = vadd.f32 %v980, %v1436
    %1438 = vmatmul.f32.gmra.mxu0 %v1002
    %v1439 = vpop.f32.mrf.mxu0
    %v1440 = vadd.f32 %v980, %v1439
    %1441 = vmatmul.f32.gmra.mxu0 %v1005
    %v1442 = vpop.f32.mrf.mxu0
    %v1443 = vadd.f32 %v980, %v1442
    %1444 = vdwg.mxu0
    %1445 = vmatpush.msra.mxu0 0.0
    %1446 = vmatpush.msra.mxu0 0.0
    %1447 = vmatpush.msra.mxu0 0.0
    %1448 = vmatpush.msra.mxu0 0.0
    %1449 = vmatpush.msra.mxu0 0.0
    %1450 = vmatpush.msra.mxu0 0.0
    %1451 = vmatpush.msra.mxu0 0.0
    %1452 = vmatpush.msra.mxu0 0.0
    %1453 = vmatpush.msra.mxu0 0.0
    %1454 = vmatpush.msra.mxu0 0.0
    %1455 = vmatpush.msra.mxu0 0.0
    %1456 = vmatpush.msra.mxu0 0.0
    %1457 = vmatpush.msra.mxu0 0.0
    %1458 = vmatpush.msra.mxu0 %v1053
    %1459 = vmatpush.msra.mxu0 %v945
    %1460 = vmatpush.msra.mxu0 %v929
    %1461 = vmatmul.f32.gmra.mxu0 %v999
    %v1462 = vpop.f32.mrf.mxu0
    %v1463 = vadd.f32 %v981, %v1462
    %1464 = vmatmul.f32.gmra.mxu0 %v1002
    %v1465 = vpop.f32.mrf.mxu0
    %v1466 = vadd.f32 %v981, %v1465
    %1467 = vmatmul.f32.gmra.mxu0 %v1005
    %v1468 = vpop.f32.mrf.mxu0
    %v1469 = vadd.f32 %v981, %v1468
    %1470 = vdwg.mxu0
    %v1471 = vmax.f32 %v1073, 0.0
    %v1472 = vmax.f32 %v1099, 0.0
    %v1473 = vmax.f32 %v1125, 0.0
    %v1474 = vmax.f32 %v1151, 0.0
    %v1475 = vmax.f32 %v1177, 0.0
    %v1476 = vmax.f32 %v1203, 0.0
    %v1477 = vmax.f32 %v1229, 0.0
    %v1478 = vmax.f32 %v1255, 0.0
    %v1479 = vmax.f32 %v1281, 0.0
    %v1480 = vmax.f32 %v1307, 0.0
    %v1481 = vmax.f32 %v1333, 0.0
    %v1482 = vmax.f32 %v1359, 0.0
    %v1483 = vmax.f32 %v1385, 0.0
    %v1484 = vmax.f32 %v1411, 0.0
    %v1485 = vmax.f32 %v1437, 0.0
    %v1486 = vmax.f32 %v1463, 0.0
    %v1487 = vmax.f32 %v1076, 0.0
    %v1488 = vmax.f32 %v1102, 0.0
    %v1489 = vmax.f32 %v1128, 0.0
    %v1490 = vmax.f32 %v1154, 0.0
    %v1491 = vmax.f32 %v1180, 0.0
    %v1492 = vmax.f32 %v1206, 0.0
    %v1493 = vmax.f32 %v1232, 0.0
    %v1494 = vmax.f32 %v1258, 0.0
    %v1495 = vmax.f32 %v1284, 0.0
    %v1496 = vmax.f32 %v1310, 0.0
    %v1497 = vmax.f32 %v1336, 0.0
    %v1498 = vmax.f32 %v1362, 0.0
    %v1499 = vmax.f32 %v1388, 0.0
    %v1500 = vmax.f32 %v1414, 0.0
    %v1501 = vmax.f32 %v1440, 0.0
    %v1502 = vmax.f32 %v1466, 0.0
    %v1503 = vmax.f32 %v1079, 0.0
    %v1504 = vmax.f32 %v1105, 0.0
    %v1505 = vmax.f32 %v1131, 0.0
    %v1506 = vmax.f32 %v1157, 0.0
    %v1507 = vmax.f32 %v1183, 0.0
    %v1508 = vmax.f32 %v1209, 0.0
    %v1509 = vmax.f32 %v1235, 0.0
    %v1510 = vmax.f32 %v1261, 0.0
    %v1511 = vmax.f32 %v1287, 0.0
    %v1512 = vmax.f32 %v1313, 0.0
    %v1513 = vmax.f32 %v1339, 0.0
    %v1514 = vmax.f32 %v1365, 0.0
    %v1515 = vmax.f32 %v1391, 0.0
    %v1516 = vmax.f32 %v1417, 0.0
    %v1517 = vmax.f32 %v1443, 0.0
    %v1518 = vmax.f32 %v1469, 0.0
    %v1519 = vld [vmem:[%s49] sm:$0xff]
    %v1520 = vld [vmem:[%s49 + $0x8] sm:$0xff]
    %v1521 = vld [vmem:[%s49 + $0x10] sm:$0xff]
    %v1522 = vld [vmem:[%s49 + $0x18] sm:$0xff]
    %v1523 = vld [vmem:[%s49 + $0x20] sm:$0xff]
    %v1524 = vld [vmem:[%s49 + $0x28] sm:$0xff]
    %v1525 = vld [vmem:[%s49 + $0x30] sm:$0xff]
    %v1526 = vld [vmem:[%s49 + $0x38] sm:$0xff]
    %v1527 = vld [vmem:[%s49 + $0x40] sm:$0xff]
    %v1528 = vld [vmem:[%s49 + $0x48] sm:$0xff]
    %v1529 = vld [vmem:[%s49 + $0x50] sm:$0xff]
    %v1530 = vld [vmem:[%s49 + $0x58] sm:$0xff]
    %v1531 = vld [vmem:[%s49 + $0x60] sm:$0xff]
    %v1532 = vld [vmem:[%s49 + $0x68] sm:$0xff]
    %v1533 = vld [vmem:[%s49 + $0x70] sm:$0xff]
    %v1534 = vld [vmem:[%s49 + $0x78] sm:$0xff]
    %v1535 = vld [vmem:[%s49 + $0x80] sm:$0xff]
    %v1536 = vld [vmem:[%s49 + $0x88] sm:$0xff]
    %v1537 = vld [vmem:[%s49 + $0x90] sm:$0xff]
    %v1538 = vld [vmem:[%s49 + $0x98] sm:$0xff]
    %v1539 = vld [vmem:[%s49 + $0xa0] sm:$0xff]
    %v1540 = vld [vmem:[%s49 + $0xa8] sm:$0xff]
    %v1541 = vld [vmem:[%s49 + $0xb0] sm:$0xff]
    %v1542 = vld [vmem:[%s49 + $0xb8] sm:$0xff]
    %v1543 = vld [vmem:[%s49 + $0xc0] sm:$0xff]
    %v1544 = vld [vmem:[%s49 + $0xc8] sm:$0xff]
    %v1545 = vld [vmem:[%s49 + $0xd0] sm:$0xff]
    %v1546 = vld [vmem:[%s49 + $0xd8] sm:$0xff]
    %v1547 = vld [vmem:[%s49 + $0xe0] sm:$0xff]
    %v1548 = vld [vmem:[%s49 + $0xe8] sm:$0xff]
    %v1549 = vld [vmem:[%s49 + $0xf0] sm:$0xff]
    %v1550 = vld [vmem:[%s49 + $0xf8] sm:$0xff]
    %v1551 = vld [vmem:[%s49 + $0x100] sm:$0xff]
    %v1552 = vld [vmem:[%s49 + $0x108] sm:$0xff]
    %v1553 = vld [vmem:[%s49 + $0x110] sm:$0xff]
    %v1554 = vld [vmem:[%s49 + $0x118] sm:$0xff]
    %v1555 = vld [vmem:[%s49 + $0x120] sm:$0xff]
    %v1556 = vld [vmem:[%s49 + $0x128] sm:$0xff]
    %v1557 = vld [vmem:[%s49 + $0x130] sm:$0xff]
    %v1558 = vld [vmem:[%s49 + $0x138] sm:$0xff]
    %v1559 = vld [vmem:[%s49 + $0x140] sm:$0xff]
    %v1560 = vld [vmem:[%s49 + $0x148] sm:$0xff]
    %v1561 = vld [vmem:[%s49 + $0x150] sm:$0xff]
    %v1562 = vld [vmem:[%s49 + $0x158] sm:$0xff]
    %v1563 = vld [vmem:[%s49 + $0x160] sm:$0xff]
    %v1564 = vld [vmem:[%s49 + $0x168] sm:$0xff]
    %v1565 = vld [vmem:[%s49 + $0x170] sm:$0xff]
    %v1566 = vld [vmem:[%s49 + $0x178] sm:$0xff]
    %v1567 = vld [vmem:[%s49 + $0x180] sm:$0xff]
    %v1568 = vld [vmem:[%s49 + $0x188] sm:$0xff]
    %v1569 = vld [vmem:[%s49 + $0x190] sm:$0xff]
    %v1570 = vld [vmem:[%s49 + $0x198] sm:$0xff]
    %v1571 = vld [vmem:[%s49 + $0x1a0] sm:$0xff]
    %v1572 = vld [vmem:[%s49 + $0x1a8] sm:$0xff]
    %v1573 = vld [vmem:[%s49 + $0x1b0] sm:$0xff]
    %v1574 = vld [vmem:[%s49 + $0x1b8] sm:$0xff]
    %v1575 = vld [vmem:[%s49 + $0x1c0] sm:$0xff]
    %v1576 = vld [vmem:[%s49 + $0x1c8] sm:$0xff]
    %v1577 = vld [vmem:[%s49 + $0x1d0] sm:$0xff]
    %v1578 = vld [vmem:[%s49 + $0x1d8] sm:$0xff]
    %v1579 = vld [vmem:[%s49 + $0x1e0] sm:$0xff]
    %v1580 = vld [vmem:[%s49 + $0x1e8] sm:$0xff]
    %v1581 = vld [vmem:[%s49 + $0x1f0] sm:$0xff]
    %v1582 = vld [vmem:[%s49 + $0x1f8] sm:$0xff]
    %v1583 = vld [vmem:[%s49 + $0x200] sm:$0xff]
    %v1584 = vld [vmem:[%s49 + $0x208] sm:$0xff]
    %v1585 = vld [vmem:[%s49 + $0x210] sm:$0xff]
    %v1586 = vld [vmem:[%s49 + $0x218] sm:$0xff]
    %v1587 = vld [vmem:[%s49 + $0x220] sm:$0xff]
    %v1588 = vld [vmem:[%s49 + $0x228] sm:$0xff]
    %v1589 = vld [vmem:[%s49 + $0x230] sm:$0xff]
    %v1590 = vld [vmem:[%s49 + $0x238] sm:$0xff]
    %v1591 = vld [vmem:[%s49 + $0x240] sm:$0xff]
    %v1592 = vld [vmem:[%s49 + $0x248] sm:$0xff]
    %v1593 = vld [vmem:[%s49 + $0x250] sm:$0xff]
    %v1594 = vld [vmem:[%s49 + $0x258] sm:$0xff]
    %v1595 = vld [vmem:[%s49 + $0x260] sm:$0xff]
    %v1596 = vld [vmem:[%s49 + $0x268] sm:$0xff]
    %v1597 = vld [vmem:[%s49 + $0x270] sm:$0xff]
    %v1598 = vld [vmem:[%s49 + $0x278] sm:$0xff]
    %v1599 = vld [vmem:[%s49 + $0x280] sm:$0xff]
    %v1600 = vld [vmem:[%s49 + $0x288] sm:$0xff]
    %v1601 = vld [vmem:[%s49 + $0x290] sm:$0xff]
    %v1602 = vld [vmem:[%s49 + $0x298] sm:$0xff]
    %v1603 = vld [vmem:[%s49 + $0x2a0] sm:$0xff]
    %v1604 = vld [vmem:[%s49 + $0x2a8] sm:$0xff]
    %v1605 = vld [vmem:[%s49 + $0x2b0] sm:$0xff]
    %v1606 = vld [vmem:[%s49 + $0x2b8] sm:$0xff]
    %v1607 = vld [vmem:[%s49 + $0x2c0] sm:$0xff]
    %v1608 = vld [vmem:[%s49 + $0x2c8] sm:$0xff]
    %v1609 = vld [vmem:[%s49 + $0x2d0] sm:$0xff]
    %v1610 = vld [vmem:[%s49 + $0x2d8] sm:$0xff]
    %v1611 = vld [vmem:[%s49 + $0x2e0] sm:$0xff]
    %v1612 = vld [vmem:[%s49 + $0x2e8] sm:$0xff]
    %v1613 = vld [vmem:[%s49 + $0x2f0] sm:$0xff]
    %v1614 = vld [vmem:[%s49 + $0x2f8] sm:$0xff]
    %v1615 = vld [vmem:[%s49 + $0x300] sm:$0xff]
    %v1616 = vld [vmem:[%s49 + $0x308] sm:$0xff]
    %v1617 = vld [vmem:[%s49 + $0x310] sm:$0xff]
    %v1618 = vld [vmem:[%s49 + $0x318] sm:$0xff]
    %v1619 = vld [vmem:[%s49 + $0x320] sm:$0xff]
    %v1620 = vld [vmem:[%s49 + $0x328] sm:$0xff]
    %v1621 = vld [vmem:[%s49 + $0x330] sm:$0xff]
    %v1622 = vld [vmem:[%s49 + $0x338] sm:$0xff]
    %v1623 = vld [vmem:[%s49 + $0x340] sm:$0xff]
    %v1624 = vld [vmem:[%s49 + $0x348] sm:$0xff]
    %v1625 = vld [vmem:[%s49 + $0x350] sm:$0xff]
    %v1626 = vld [vmem:[%s49 + $0x358] sm:$0xff]
    %v1627 = vld [vmem:[%s49 + $0x360] sm:$0xff]
    %v1628 = vld [vmem:[%s49 + $0x368] sm:$0xff]
    %v1629 = vld [vmem:[%s49 + $0x370] sm:$0xff]
    %v1630 = vld [vmem:[%s49 + $0x378] sm:$0xff]
    %v1631 = vld [vmem:[%s49 + $0x380] sm:$0xff]
    %v1632 = vld [vmem:[%s49 + $0x388] sm:$0xff]
    %v1633 = vld [vmem:[%s49 + $0x390] sm:$0xff]
    %v1634 = vld [vmem:[%s49 + $0x398] sm:$0xff]
    %v1635 = vld [vmem:[%s49 + $0x3a0] sm:$0xff]
    %v1636 = vld [vmem:[%s49 + $0x3a8] sm:$0xff]
    %v1637 = vld [vmem:[%s49 + $0x3b0] sm:$0xff]
    %v1638 = vld [vmem:[%s49 + $0x3b8] sm:$0xff]
    %v1639 = vld [vmem:[%s49 + $0x3c0] sm:$0xff]
    %v1640 = vld [vmem:[%s49 + $0x3c8] sm:$0xff]
    %v1641 = vld [vmem:[%s49 + $0x3d0] sm:$0xff]
    %v1642 = vld [vmem:[%s49 + $0x3d8] sm:$0xff]
    %v1643 = vld [vmem:[%s49 + $0x3e0] sm:$0xff]
    %v1644 = vld [vmem:[%s49 + $0x3e8] sm:$0xff]
    %v1645 = vld [vmem:[%s49 + $0x3f0] sm:$0xff]
    %v1646 = vld [vmem:[%s49 + $0x3f8] sm:$0xff]
    %v1647 = vld [vmem:[%s49 + $0x400] sm:$0xff]
    %v1648 = vld [vmem:[%s49 + $0x408] sm:$0xff]
    %v1649 = vld [vmem:[%s49 + $0x410] sm:$0xff]
    %v1650 = vld [vmem:[%s49 + $0x418] sm:$0xff]
    %v1651 = vld [vmem:[%s49 + $0x420] sm:$0xff]
    %v1652 = vld [vmem:[%s49 + $0x428] sm:$0xff]
    %v1653 = vld [vmem:[%s49 + $0x430] sm:$0xff]
    %v1654 = vld [vmem:[%s49 + $0x438] sm:$0xff]
    %v1655 = vld [vmem:[%s49 + $0x440] sm:$0xff]
    %v1656 = vld [vmem:[%s49 + $0x448] sm:$0xff]
    %v1657 = vld [vmem:[%s49 + $0x450] sm:$0xff]
    %v1658 = vld [vmem:[%s49 + $0x458] sm:$0xff]
    %v1659 = vld [vmem:[%s49 + $0x460] sm:$0xff]
    %v1660 = vld [vmem:[%s49 + $0x468] sm:$0xff]
    %v1661 = vld [vmem:[%s49 + $0x470] sm:$0xff]
    %v1662 = vld [vmem:[%s49 + $0x478] sm:$0xff]
    %v1663 = vld [vmem:[%s49 + $0x480] sm:$0xff]
    %v1664 = vld [vmem:[%s49 + $0x488] sm:$0xff]
    %v1665 = vld [vmem:[%s49 + $0x490] sm:$0xff]
    %v1666 = vld [vmem:[%s49 + $0x498] sm:$0xff]
    %v1667 = vld [vmem:[%s49 + $0x4a0] sm:$0xff]
    %v1668 = vld [vmem:[%s49 + $0x4a8] sm:$0xff]
    %v1669 = vld [vmem:[%s49 + $0x4b0] sm:$0xff]
    %v1670 = vld [vmem:[%s49 + $0x4b8] sm:$0xff]
    %v1671 = vld [vmem:[%s49 + $0x4c0] sm:$0xff]
    %v1672 = vld [vmem:[%s49 + $0x4c8] sm:$0xff]
    %v1673 = vld [vmem:[%s49 + $0x4d0] sm:$0xff]
    %v1674 = vld [vmem:[%s49 + $0x4d8] sm:$0xff]
    %v1675 = vld [vmem:[%s49 + $0x4e0] sm:$0xff]
    %v1676 = vld [vmem:[%s49 + $0x4e8] sm:$0xff]
    %v1677 = vld [vmem:[%s49 + $0x4f0] sm:$0xff]
    %v1678 = vld [vmem:[%s49 + $0x4f8] sm:$0xff]
    %v1679 = vld [vmem:[%s49 + $0x500] sm:$0xff]
    %v1680 = vld [vmem:[%s49 + $0x508] sm:$0xff]
    %v1681 = vld [vmem:[%s49 + $0x510] sm:$0xff]
    %v1682 = vld [vmem:[%s49 + $0x518] sm:$0xff]
    %v1683 = vld [vmem:[%s49 + $0x520] sm:$0xff]
    %v1684 = vld [vmem:[%s49 + $0x528] sm:$0xff]
    %v1685 = vld [vmem:[%s49 + $0x530] sm:$0xff]
    %v1686 = vld [vmem:[%s49 + $0x538] sm:$0xff]
    %v1687 = vld [vmem:[%s49 + $0x540] sm:$0xff]
    %v1688 = vld [vmem:[%s49 + $0x548] sm:$0xff]
    %v1689 = vld [vmem:[%s49 + $0x550] sm:$0xff]
    %v1690 = vld [vmem:[%s49 + $0x558] sm:$0xff]
    %v1691 = vld [vmem:[%s49 + $0x560] sm:$0xff]
    %v1692 = vld [vmem:[%s49 + $0x568] sm:$0xff]
    %v1693 = vld [vmem:[%s49 + $0x570] sm:$0xff]
    %v1694 = vld [vmem:[%s49 + $0x578] sm:$0xff]
    %v1695 = vld [vmem:[%s49 + $0x580] sm:$0xff]
    %v1696 = vld [vmem:[%s49 + $0x588] sm:$0xff]
    %v1697 = vld [vmem:[%s49 + $0x590] sm:$0xff]
    %v1698 = vld [vmem:[%s49 + $0x598] sm:$0xff]
    %v1699 = vld [vmem:[%s49 + $0x5a0] sm:$0xff]
    %v1700 = vld [vmem:[%s49 + $0x5a8] sm:$0xff]
    %v1701 = vld [vmem:[%s49 + $0x5b0] sm:$0xff]
    %v1702 = vld [vmem:[%s49 + $0x5b8] sm:$0xff]
    %v1703 = vld [vmem:[%s49 + $0x5c0] sm:$0xff]
    %v1704 = vld [vmem:[%s49 + $0x5c8] sm:$0xff]
    %v1705 = vld [vmem:[%s49 + $0x5d0] sm:$0xff]
    %v1706 = vld [vmem:[%s49 + $0x5d8] sm:$0xff]
    %v1707 = vld [vmem:[%s49 + $0x5e0] sm:$0xff]
    %v1708 = vld [vmem:[%s49 + $0x5e8] sm:$0xff]
    %v1709 = vld [vmem:[%s49 + $0x5f0] sm:$0xff]
    %v1710 = vld [vmem:[%s49 + $0x5f8] sm:$0xff]
    %v1711 = vld [vmem:[%s49 + $0x600] sm:$0xff]
    %v1712 = vld [vmem:[%s49 + $0x608] sm:$0xff]
    %v1713 = vld [vmem:[%s49 + $0x610] sm:$0xff]
    %v1714 = vld [vmem:[%s49 + $0x618] sm:$0xff]
    %v1715 = vld [vmem:[%s49 + $0x620] sm:$0xff]
    %v1716 = vld [vmem:[%s49 + $0x628] sm:$0xff]
    %v1717 = vld [vmem:[%s49 + $0x630] sm:$0xff]
    %v1718 = vld [vmem:[%s49 + $0x638] sm:$0xff]
    %v1719 = vld [vmem:[%s49 + $0x640] sm:$0xff]
    %v1720 = vld [vmem:[%s49 + $0x648] sm:$0xff]
    %v1721 = vld [vmem:[%s49 + $0x650] sm:$0xff]
    %v1722 = vld [vmem:[%s49 + $0x658] sm:$0xff]
    %v1723 = vld [vmem:[%s49 + $0x660] sm:$0xff]
    %v1724 = vld [vmem:[%s49 + $0x668] sm:$0xff]
    %v1725 = vld [vmem:[%s49 + $0x670] sm:$0xff]
    %v1726 = vld [vmem:[%s49 + $0x678] sm:$0xff]
    %v1727 = vld [vmem:[%s49 + $0x680] sm:$0xff]
    %v1728 = vld [vmem:[%s49 + $0x688] sm:$0xff]
    %v1729 = vld [vmem:[%s49 + $0x690] sm:$0xff]
    %v1730 = vld [vmem:[%s49 + $0x698] sm:$0xff]
    %v1731 = vld [vmem:[%s49 + $0x6a0] sm:$0xff]
    %v1732 = vld [vmem:[%s49 + $0x6a8] sm:$0xff]
    %v1733 = vld [vmem:[%s49 + $0x6b0] sm:$0xff]
    %v1734 = vld [vmem:[%s49 + $0x6b8] sm:$0xff]
    %v1735 = vld [vmem:[%s49 + $0x6c0] sm:$0xff]
    %v1736 = vld [vmem:[%s49 + $0x6c8] sm:$0xff]
    %v1737 = vld [vmem:[%s49 + $0x6d0] sm:$0xff]
    %v1738 = vld [vmem:[%s49 + $0x6d8] sm:$0xff]
    %v1739 = vld [vmem:[%s49 + $0x6e0] sm:$0xff]
    %v1740 = vld [vmem:[%s49 + $0x6e8] sm:$0xff]
    %v1741 = vld [vmem:[%s49 + $0x6f0] sm:$0xff]
    %v1742 = vld [vmem:[%s49 + $0x6f8] sm:$0xff]
    %v1743 = vld [vmem:[%s49 + $0x700] sm:$0xff]
    %v1744 = vld [vmem:[%s49 + $0x708] sm:$0xff]
    %v1745 = vld [vmem:[%s49 + $0x710] sm:$0xff]
    %v1746 = vld [vmem:[%s49 + $0x718] sm:$0xff]
    %v1747 = vld [vmem:[%s49 + $0x720] sm:$0xff]
    %v1748 = vld [vmem:[%s49 + $0x728] sm:$0xff]
    %v1749 = vld [vmem:[%s49 + $0x730] sm:$0xff]
    %v1750 = vld [vmem:[%s49 + $0x738] sm:$0xff]
    %v1751 = vld [vmem:[%s49 + $0x740] sm:$0xff]
    %v1752 = vld [vmem:[%s49 + $0x748] sm:$0xff]
    %v1753 = vld [vmem:[%s49 + $0x750] sm:$0xff]
    %v1754 = vld [vmem:[%s49 + $0x758] sm:$0xff]
    %v1755 = vld [vmem:[%s49 + $0x760] sm:$0xff]
    %v1756 = vld [vmem:[%s49 + $0x768] sm:$0xff]
    %v1757 = vld [vmem:[%s49 + $0x770] sm:$0xff]
    %v1758 = vld [vmem:[%s49 + $0x778] sm:$0xff]
    %v1759 = vld [vmem:[%s49 + $0x780] sm:$0xff]
    %v1760 = vld [vmem:[%s49 + $0x788] sm:$0xff]
    %v1761 = vld [vmem:[%s49 + $0x790] sm:$0xff]
    %v1762 = vld [vmem:[%s49 + $0x798] sm:$0xff]
    %v1763 = vld [vmem:[%s49 + $0x7a0] sm:$0xff]
    %v1764 = vld [vmem:[%s49 + $0x7a8] sm:$0xff]
    %v1765 = vld [vmem:[%s49 + $0x7b0] sm:$0xff]
    %v1766 = vld [vmem:[%s49 + $0x7b8] sm:$0xff]
    %v1767 = vld [vmem:[%s49 + $0x7c0] sm:$0xff]
    %v1768 = vld [vmem:[%s49 + $0x7c8] sm:$0xff]
    %v1769 = vld [vmem:[%s49 + $0x7d0] sm:$0xff]
    %v1770 = vld [vmem:[%s49 + $0x7d8] sm:$0xff]
    %v1771 = vld [vmem:[%s49 + $0x7e0] sm:$0xff]
    %v1772 = vld [vmem:[%s49 + $0x7e8] sm:$0xff]
    %v1773 = vld [vmem:[%s49 + $0x7f0] sm:$0xff]
    %v1774 = vld [vmem:[%s49 + $0x7f8] sm:$0xff]
    %v1775 = vld [vmem:[%s51] sm:$0x1]
    %v1777 = vperm.slane %v1775, 0
    %1779 = vmatpush.msra.mxu0 %v1534
    %1780 = vmatpush.msra.mxu0 %v1533
    %1781 = vmatpush.msra.mxu0 %v1532
    %1782 = vmatpush.msra.mxu0 %v1531
    %1783 = vmatpush.msra.mxu0 %v1530
    %1784 = vmatpush.msra.mxu0 %v1529
    %1785 = vmatpush.msra.mxu0 %v1528
    %1786 = vmatpush.msra.mxu0 %v1527
    %1787 = vmatpush.msra.mxu0 %v1526
    %1788 = vmatpush.msra.mxu0 %v1525
    %1789 = vmatpush.msra.mxu0 %v1524
    %1790 = vmatpush.msra.mxu0 %v1523
    %1791 = vmatpush.msra.mxu0 %v1522
    %1792 = vmatpush.msra.mxu0 %v1521
    %1793 = vmatpush.msra.mxu0 %v1520
    %1794 = vmatpush.msra.mxu0 %v1519
    %1795 = vmatmul.f32.gmra.mxu0 %v1471
    %v1796 = vpop.f32.mrf.mxu0
    %v1797 = vadd.f32 %v1777, %v1796
    %1798 = vmatmul.f32.gmra.mxu0 %v1487
    %v1799 = vpop.f32.mrf.mxu0
    %v1800 = vadd.f32 %v1777, %v1799
    %1801 = vmatmul.f32.gmra.mxu0 %v1503
    %v1802 = vpop.f32.mrf.mxu0
    %v1803 = vadd.f32 %v1777, %v1802
    %1804 = vdwg.mxu0
    %1805 = vmatpush.msra.mxu0 %v1550
    %1806 = vmatpush.msra.mxu0 %v1549
    %1807 = vmatpush.msra.mxu0 %v1548
    %1808 = vmatpush.msra.mxu0 %v1547
    %1809 = vmatpush.msra.mxu0 %v1546
    %1810 = vmatpush.msra.mxu0 %v1545
    %1811 = vmatpush.msra.mxu0 %v1544
    %1812 = vmatpush.msra.mxu0 %v1543
    %1813 = vmatpush.msra.mxu0 %v1542
    %1814 = vmatpush.msra.mxu0 %v1541
    %1815 = vmatpush.msra.mxu0 %v1540
    %1816 = vmatpush.msra.mxu0 %v1539
    %1817 = vmatpush.msra.mxu0 %v1538
    %1818 = vmatpush.msra.mxu0 %v1537
    %1819 = vmatpush.msra.mxu0 %v1536
    %1820 = vmatpush.msra.mxu0 %v1535
    %1821 = vmatmul.f32.gmra.mxu0 %v1472
    %v1822 = vpop.f32.mrf.mxu0
    %v1823 = vadd.f32 %v1797, %v1822
    %1824 = vmatmul.f32.gmra.mxu0 %v1488
    %v1825 = vpop.f32.mrf.mxu0
    %v1826 = vadd.f32 %v1800, %v1825
    %1827 = vmatmul.f32.gmra.mxu0 %v1504
    %v1828 = vpop.f32.mrf.mxu0
    %v1829 = vadd.f32 %v1803, %v1828
    %1830 = vdwg.mxu0
    %1831 = vmatpush.msra.mxu0 %v1566
    %1832 = vmatpush.msra.mxu0 %v1565
    %1833 = vmatpush.msra.mxu0 %v1564
    %1834 = vmatpush.msra.mxu0 %v1563
    %1835 = vmatpush.msra.mxu0 %v1562
    %1836 = vmatpush.msra.mxu0 %v1561
    %1837 = vmatpush.msra.mxu0 %v1560
    %1838 = vmatpush.msra.mxu0 %v1559
    %1839 = vmatpush.msra.mxu0 %v1558
    %1840 = vmatpush.msra.mxu0 %v1557
    %1841 = vmatpush.msra.mxu0 %v1556
    %1842 = vmatpush.msra.mxu0 %v1555
    %1843 = vmatpush.msra.mxu0 %v1554
    %1844 = vmatpush.msra.mxu0 %v1553
    %1845 = vmatpush.msra.mxu0 %v1552
    %1846 = vmatpush.msra.mxu0 %v1551
    %1847 = vmatmul.f32.gmra.mxu0 %v1473
    %v1848 = vpop.f32.mrf.mxu0
    %v1849 = vadd.f32 %v1823, %v1848
    %1850 = vmatmul.f32.gmra.mxu0 %v1489
    %v1851 = vpop.f32.mrf.mxu0
    %v1852 = vadd.f32 %v1826, %v1851
    %1853 = vmatmul.f32.gmra.mxu0 %v1505
    %v1854 = vpop.f32.mrf.mxu0
    %v1855 = vadd.f32 %v1829, %v1854
    %1856 = vdwg.mxu0
    %1857 = vmatpush.msra.mxu0 %v1582
    %1858 = vmatpush.msra.mxu0 %v1581
    %1859 = vmatpush.msra.mxu0 %v1580
    %1860 = vmatpush.msra.mxu0 %v1579
    %1861 = vmatpush.msra.mxu0 %v1578
    %1862 = vmatpush.msra.mxu0 %v1577
    %1863 = vmatpush.msra.mxu0 %v1576
    %1864 = vmatpush.msra.mxu0 %v1575
    %1865 = vmatpush.msra.mxu0 %v1574
    %1866 = vmatpush.msra.mxu0 %v1573
    %1867 = vmatpush.msra.mxu0 %v1572
    %1868 = vmatpush.msra.mxu0 %v1571
    %1869 = vmatpush.msra.mxu0 %v1570
    %1870 = vmatpush.msra.mxu0 %v1569
    %1871 = vmatpush.msra.mxu0 %v1568
    %1872 = vmatpush.msra.mxu0 %v1567
    %1873 = vmatmul.f32.gmra.mxu0 %v1474
    %v1874 = vpop.f32.mrf.mxu0
    %v1875 = vadd.f32 %v1849, %v1874
    %1876 = vmatmul.f32.gmra.mxu0 %v1490
    %v1877 = vpop.f32.mrf.mxu0
    %v1878 = vadd.f32 %v1852, %v1877
    %1879 = vmatmul.f32.gmra.mxu0 %v1506
    %v1880 = vpop.f32.mrf.mxu0
    %v1881 = vadd.f32 %v1855, %v1880
    %1882 = vdwg.mxu0
    %1883 = vmatpush.msra.mxu0 %v1598
    %1884 = vmatpush.msra.mxu0 %v1597
    %1885 = vmatpush.msra.mxu0 %v1596
    %1886 = vmatpush.msra.mxu0 %v1595
    %1887 = vmatpush.msra.mxu0 %v1594
    %1888 = vmatpush.msra.mxu0 %v1593
    %1889 = vmatpush.msra.mxu0 %v1592
    %1890 = vmatpush.msra.mxu0 %v1591
    %1891 = vmatpush.msra.mxu0 %v1590
    %1892 = vmatpush.msra.mxu0 %v1589
    %1893 = vmatpush.msra.mxu0 %v1588
    %1894 = vmatpush.msra.mxu0 %v1587
    %1895 = vmatpush.msra.mxu0 %v1586
    %1896 = vmatpush.msra.mxu0 %v1585
    %1897 = vmatpush.msra.mxu0 %v1584
    %1898 = vmatpush.msra.mxu0 %v1583
    %1899 = vmatmul.f32.gmra.mxu0 %v1475
    %v1900 = vpop.f32.mrf.mxu0
    %v1901 = vadd.f32 %v1875, %v1900
    %1902 = vmatmul.f32.gmra.mxu0 %v1491
    %v1903 = vpop.f32.mrf.mxu0
    %v1904 = vadd.f32 %v1878, %v1903
    %1905 = vmatmul.f32.gmra.mxu0 %v1507
    %v1906 = vpop.f32.mrf.mxu0
    %v1907 = vadd.f32 %v1881, %v1906
    %1908 = vdwg.mxu0
    %1909 = vmatpush.msra.mxu0 %v1614
    %1910 = vmatpush.msra.mxu0 %v1613
    %1911 = vmatpush.msra.mxu0 %v1612
    %1912 = vmatpush.msra.mxu0 %v1611
    %1913 = vmatpush.msra.mxu0 %v1610
    %1914 = vmatpush.msra.mxu0 %v1609
    %1915 = vmatpush.msra.mxu0 %v1608
    %1916 = vmatpush.msra.mxu0 %v1607
    %1917 = vmatpush.msra.mxu0 %v1606
    %1918 = vmatpush.msra.mxu0 %v1605
    %1919 = vmatpush.msra.mxu0 %v1604
    %1920 = vmatpush.msra.mxu0 %v1603
    %1921 = vmatpush.msra.mxu0 %v1602
    %1922 = vmatpush.msra.mxu0 %v1601
    %1923 = vmatpush.msra.mxu0 %v1600
    %1924 = vmatpush.msra.mxu0 %v1599
    %1925 = vmatmul.f32.gmra.mxu0 %v1476
    %v1926 = vpop.f32.mrf.mxu0
    %v1927 = vadd.f32 %v1901, %v1926
    %1928 = vmatmul.f32.gmra.mxu0 %v1492
    %v1929 = vpop.f32.mrf.mxu0
    %v1930 = vadd.f32 %v1904, %v1929
    %1931 = vmatmul.f32.gmra.mxu0 %v1508
    %v1932 = vpop.f32.mrf.mxu0
    %v1933 = vadd.f32 %v1907, %v1932
    %1934 = vdwg.mxu0
    %1935 = vmatpush.msra.mxu0 %v1630
    %1936 = vmatpush.msra.mxu0 %v1629
    %1937 = vmatpush.msra.mxu0 %v1628
    %1938 = vmatpush.msra.mxu0 %v1627
    %1939 = vmatpush.msra.mxu0 %v1626
    %1940 = vmatpush.msra.mxu0 %v1625
    %1941 = vmatpush.msra.mxu0 %v1624
    %1942 = vmatpush.msra.mxu0 %v1623
    %1943 = vmatpush.msra.mxu0 %v1622
    %1944 = vmatpush.msra.mxu0 %v1621
    %1945 = vmatpush.msra.mxu0 %v1620
    %1946 = vmatpush.msra.mxu0 %v1619
    %1947 = vmatpush.msra.mxu0 %v1618
    %1948 = vmatpush.msra.mxu0 %v1617
    %1949 = vmatpush.msra.mxu0 %v1616
    %1950 = vmatpush.msra.mxu0 %v1615
    %1951 = vmatmul.f32.gmra.mxu0 %v1477
    %v1952 = vpop.f32.mrf.mxu0
    %v1953 = vadd.f32 %v1927, %v1952
    %1954 = vmatmul.f32.gmra.mxu0 %v1493
    %v1955 = vpop.f32.mrf.mxu0
    %v1956 = vadd.f32 %v1930, %v1955
    %1957 = vmatmul.f32.gmra.mxu0 %v1509
    %v1958 = vpop.f32.mrf.mxu0
    %v1959 = vadd.f32 %v1933, %v1958
    %1960 = vdwg.mxu0
    %1961 = vmatpush.msra.mxu0 %v1646
    %1962 = vmatpush.msra.mxu0 %v1645
    %1963 = vmatpush.msra.mxu0 %v1644
    %1964 = vmatpush.msra.mxu0 %v1643
    %1965 = vmatpush.msra.mxu0 %v1642
    %1966 = vmatpush.msra.mxu0 %v1641
    %1967 = vmatpush.msra.mxu0 %v1640
    %1968 = vmatpush.msra.mxu0 %v1639
    %1969 = vmatpush.msra.mxu0 %v1638
    %1970 = vmatpush.msra.mxu0 %v1637
    %1971 = vmatpush.msra.mxu0 %v1636
    %1972 = vmatpush.msra.mxu0 %v1635
    %1973 = vmatpush.msra.mxu0 %v1634
    %1974 = vmatpush.msra.mxu0 %v1633
    %1975 = vmatpush.msra.mxu0 %v1632
    %1976 = vmatpush.msra.mxu0 %v1631
    %1977 = vmatmul.f32.gmra.mxu0 %v1478
    %v1978 = vpop.f32.mrf.mxu0
    %v1979 = vadd.f32 %v1953, %v1978
    %1980 = vmatmul.f32.gmra.mxu0 %v1494
    %v1981 = vpop.f32.mrf.mxu0
    %v1982 = vadd.f32 %v1956, %v1981
    %1983 = vmatmul.f32.gmra.mxu0 %v1510
    %v1984 = vpop.f32.mrf.mxu0
    %v1985 = vadd.f32 %v1959, %v1984
    %1986 = vdwg.mxu0
    %1987 = vmatpush.msra.mxu0 %v1662
    %1988 = vmatpush.msra.mxu0 %v1661
    %1989 = vmatpush.msra.mxu0 %v1660
    %1990 = vmatpush.msra.mxu0 %v1659
    %1991 = vmatpush.msra.mxu0 %v1658
    %1992 = vmatpush.msra.mxu0 %v1657
    %1993 = vmatpush.msra.mxu0 %v1656
    %1994 = vmatpush.msra.mxu0 %v1655
    %1995 = vmatpush.msra.mxu0 %v1654
    %1996 = vmatpush.msra.mxu0 %v1653
    %1997 = vmatpush.msra.mxu0 %v1652
    %1998 = vmatpush.msra.mxu0 %v1651
    %1999 = vmatpush.msra.mxu0 %v1650
    %2000 = vmatpush.msra.mxu0 %v1649
    %2001 = vmatpush.msra.mxu0 %v1648
    %2002 = vmatpush.msra.mxu0 %v1647
    %2003 = vmatmul.f32.gmra.mxu0 %v1479
    %v2004 = vpop.f32.mrf.mxu0
    %v2005 = vadd.f32 %v1979, %v2004
    %2006 = vmatmul.f32.gmra.mxu0 %v1495
    %v2007 = vpop.f32.mrf.mxu0
    %v2008 = vadd.f32 %v1982, %v2007
    %2009 = vmatmul.f32.gmra.mxu0 %v1511
    %v2010 = vpop.f32.mrf.mxu0
    %v2011 = vadd.f32 %v1985, %v2010
    %2012 = vdwg.mxu0
    %2013 = vmatpush.msra.mxu0 %v1678
    %2014 = vmatpush.msra.mxu0 %v1677
    %2015 = vmatpush.msra.mxu0 %v1676
    %2016 = vmatpush.msra.mxu0 %v1675
    %2017 = vmatpush.msra.mxu0 %v1674
    %2018 = vmatpush.msra.mxu0 %v1673
    %2019 = vmatpush.msra.mxu0 %v1672
    %2020 = vmatpush.msra.mxu0 %v1671
    %2021 = vmatpush.msra.mxu0 %v1670
    %2022 = vmatpush.msra.mxu0 %v1669
    %2023 = vmatpush.msra.mxu0 %v1668
    %2024 = vmatpush.msra.mxu0 %v1667
    %2025 = vmatpush.msra.mxu0 %v1666
    %2026 = vmatpush.msra.mxu0 %v1665
    %2027 = vmatpush.msra.mxu0 %v1664
    %2028 = vmatpush.msra.mxu0 %v1663
    %2029 = vmatmul.f32.gmra.mxu0 %v1480
    %v2030 = vpop.f32.mrf.mxu0
    %v2031 = vadd.f32 %v2005, %v2030
    %2032 = vmatmul.f32.gmra.mxu0 %v1496
    %v2033 = vpop.f32.mrf.mxu0
    %v2034 = vadd.f32 %v2008, %v2033
    %2035 = vmatmul.f32.gmra.mxu0 %v1512
    %v2036 = vpop.f32.mrf.mxu0
    %v2037 = vadd.f32 %v2011, %v2036
    %2038 = vdwg.mxu0
    %2039 = vmatpush.msra.mxu0 %v1694
    %2040 = vmatpush.msra.mxu0 %v1693
    %2041 = vmatpush.msra.mxu0 %v1692
    %2042 = vmatpush.msra.mxu0 %v1691
    %2043 = vmatpush.msra.mxu0 %v1690
    %2044 = vmatpush.msra.mxu0 %v1689
    %2045 = vmatpush.msra.mxu0 %v1688
    %2046 = vmatpush.msra.mxu0 %v1687
    %2047 = vmatpush.msra.mxu0 %v1686
    %2048 = vmatpush.msra.mxu0 %v1685
    %2049 = vmatpush.msra.mxu0 %v1684
    %2050 = vmatpush.msra.mxu0 %v1683
    %2051 = vmatpush.msra.mxu0 %v1682
    %2052 = vmatpush.msra.mxu0 %v1681
    %2053 = vmatpush.msra.mxu0 %v1680
    %2054 = vmatpush.msra.mxu0 %v1679
    %2055 = vmatmul.f32.gmra.mxu0 %v1481
    %v2056 = vpop.f32.mrf.mxu0
    %v2057 = vadd.f32 %v2031, %v2056
    %2058 = vmatmul.f32.gmra.mxu0 %v1497
    %v2059 = vpop.f32.mrf.mxu0
    %v2060 = vadd.f32 %v2034, %v2059
    %2061 = vmatmul.f32.gmra.mxu0 %v1513
    %v2062 = vpop.f32.mrf.mxu0
    %v2063 = vadd.f32 %v2037, %v2062
    %2064 = vdwg.mxu0
    %2065 = vmatpush.msra.mxu0 %v1710
    %2066 = vmatpush.msra.mxu0 %v1709
    %2067 = vmatpush.msra.mxu0 %v1708
    %2068 = vmatpush.msra.mxu0 %v1707
    %2069 = vmatpush.msra.mxu0 %v1706
    %2070 = vmatpush.msra.mxu0 %v1705
    %2071 = vmatpush.msra.mxu0 %v1704
    %2072 = vmatpush.msra.mxu0 %v1703
    %2073 = vmatpush.msra.mxu0 %v1702
    %2074 = vmatpush.msra.mxu0 %v1701
    %2075 = vmatpush.msra.mxu0 %v1700
    %2076 = vmatpush.msra.mxu0 %v1699
    %2077 = vmatpush.msra.mxu0 %v1698
    %2078 = vmatpush.msra.mxu0 %v1697
    %2079 = vmatpush.msra.mxu0 %v1696
    %2080 = vmatpush.msra.mxu0 %v1695
    %2081 = vmatmul.f32.gmra.mxu0 %v1482
    %v2082 = vpop.f32.mrf.mxu0
    %v2083 = vadd.f32 %v2057, %v2082
    %2084 = vmatmul.f32.gmra.mxu0 %v1498
    %v2085 = vpop.f32.mrf.mxu0
    %v2086 = vadd.f32 %v2060, %v2085
    %2087 = vmatmul.f32.gmra.mxu0 %v1514
    %v2088 = vpop.f32.mrf.mxu0
    %v2089 = vadd.f32 %v2063, %v2088
    %2090 = vdwg.mxu0
    %2091 = vmatpush.msra.mxu0 %v1726
    %2092 = vmatpush.msra.mxu0 %v1725
    %2093 = vmatpush.msra.mxu0 %v1724
    %2094 = vmatpush.msra.mxu0 %v1723
    %2095 = vmatpush.msra.mxu0 %v1722
    %2096 = vmatpush.msra.mxu0 %v1721
    %2097 = vmatpush.msra.mxu0 %v1720
    %2098 = vmatpush.msra.mxu0 %v1719
    %2099 = vmatpush.msra.mxu0 %v1718
    %2100 = vmatpush.msra.mxu0 %v1717
    %2101 = vmatpush.msra.mxu0 %v1716
    %2102 = vmatpush.msra.mxu0 %v1715
    %2103 = vmatpush.msra.mxu0 %v1714
    %2104 = vmatpush.msra.mxu0 %v1713
    %2105 = vmatpush.msra.mxu0 %v1712
    %2106 = vmatpush.msra.mxu0 %v1711
    %2107 = vmatmul.f32.gmra.mxu0 %v1483
    %v2108 = vpop.f32.mrf.mxu0
    %v2109 = vadd.f32 %v2083, %v2108
    %2110 = vmatmul.f32.gmra.mxu0 %v1499
    %v2111 = vpop.f32.mrf.mxu0
    %v2112 = vadd.f32 %v2086, %v2111
    %2113 = vmatmul.f32.gmra.mxu0 %v1515
    %v2114 = vpop.f32.mrf.mxu0
    %v2115 = vadd.f32 %v2089, %v2114
    %2116 = vdwg.mxu0
    %2117 = vmatpush.msra.mxu0 %v1742
    %2118 = vmatpush.msra.mxu0 %v1741
    %2119 = vmatpush.msra.mxu0 %v1740
    %2120 = vmatpush.msra.mxu0 %v1739
    %2121 = vmatpush.msra.mxu0 %v1738
    %2122 = vmatpush.msra.mxu0 %v1737
    %2123 = vmatpush.msra.mxu0 %v1736
    %2124 = vmatpush.msra.mxu0 %v1735
    %2125 = vmatpush.msra.mxu0 %v1734
    %2126 = vmatpush.msra.mxu0 %v1733
    %2127 = vmatpush.msra.mxu0 %v1732
    %2128 = vmatpush.msra.mxu0 %v1731
    %2129 = vmatpush.msra.mxu0 %v1730
    %2130 = vmatpush.msra.mxu0 %v1729
    %2131 = vmatpush.msra.mxu0 %v1728
    %2132 = vmatpush.msra.mxu0 %v1727
    %2133 = vmatmul.f32.gmra.mxu0 %v1484
    %v2134 = vpop.f32.mrf.mxu0
    %v2135 = vadd.f32 %v2109, %v2134
    %2136 = vmatmul.f32.gmra.mxu0 %v1500
    %v2137 = vpop.f32.mrf.mxu0
    %v2138 = vadd.f32 %v2112, %v2137
    %2139 = vmatmul.f32.gmra.mxu0 %v1516
    %v2140 = vpop.f32.mrf.mxu0
    %v2141 = vadd.f32 %v2115, %v2140
    %2142 = vdwg.mxu0
    %2143 = vmatpush.msra.mxu0 %v1758
    %2144 = vmatpush.msra.mxu0 %v1757
    %2145 = vmatpush.msra.mxu0 %v1756
    %2146 = vmatpush.msra.mxu0 %v1755
    %2147 = vmatpush.msra.mxu0 %v1754
    %2148 = vmatpush.msra.mxu0 %v1753
    %2149 = vmatpush.msra.mxu0 %v1752
    %2150 = vmatpush.msra.mxu0 %v1751
    %2151 = vmatpush.msra.mxu0 %v1750
    %2152 = vmatpush.msra.mxu0 %v1749
    %2153 = vmatpush.msra.mxu0 %v1748
    %2154 = vmatpush.msra.mxu0 %v1747
    %2155 = vmatpush.msra.mxu0 %v1746
    %2156 = vmatpush.msra.mxu0 %v1745
    %2157 = vmatpush.msra.mxu0 %v1744
    %2158 = vmatpush.msra.mxu0 %v1743
    %2159 = vmatmul.f32.gmra.mxu0 %v1485
    %v2160 = vpop.f32.mrf.mxu0
    %v2161 = vadd.f32 %v2135, %v2160
    %2162 = vmatmul.f32.gmra.mxu0 %v1501
    %v2163 = vpop.f32.mrf.mxu0
    %v2164 = vadd.f32 %v2138, %v2163
    %2165 = vmatmul.f32.gmra.mxu0 %v1517
    %v2166 = vpop.f32.mrf.mxu0
    %v2167 = vadd.f32 %v2141, %v2166
    %2168 = vdwg.mxu0
    %2169 = vmatpush.msra.mxu0 %v1774
    %2170 = vmatpush.msra.mxu0 %v1773
    %2171 = vmatpush.msra.mxu0 %v1772
    %2172 = vmatpush.msra.mxu0 %v1771
    %2173 = vmatpush.msra.mxu0 %v1770
    %2174 = vmatpush.msra.mxu0 %v1769
    %2175 = vmatpush.msra.mxu0 %v1768
    %2176 = vmatpush.msra.mxu0 %v1767
    %2177 = vmatpush.msra.mxu0 %v1766
    %2178 = vmatpush.msra.mxu0 %v1765
    %2179 = vmatpush.msra.mxu0 %v1764
    %2180 = vmatpush.msra.mxu0 %v1763
    %2181 = vmatpush.msra.mxu0 %v1762
    %2182 = vmatpush.msra.mxu0 %v1761
    %2183 = vmatpush.msra.mxu0 %v1760
    %2184 = vmatpush.msra.mxu0 %v1759
    %2185 = vmatmul.f32.gmra.mxu0 %v1486
    %v2186 = vpop.f32.mrf.mxu0
    %v2187 = vadd.f32 %v2161, %v2186
    %2188 = vmatmul.f32.gmra.mxu0 %v1502
    %v2189 = vpop.f32.mrf.mxu0
    %v2190 = vadd.f32 %v2164, %v2189
    %2191 = vmatmul.f32.gmra.mxu0 %v1518
    %v2192 = vpop.f32.mrf.mxu0
    %v2193 = vadd.f32 %v2167, %v2192
    %2194 = vdwg.mxu0
    %v2195 = vadd.f32 %v911, %v2187
    %v2196 = vadd.f32 %v912, %v2190
    %v2197 = vadd.f32 %v913, %v2193
    %v2198 = vld [vmem:[%s41] sm:$0x1]
    %v2199 = vld [vmem:[%s43] sm:$0x1]
    %v2200 = vsel %vm156, %v2195, 0.0
    %2201 = vadd.xlane.f32.xlu0 %v2200
    %v2202 = vpop.xlane.xlu0 %2201
    %v2203 = vsel %vm156, %v2196, 0.0
    %2204 = vadd.xlane.f32.xlu0 %v2203
    %v2205 = vpop.xlane.xlu0 %2204
    %v2206 = vsel %vm834, %v2197, 0.0
    %2207 = vadd.xlane.f32.xlu0 %v2206
    %v2208 = vpop.xlane.xlu0 %2207
    %v2209 = vmul.f32 %v2202, %v844
    %v2210 = vmul.f32 %v2205, %v844
    %v2211 = vmul.f32 %v2208, %v844
    %v2212 = vsub.f32 %v2195, %v2209
    %v2213 = vsub.f32 %v2196, %v2210
    %v2214 = vsub.f32 %v2197, %v2211
    %v2215 = vmul.f32 %v2212, %v2212
    %v2216 = vmul.f32 %v2213, %v2213
    %v2217 = vmul.f32 %v2214, %v2214
    %v2218 = vsel %vm156, %v2215, 0.0
    %2219 = vadd.xlane.f32.xlu0 %v2218
    %v2220 = vpop.xlane.xlu0 %2219
    %v2221 = vsel %vm156, %v2216, 0.0
    %2222 = vadd.xlane.f32.xlu0 %v2221
    %v2223 = vpop.xlane.xlu0 %2222
    %v2224 = vsel %vm834, %v2217, 0.0
    %2225 = vadd.xlane.f32.xlu0 %v2224
    %v2226 = vpop.xlane.xlu0 %2225
    %v2227 = vmul.f32 %v2220, %v844
    %v2228 = vmul.f32 %v2223, %v844
    %v2229 = vmul.f32 %v2226, %v844
    %v2230 = vadd.f32 %v2227, 1e-05
    %v2231 = vadd.f32 %v2228, 1e-05
    %v2232 = vadd.f32 %v2229, 1e-05
    %v2233 = vrsqrt.pop %v2230
    %v2234 = vmul.f32 %v2233, %v2230
    %v2235 = vmul.f32 %v2234, %v2233
    %v2236 = vmul.f32 0.5, %v2235
    %v2237 = vsub.f32 1.5, %v2236
    %v2238 = vmul.f32 %v2233, %v2237
    %vm2239 = vweird.f32 %v2230
    %vm2240 = vweird.f32 %v2233
    %vm2241 = vmor %vm2239, %vm2240
    %v2242 = vsel %vm2241, %v2233, %v2238
    %v2243 = vrsqrt.pop %v2231
    %v2244 = vmul.f32 %v2243, %v2231
    %v2245 = vmul.f32 %v2244, %v2243
    %v2246 = vmul.f32 0.5, %v2245
    %v2247 = vsub.f32 1.5, %v2246
    %v2248 = vmul.f32 %v2243, %v2247
    %vm2249 = vweird.f32 %v2231
    %vm2250 = vweird.f32 %v2243
    %vm2251 = vmor %vm2249, %vm2250
    %v2252 = vsel %vm2251, %v2243, %v2248
    %v2253 = vrsqrt.pop %v2232
    %v2254 = vmul.f32 %v2253, %v2232
    %v2255 = vmul.f32 %v2254, %v2253
    %v2256 = vmul.f32 0.5, %v2255
    %v2257 = vsub.f32 1.5, %v2256
    %v2258 = vmul.f32 %v2253, %v2257
    %vm2259 = vweird.f32 %v2232
    %vm2260 = vweird.f32 %v2253
    %vm2261 = vmor %vm2259, %vm2260
    %v2262 = vsel %vm2261, %v2253, %v2258
    %v2263 = vmul.f32 %v2212, %v2242
    %v2264 = vmul.f32 %v2213, %v2252
    %v2265 = vmul.f32 %v2214, %v2262
    %v2267 = vperm.slane %v2198, 0
    %v2269 = vmul.f32 %v2263, %v2267
    %v2270 = vmul.f32 %v2264, %v2267
    %v2271 = vmul.f32 %v2265, %v2267
    %v2273 = vperm.slane %v2199, 0
    %v2275 = vadd.f32 %v2269, %v2273
    %v2276 = vadd.f32 %v2270, %v2273
    %v2277 = vadd.f32 %v2271, %v2273
    %v2278 = vadd.f32 %v2275, %v188
    %v2279 = vadd.f32 %v2276, %v191
    %v2280 = vadd.f32 %v2277, %v194
    %s2281 = scalar_lea.vmem %s21, 24
    %v2282 = vld [vmem:[%s2281] sm:$0xff]
    %v2283 = vld [vmem:[%s2281 + $0x8] sm:$0xff]
    %v2284 = vld [vmem:[%s2281 + $0x10] sm:$0xf]
    %s2285 = scalar_lea.vmem %s27, 1
    %v2286 = vld [vmem:[%s2285] sm:$0x1]
    %v2288 = vperm.slane %v2286, 0
    %v2291 = vsel %vm156, %v2278, 0
    %v2294 = vsel %vm156, %v2279, 0
    %v2297 = vsel %vm156, %v2280, 0
    %v2300 = vsel %vm166, %v2284, 0
    %2302 = vmatpush.msra.mxu0 0.0
    %2303 = vmatpush.msra.mxu0 0.0
    %2304 = vmatpush.msra.mxu0 0.0
    %2305 = vmatpush.msra.mxu0 0.0
    %2306 = vmatpush.msra.mxu0 0.0
    %2307 = vmatpush.msra.mxu0 0.0
    %2308 = vmatpush.msra.mxu0 0.0
    %2309 = vmatpush.msra.mxu0 0.0
    %2310 = vmatpush.msra.mxu0 0.0
    %2311 = vmatpush.msra.mxu0 0.0
    %2312 = vmatpush.msra.mxu0 0.0
    %2313 = vmatpush.msra.mxu0 0.0
    %2314 = vmatpush.msra.mxu0 0.0
    %2315 = vmatpush.msra.mxu0 %v2300
    %2316 = vmatpush.msra.mxu0 %v2283
    %2317 = vmatpush.msra.mxu0 %v2282
    %2318 = vmatmul.f32.gmra.mxu0 %v2291
    %v2319 = vpop.f32.mrf.mxu0
    %v2320 = vadd.f32 %v2288, %v2319
    %2321 = vmatmul.f32.gmra.mxu0 %v2294
    %v2322 = vpop.f32.mrf.mxu0
    %v2323 = vadd.f32 %v2288, %v2322
    %2324 = vmatmul.f32.gmra.mxu0 %v2297
    %v2325 = vpop.f32.mrf.mxu0
    %v2326 = vadd.f32 %v2288, %v2325
    %2327 = vdwg.mxu0
    %s2328 = scalar_lea.vmem %s23, 24
    %v2329 = vld [vmem:[%s2328] sm:$0xff]
    %v2330 = vld [vmem:[%s2328 + $0x8] sm:$0xff]
    %v2331 = vld [vmem:[%s2328 + $0x10] sm:$0xf]
    %s2332 = scalar_lea.vmem %s29, 1
    %v2333 = vld [vmem:[%s2332] sm:$0x1]
    %v2335 = vperm.slane %v2333, 0
    %v2338 = vsel %vm166, %v2331, 0
    %2340 = vmatpush.msra.mxu0 0.0
    %2341 = vmatpush.msra.mxu0 0.0
    %2342 = vmatpush.msra.mxu0 0.0
    %2343 = vmatpush.msra.mxu0 0.0
    %2344 = vmatpush.msra.mxu0 0.0
    %2345 = vmatpush.msra.mxu0 0.0
    %2346 = vmatpush.msra.mxu0 0.0
    %2347 = vmatpush.msra.mxu0 0.0
    %2348 = vmatpush.msra.mxu0 0.0
    %2349 = vmatpush.msra.mxu0 0.0
    %2350 = vmatpush.msra.mxu0 0.0
    %2351 = vmatpush.msra.mxu0 0.0
    %2352 = vmatpush.msra.mxu0 0.0
    %2353 = vmatpush.msra.mxu0 %v2338
    %2354 = vmatpush.msra.mxu0 %v2330
    %2355 = vmatpush.msra.mxu0 %v2329
    %2356 = vmatmul.f32.gmra.mxu0 %v2291
    %v2357 = vpop.f32.mrf.mxu0
    %v2358 = vadd.f32 %v2335, %v2357
    %2359 = vmatmul.f32.gmra.mxu0 %v2294
    %v2360 = vpop.f32.mrf.mxu0
    %v2361 = vadd.f32 %v2335, %v2360
    %2362 = vmatmul.f32.gmra.mxu0 %v2297
    %v2363 = vpop.f32.mrf.mxu0
    %v2364 = vadd.f32 %v2335, %v2363
    %2365 = vdwg.mxu0
    %s2366 = scalar_lea.vmem %s25, 24
    %v2367 = vld [vmem:[%s2366] sm:$0xff]
    %v2368 = vld [vmem:[%s2366 + $0x8] sm:$0xff]
    %v2369 = vld [vmem:[%s2366 + $0x10] sm:$0xf]
    %s2370 = scalar_lea.vmem %s31, 1
    %v2371 = vld [vmem:[%s2370] sm:$0x1]
    %v2373 = vperm.slane %v2371, 0
    %v2376 = vsel %vm166, %v2369, 0
    %2378 = vmatpush.msra.mxu0 0.0
    %2379 = vmatpush.msra.mxu0 0.0
    %2380 = vmatpush.msra.mxu0 0.0
    %2381 = vmatpush.msra.mxu0 0.0
    %2382 = vmatpush.msra.mxu0 0.0
    %2383 = vmatpush.msra.mxu0 0.0
    %2384 = vmatpush.msra.mxu0 0.0
    %2385 = vmatpush.msra.mxu0 0.0
    %2386 = vmatpush.msra.mxu0 0.0
    %2387 = vmatpush.msra.mxu0 0.0
    %2388 = vmatpush.msra.mxu0 0.0
    %2389 = vmatpush.msra.mxu0 0.0
    %2390 = vmatpush.msra.mxu0 0.0
    %2391 = vmatpush.msra.mxu0 %v2376
    %2392 = vmatpush.msra.mxu0 %v2368
    %2393 = vmatpush.msra.mxu0 %v2367
    %2394 = vmatmul.f32.gmra.mxu0 %v2291
    %v2395 = vpop.f32.mrf.mxu0
    %v2396 = vadd.f32 %v2373, %v2395
    %2397 = vmatmul.f32.gmra.mxu0 %v2294
    %v2398 = vpop.f32.mrf.mxu0
    %v2399 = vadd.f32 %v2373, %v2398
    %2400 = vmatmul.f32.gmra.mxu0 %v2297
    %v2401 = vpop.f32.mrf.mxu0
    %v2402 = vadd.f32 %v2373, %v2401
    %2403 = vdwg.mxu0
    %v2405 = vsel %vm166, %v2326, 0
    %2407 = vmatpush.msra.mxu0 0.0
    %2408 = vmatpush.msra.mxu0 0.0
    %2409 = vmatpush.msra.mxu0 0.0
    %2410 = vmatpush.msra.mxu0 0.0
    %2411 = vmatpush.msra.mxu0 0.0
    %2412 = vmatpush.msra.mxu0 0.0
    %2413 = vmatpush.msra.mxu0 0.0
    %2414 = vmatpush.msra.mxu0 0.0
    %2415 = vmatpush.msra.mxu0 0.0
    %2416 = vmatpush.msra.mxu0 0.0
    %2417 = vmatpush.msra.mxu0 0.0
    %2418 = vmatpush.msra.mxu0 0.0
    %2419 = vmatpush.msra.mxu0 0.0
    %2420 = vmatpush.msra.mxu0 %v2405
    %2421 = vmatpush.msra.mxu0 %v2323
    %2422 = vmatpush.msra.mxu0 %v2320
    %2423 = vmatmul.f32.gmra.mxu0 %v347
    %v2424 = vpop.f32.mrf.mxu0
    %v2425 = vadd.f32 0.0, %v2424
    %2426 = vmatmul.f32.gmra.mxu0 %v350
    %v2427 = vpop.f32.mrf.mxu0
    %v2428 = vadd.f32 0.0, %v2427
    %2429 = vmatmul.f32.gmra.mxu0 %v353
    %v2430 = vpop.f32.mrf.mxu0
    %v2431 = vadd.f32 0.0, %v2430
    %2432 = vmatmul.f32.gmra.mxu0 %v356
    %v2433 = vpop.f32.mrf.mxu0
    %v2434 = vadd.f32 0.0, %v2433
    %2435 = vmatmul.f32.gmra.mxu0 %v359
    %v2436 = vpop.f32.mrf.mxu0
    %v2437 = vadd.f32 0.0, %v2436
    %2438 = vmatmul.f32.gmra.mxu0 %v362
    %v2439 = vpop.f32.mrf.mxu0
    %v2440 = vadd.f32 0.0, %v2439
    %2441 = vmatmul.f32.gmra.mxu0 %v365
    %v2442 = vpop.f32.mrf.mxu0
    %v2443 = vadd.f32 0.0, %v2442
    %2444 = vmatmul.f32.gmra.mxu0 %v368
    %v2445 = vpop.f32.mrf.mxu0
    %v2446 = vadd.f32 0.0, %v2445
    %2447 = vmatmul.f32.gmra.mxu0 %v371
    %v2448 = vpop.f32.mrf.mxu0
    %v2449 = vadd.f32 0.0, %v2448
    %2450 = vmatmul.f32.gmra.mxu0 %v374
    %v2451 = vpop.f32.mrf.mxu0
    %v2452 = vadd.f32 0.0, %v2451
    %2453 = vdwg.mxu0
    %v2454 = vmul.f32 %v2425, %v196
    %v2455 = vmul.f32 %v2428, %v197
    %v2456 = vmul.f32 %v2431, %v198
    %v2457 = vmul.f32 %v2434, %v199
    %v2458 = vmul.f32 %v2437, %v200
    %v2459 = vmul.f32 %v2440, %v201
    %v2460 = vmul.f32 %v2443, %v202
    %v2461 = vmul.f32 %v2446, %v203
    %v2462 = vmul.f32 %v2449, %v204
    %v2463 = vmul.f32 %v2452, %v205
    %v2465 = vsel %vm156, %v2454, 0
    %v2468 = vsel %vm156, %v2455, 0
    %v2471 = vsel %vm156, %v2456, 0
    %v2474 = vsel %vm156, %v2457, 0
    %v2477 = vsel %vm156, %v2458, 0
    %v2480 = vsel %vm156, %v2459, 0
    %v2483 = vsel %vm156, %v2460, 0
    %v2486 = vsel %vm156, %v2461, 0
    %v2489 = vsel %vm156, %v2462, 0
    %v2492 = vsel %vm156, %v2463, 0
    %v2495 = vsel %vm156, %v2358, 0
    %v2498 = vsel %vm156, %v2361, 0
    %v2501 = vsel %vm156, %v2364, 0
    %2503 = vmatpush.xpose.msra.mxu0 0.0
    %2504 = vmatpush.xpose.msra.mxu0 0.0
    %2505 = vmatpush.xpose.msra.mxu0 0.0
    %2506 = vmatpush.xpose.msra.mxu0 0.0
    %2507 = vmatpush.xpose.msra.mxu0 0.0
    %2508 = vmatpush.xpose.msra.mxu0 0.0
    %2509 = vmatpush.xpose.msra.mxu0 0.0
    %2510 = vmatpush.xpose.msra.mxu0 0.0
    %2511 = vmatpush.xpose.msra.mxu0 0.0
    %2512 = vmatpush.xpose.msra.mxu0 0.0
    %2513 = vmatpush.xpose.msra.mxu0 0.0
    %2514 = vmatpush.xpose.msra.mxu0 0.0
    %2515 = vmatpush.xpose.msra.mxu0 0.0
    %2516 = vmatpush.xpose.msra.mxu0 %v2501
    %2517 = vmatpush.xpose.msra.mxu0 %v2498
    %2518 = vmatpush.xpose.msra.mxu0 %v2495
    %2519 = vmatmul.f32.gmra.mxu0 %v2465
    %v2520 = vpop.f32.mrf.mxu0
    %v2521 = vadd.f32 0.0, %v2520
    %2522 = vmatmul.f32.gmra.mxu0 %v2468
    %v2523 = vpop.f32.mrf.mxu0
    %v2524 = vadd.f32 0.0, %v2523
    %2525 = vmatmul.f32.gmra.mxu0 %v2471
    %v2526 = vpop.f32.mrf.mxu0
    %v2527 = vadd.f32 0.0, %v2526
    %2528 = vmatmul.f32.gmra.mxu0 %v2474
    %v2529 = vpop.f32.mrf.mxu0
    %v2530 = vadd.f32 0.0, %v2529
    %2531 = vmatmul.f32.gmra.mxu0 %v2477
    %v2532 = vpop.f32.mrf.mxu0
    %v2533 = vadd.f32 0.0, %v2532
    %2534 = vmatmul.f32.gmra.mxu0 %v2480
    %v2535 = vpop.f32.mrf.mxu0
    %v2536 = vadd.f32 0.0, %v2535
    %2537 = vmatmul.f32.gmra.mxu0 %v2483
    %v2538 = vpop.f32.mrf.mxu0
    %v2539 = vadd.f32 0.0, %v2538
    %2540 = vmatmul.f32.gmra.mxu0 %v2486
    %v2541 = vpop.f32.mrf.mxu0
    %v2542 = vadd.f32 0.0, %v2541
    %2543 = vmatmul.f32.gmra.mxu0 %v2489
    %v2544 = vpop.f32.mrf.mxu0
    %v2545 = vadd.f32 0.0, %v2544
    %2546 = vmatmul.f32.gmra.mxu0 %v2492
    %v2547 = vpop.f32.mrf.mxu0
    %v2548 = vadd.f32 0.0, %v2547
    %2549 = vdwg.mxu0
    %v2550 = vmul.f32 %v2521, 0.4472136
    %v2551 = vmul.f32 %v2524, 0.4472136
    %v2552 = vmul.f32 %v2527, 0.4472136
    %v2553 = vmul.f32 %v2530, 0.4472136
    %v2554 = vmul.f32 %v2533, 0.4472136
    %v2555 = vmul.f32 %v2536, 0.4472136
    %v2556 = vmul.f32 %v2539, 0.4472136
    %v2557 = vmul.f32 %v2542, 0.4472136
    %v2558 = vmul.f32 %v2545, 0.4472136
    %v2559 = vmul.f32 %v2548, 0.4472136
    %v2560 = vadd.f32 %v2550, %v219
    %v2561 = vadd.f32 %v2551, %v220
    %v2562 = vadd.f32 %v2552, %v221
    %v2563 = vadd.f32 %v2553, %v222
    %v2564 = vadd.f32 %v2554, %v223
    %v2565 = vadd.f32 %v2555, %v224
    %v2566 = vadd.f32 %v2556, %v225
    %v2567 = vadd.f32 %v2557, %v226
    %v2568 = vadd.f32 %v2558, %v227
    %v2569 = vadd.f32 %v2559, %v228
    %v2570 = vsel %vm156, %v2560, -inf
    %2571 = vmax.xlane.f32.xlu0 %v2570
    %v2572 = vpop.xlane.xlu0 %2571
    %v2573 = vsel %vm156, %v2561, -inf
    %2574 = vmax.xlane.f32.xlu0 %v2573
    %v2575 = vpop.xlane.xlu0 %2574
    %v2576 = vsel %vm156, %v2562, -inf
    %2577 = vmax.xlane.f32.xlu0 %v2576
    %v2578 = vpop.xlane.xlu0 %2577
    %v2579 = vsel %vm156, %v2563, -inf
    %2580 = vmax.xlane.f32.xlu0 %v2579
    %v2581 = vpop.xlane.xlu0 %2580
    %v2582 = vsel %vm156, %v2564, -inf
    %2583 = vmax.xlane.f32.xlu0 %v2582
    %v2584 = vpop.xlane.xlu0 %2583
    %v2585 = vsel %vm156, %v2565, -inf
    %2586 = vmax.xlane.f32.xlu0 %v2585
    %v2587 = vpop.xlane.xlu0 %2586
    %v2588 = vsel %vm156, %v2566, -inf
    %2589 = vmax.xlane.f32.xlu0 %v2588
    %v2590 = vpop.xlane.xlu0 %2589
    %v2591 = vsel %vm156, %v2567, -inf
    %2592 = vmax.xlane.f32.xlu0 %v2591
    %v2593 = vpop.xlane.xlu0 %2592
    %v2594 = vsel %vm156, %v2568, -inf
    %2595 = vmax.xlane.f32.xlu0 %v2594
    %v2596 = vpop.xlane.xlu0 %2595
    %v2597 = vsel %vm156, %v2569, -inf
    %2598 = vmax.xlane.f32.xlu0 %v2597
    %v2599 = vpop.xlane.xlu0 %2598
    %v2600 = vsub.f32 %v2560, %v2572
    %v2601 = vsub.f32 %v2561, %v2575
    %v2602 = vsub.f32 %v2562, %v2578
    %v2603 = vsub.f32 %v2563, %v2581
    %v2604 = vsub.f32 %v2564, %v2584
    %v2605 = vsub.f32 %v2565, %v2587
    %v2606 = vsub.f32 %v2566, %v2590
    %v2607 = vsub.f32 %v2567, %v2593
    %v2608 = vsub.f32 %v2568, %v2596
    %v2609 = vsub.f32 %v2569, %v2599
    %v2610 = vmul.f32 %v2600, 1.442695
    %v2611 = vpow.pop %v2610
    %v2612 = vmul.f32 %v2601, 1.442695
    %v2613 = vpow.pop %v2612
    %v2614 = vmul.f32 %v2602, 1.442695
    %v2615 = vpow.pop %v2614
    %v2616 = vmul.f32 %v2603, 1.442695
    %v2617 = vpow.pop %v2616
    %v2618 = vmul.f32 %v2604, 1.442695
    %v2619 = vpow.pop %v2618
    %v2620 = vmul.f32 %v2605, 1.442695
    %v2621 = vpow.pop %v2620
    %v2622 = vmul.f32 %v2606, 1.442695
    %v2623 = vpow.pop %v2622
    %v2624 = vmul.f32 %v2607, 1.442695
    %v2625 = vpow.pop %v2624
    %v2626 = vmul.f32 %v2608, 1.442695
    %v2627 = vpow.pop %v2626
    %v2628 = vmul.f32 %v2609, 1.442695
    %v2629 = vpow.pop %v2628
    %v2630 = vsel %vm156, %v2611, 0.0
    %2631 = vadd.xlane.f32.xlu0 %v2630
    %v2632 = vpop.xlane.xlu0 %2631
    %v2633 = vsel %vm156, %v2613, 0.0
    %2634 = vadd.xlane.f32.xlu0 %v2633
    %v2635 = vpop.xlane.xlu0 %2634
    %v2636 = vsel %vm156, %v2615, 0.0
    %2637 = vadd.xlane.f32.xlu0 %v2636
    %v2638 = vpop.xlane.xlu0 %2637
    %v2639 = vsel %vm156, %v2617, 0.0
    %2640 = vadd.xlane.f32.xlu0 %v2639
    %v2641 = vpop.xlane.xlu0 %2640
    %v2642 = vsel %vm156, %v2619, 0.0
    %2643 = vadd.xlane.f32.xlu0 %v2642
    %v2644 = vpop.xlane.xlu0 %2643
    %v2645 = vsel %vm156, %v2621, 0.0
    %2646 = vadd.xlane.f32.xlu0 %v2645
    %v2647 = vpop.xlane.xlu0 %2646
    %v2648 = vsel %vm156, %v2623, 0.0
    %2649 = vadd.xlane.f32.xlu0 %v2648
    %v2650 = vpop.xlane.xlu0 %2649
    %v2651 = vsel %vm156, %v2625, 0.0
    %2652 = vadd.xlane.f32.xlu0 %v2651
    %v2653 = vpop.xlane.xlu0 %2652
    %v2654 = vsel %vm156, %v2627, 0.0
    %2655 = vadd.xlane.f32.xlu0 %v2654
    %v2656 = vpop.xlane.xlu0 %2655
    %v2657 = vsel %vm156, %v2629, 0.0
    %2658 = vadd.xlane.f32.xlu0 %v2657
    %v2659 = vpop.xlane.xlu0 %2658
    %v2660 = vrcp.pop %v2632
    %v2661 = vrcp.pop %v2635
    %v2662 = vrcp.pop %v2638
    %v2663 = vrcp.pop %v2641
    %v2664 = vrcp.pop %v2644
    %v2665 = vrcp.pop %v2647
    %v2666 = vrcp.pop %v2650
    %v2667 = vrcp.pop %v2653
    %v2668 = vrcp.pop %v2656
    %v2669 = vrcp.pop %v2659
    %v2670 = vmul.f32 %v2611, %v2660
    %v2671 = vmul.f32 %v2613, %v2661
    %v2672 = vmul.f32 %v2615, %v2662
    %v2673 = vmul.f32 %v2617, %v2663
    %v2674 = vmul.f32 %v2619, %v2664
    %v2675 = vmul.f32 %v2621, %v2665
    %v2676 = vmul.f32 %v2623, %v2666
    %v2677 = vmul.f32 %v2625, %v2667
    %v2678 = vmul.f32 %v2627, %v2668
    %v2679 = vmul.f32 %v2629, %v2669
    %v2681 = vsel %vm156, %v2670, 0
    %v2684 = vsel %vm156, %v2671, 0
    %v2687 = vsel %vm156, %v2672, 0
    %v2690 = vsel %vm156, %v2673, 0
    %v2693 = vsel %vm156, %v2674, 0
    %v2696 = vsel %vm156, %v2675, 0
    %v2699 = vsel %vm156, %v2676, 0
    %v2702 = vsel %vm156, %v2677, 0
    %v2705 = vsel %vm156, %v2678, 0
    %v2708 = vsel %vm156, %v2679, 0
    %v2711 = vsel %vm166, %v2402, 0
    %2713 = vmatpush.msra.mxu0 0.0
    %2714 = vmatpush.msra.mxu0 0.0
    %2715 = vmatpush.msra.mxu0 0.0
    %2716 = vmatpush.msra.mxu0 0.0
    %2717 = vmatpush.msra.mxu0 0.0
    %2718 = vmatpush.msra.mxu0 0.0
    %2719 = vmatpush.msra.mxu0 0.0
    %2720 = vmatpush.msra.mxu0 0.0
    %2721 = vmatpush.msra.mxu0 0.0
    %2722 = vmatpush.msra.mxu0 0.0
    %2723 = vmatpush.msra.mxu0 0.0
    %2724 = vmatpush.msra.mxu0 0.0
    %2725 = vmatpush.msra.mxu0 0.0
    %2726 = vmatpush.msra.mxu0 %v2711
    %2727 = vmatpush.msra.mxu0 %v2399
    %2728 = vmatpush.msra.mxu0 %v2396
    %2729 = vmatmul.f32.gmra.mxu0 %v2681
    %v2730 = vpop.f32.mrf.mxu0
    %v2731 = vadd.f32 0.0, %v2730
    %2732 = vmatmul.f32.gmra.mxu0 %v2684
    %v2733 = vpop.f32.mrf.mxu0
    %v2734 = vadd.f32 0.0, %v2733
    %2735 = vmatmul.f32.gmra.mxu0 %v2687
    %v2736 = vpop.f32.mrf.mxu0
    %v2737 = vadd.f32 0.0, %v2736
    %2738 = vmatmul.f32.gmra.mxu0 %v2690
    %v2739 = vpop.f32.mrf.mxu0
    %v2740 = vadd.f32 0.0, %v2739
    %2741 = vmatmul.f32.gmra.mxu0 %v2693
    %v2742 = vpop.f32.mrf.mxu0
    %v2743 = vadd.f32 0.0, %v2742
    %2744 = vmatmul.f32.gmra.mxu0 %v2696
    %v2745 = vpop.f32.mrf.mxu0
    %v2746 = vadd.f32 0.0, %v2745
    %2747 = vmatmul.f32.gmra.mxu0 %v2699
    %v2748 = vpop.f32.mrf.mxu0
    %v2749 = vadd.f32 0.0, %v2748
    %2750 = vmatmul.f32.gmra.mxu0 %v2702
    %v2751 = vpop.f32.mrf.mxu0
    %v2752 = vadd.f32 0.0, %v2751
    %2753 = vmatmul.f32.gmra.mxu0 %v2705
    %v2754 = vpop.f32.mrf.mxu0
    %v2755 = vadd.f32 0.0, %v2754
    %2756 = vmatmul.f32.gmra.mxu0 %v2708
    %v2757 = vpop.f32.mrf.mxu0
    %v2758 = vadd.f32 0.0, %v2757
    %2759 = vdwg.mxu0
    %v2760 = vmul.f32 %v2731, %v196
    %v2761 = vmul.f32 %v2734, %v197
    %v2762 = vmul.f32 %v2737, %v198
    %v2763 = vmul.f32 %v2740, %v199
    %v2764 = vmul.f32 %v2743, %v200
    %v2765 = vmul.f32 %v2746, %v201
    %v2766 = vmul.f32 %v2749, %v202
    %v2767 = vmul.f32 %v2752, %v203
    %v2768 = vmul.f32 %v2755, %v204
    %v2769 = vmul.f32 %v2758, %v205
    %2770 = vmatpush.msra.mxu0 0.0
    %2771 = vmatpush.msra.mxu0 0.0
    %2772 = vmatpush.msra.mxu0 0.0
    %2773 = vmatpush.msra.mxu0 0.0
    %2774 = vmatpush.msra.mxu0 0.0
    %2775 = vmatpush.msra.mxu0 0.0
    %2776 = vmatpush.msra.mxu0 %v2769
    %2777 = vmatpush.msra.mxu0 %v2768
    %2778 = vmatpush.msra.mxu0 %v2767
    %2779 = vmatpush.msra.mxu0 %v2766
    %2780 = vmatpush.msra.mxu0 %v2765
    %2781 = vmatpush.msra.mxu0 %v2764
    %2782 = vmatpush.msra.mxu0 %v2763
    %2783 = vmatpush.msra.mxu0 %v2762
    %2784 = vmatpush.msra.mxu0 %v2761
    %2785 = vmatpush.msra.mxu0 %v2760
    %2786 = vmatmul.f32.gmra.mxu0 %v744
    %v2787 = vpop.f32.mrf.mxu0
    %v2788 = vadd.f32 0.0, %v2787
    %2789 = vmatmul.f32.gmra.mxu0 %v747
    %v2790 = vpop.f32.mrf.mxu0
    %v2791 = vadd.f32 0.0, %v2790
    %2792 = vmatmul.f32.gmra.mxu0 %v750
    %v2793 = vpop.f32.mrf.mxu0
    %v2794 = vadd.f32 0.0, %v2793
    %2795 = vdwg.mxu0
    %s2796 = scalar_lea.vmem %s33, 24
    %v2797 = vld [vmem:[%s2796] sm:$0xff]
    %v2798 = vld [vmem:[%s2796 + $0x8] sm:$0xff]
    %v2799 = vld [vmem:[%s2796 + $0x10] sm:$0xf]
    %s2800 = scalar_lea.vmem %s35, 1
    %v2801 = vld [vmem:[%s2800] sm:$0x1]
    %v2803 = vperm.slane %v2801, 0
    %v2806 = vsel %vm156, %v2788, 0
    %v2809 = vsel %vm156, %v2791, 0
    %v2812 = vsel %vm156, %v2794, 0
    %v2815 = vsel %vm166, %v2799, 0
    %2817 = vmatpush.msra.mxu0 0.0
    %2818 = vmatpush.msra.mxu0 0.0
    %2819 = vmatpush.msra.mxu0 0.0
    %2820 = vmatpush.msra.mxu0 0.0
    %2821 = vmatpush.msra.mxu0 0.0
    %2822 = vmatpush.msra.mxu0 0.0
    %2823 = vmatpush.msra.mxu0 0.0
    %2824 = vmatpush.msra.mxu0 0.0
    %2825 = vmatpush.msra.mxu0 0.0
    %2826 = vmatpush.msra.mxu0 0.0
    %2827 = vmatpush.msra.mxu0 0.0
    %2828 = vmatpush.msra.mxu0 0.0
    %2829 = vmatpush.msra.mxu0 0.0
    %2830 = vmatpush.msra.mxu0 %v2815
    %2831 = vmatpush.msra.mxu0 %v2798
    %2832 = vmatpush.msra.mxu0 %v2797
    %2833 = vmatmul.f32.gmra.mxu0 %v2806
    %v2834 = vpop.f32.mrf.mxu0
    %v2835 = vadd.f32 %v2803, %v2834
    %2836 = vmatmul.f32.gmra.mxu0 %v2809
    %v2837 = vpop.f32.mrf.mxu0
    %v2838 = vadd.f32 %v2803, %v2837
    %2839 = vmatmul.f32.gmra.mxu0 %v2812
    %v2840 = vpop.f32.mrf.mxu0
    %v2841 = vadd.f32 %v2803, %v2840
    %2842 = vdwg.mxu0
    %v2843 = vadd.f32 %v2278, %v2835
    %v2844 = vadd.f32 %v2279, %v2838
    %v2845 = vadd.f32 %v2280, %v2841
    %s2846 = scalar_lea.vmem %s37, 1
    %v2847 = vld [vmem:[%s2846] sm:$0x1]
    %s2848 = scalar_lea.vmem %s39, 1
    %v2849 = vld [vmem:[%s2848] sm:$0x1]
    %v2850 = vsel %vm156, %v2843, 0.0
    %2851 = vadd.xlane.f32.xlu0 %v2850
    %v2852 = vpop.xlane.xlu0 %2851
    %v2853 = vsel %vm156, %v2844, 0.0
    %2854 = vadd.xlane.f32.xlu0 %v2853
    %v2855 = vpop.xlane.xlu0 %2854
    %v2856 = vsel %vm834, %v2845, 0.0
    %2857 = vadd.xlane.f32.xlu0 %v2856
    %v2858 = vpop.xlane.xlu0 %2857
    %v2859 = vmul.f32 %v2852, %v844
    %v2860 = vmul.f32 %v2855, %v844
    %v2861 = vmul.f32 %v2858, %v844
    %v2862 = vsub.f32 %v2843, %v2859
    %v2863 = vsub.f32 %v2844, %v2860
    %v2864 = vsub.f32 %v2845, %v2861
    %v2865 = vmul.f32 %v2862, %v2862
    %v2866 = vmul.f32 %v2863, %v2863
    %v2867 = vmul.f32 %v2864, %v2864
    %v2868 = vsel %vm156, %v2865, 0.0
    %2869 = vadd.xlane.f32.xlu0 %v2868
    %v2870 = vpop.xlane.xlu0 %2869
    %v2871 = vsel %vm156, %v2866, 0.0
    %2872 = vadd.xlane.f32.xlu0 %v2871
    %v2873 = vpop.xlane.xlu0 %2872
    %v2874 = vsel %vm834, %v2867, 0.0
    %2875 = vadd.xlane.f32.xlu0 %v2874
    %v2876 = vpop.xlane.xlu0 %2875
    %v2877 = vmul.f32 %v2870, %v844
    %v2878 = vmul.f32 %v2873, %v844
    %v2879 = vmul.f32 %v2876, %v844
    %v2880 = vadd.f32 %v2877, 1e-05
    %v2881 = vadd.f32 %v2878, 1e-05
    %v2882 = vadd.f32 %v2879, 1e-05
    %v2883 = vrsqrt.pop %v2880
    %v2884 = vmul.f32 %v2883, %v2880
    %v2885 = vmul.f32 %v2884, %v2883
    %v2886 = vmul.f32 0.5, %v2885
    %v2887 = vsub.f32 1.5, %v2886
    %v2888 = vmul.f32 %v2883, %v2887
    %vm2889 = vweird.f32 %v2880
    %vm2890 = vweird.f32 %v2883
    %vm2891 = vmor %vm2889, %vm2890
    %v2892 = vsel %vm2891, %v2883, %v2888
    %v2893 = vrsqrt.pop %v2881
    %v2894 = vmul.f32 %v2893, %v2881
    %v2895 = vmul.f32 %v2894, %v2893
    %v2896 = vmul.f32 0.5, %v2895
    %v2897 = vsub.f32 1.5, %v2896
    %v2898 = vmul.f32 %v2893, %v2897
    %vm2899 = vweird.f32 %v2881
    %vm2900 = vweird.f32 %v2893
    %vm2901 = vmor %vm2899, %vm2900
    %v2902 = vsel %vm2901, %v2893, %v2898
    %v2903 = vrsqrt.pop %v2882
    %v2904 = vmul.f32 %v2903, %v2882
    %v2905 = vmul.f32 %v2904, %v2903
    %v2906 = vmul.f32 0.5, %v2905
    %v2907 = vsub.f32 1.5, %v2906
    %v2908 = vmul.f32 %v2903, %v2907
    %vm2909 = vweird.f32 %v2882
    %vm2910 = vweird.f32 %v2903
    %vm2911 = vmor %vm2909, %vm2910
    %v2912 = vsel %vm2911, %v2903, %v2908
    %v2913 = vmul.f32 %v2862, %v2892
    %v2914 = vmul.f32 %v2863, %v2902
    %v2915 = vmul.f32 %v2864, %v2912
    %v2917 = vperm.slane %v2847, 0
    %v2919 = vmul.f32 %v2913, %v2917
    %v2920 = vmul.f32 %v2914, %v2917
    %v2921 = vmul.f32 %v2915, %v2917
    %v2923 = vperm.slane %v2849, 0
    %v2925 = vadd.f32 %v2919, %v2923
    %v2926 = vadd.f32 %v2920, %v2923
    %v2927 = vadd.f32 %v2921, %v2923
    %s2928 = scalar_lea.vmem %s45, 384
    %v2929 = vld [vmem:[%s2928] sm:$0xff]
    %v2930 = vld [vmem:[%s2928 + $0x8] sm:$0xff]
    %v2931 = vld [vmem:[%s2928 + $0x10] sm:$0xff]
    %v2932 = vld [vmem:[%s2928 + $0x18] sm:$0xff]
    %v2933 = vld [vmem:[%s2928 + $0x20] sm:$0xff]
    %v2934 = vld [vmem:[%s2928 + $0x28] sm:$0xff]
    %v2935 = vld [vmem:[%s2928 + $0x30] sm:$0xff]
    %v2936 = vld [vmem:[%s2928 + $0x38] sm:$0xff]
    %v2937 = vld [vmem:[%s2928 + $0x40] sm:$0xff]
    %v2938 = vld [vmem:[%s2928 + $0x48] sm:$0xff]
    %v2939 = vld [vmem:[%s2928 + $0x50] sm:$0xff]
    %v2940 = vld [vmem:[%s2928 + $0x58] sm:$0xff]
    %v2941 = vld [vmem:[%s2928 + $0x60] sm:$0xff]
    %v2942 = vld [vmem:[%s2928 + $0x68] sm:$0xff]
    %v2943 = vld [vmem:[%s2928 + $0x70] sm:$0xff]
    %v2944 = vld [vmem:[%s2928 + $0x78] sm:$0xff]
    %v2945 = vld [vmem:[%s2928 + $0x80] sm:$0xff]
    %v2946 = vld [vmem:[%s2928 + $0x88] sm:$0xff]
    %v2947 = vld [vmem:[%s2928 + $0x90] sm:$0xff]
    %v2948 = vld [vmem:[%s2928 + $0x98] sm:$0xff]
    %v2949 = vld [vmem:[%s2928 + $0xa0] sm:$0xff]
    %v2950 = vld [vmem:[%s2928 + $0xa8] sm:$0xff]
    %v2951 = vld [vmem:[%s2928 + $0xb0] sm:$0xff]
    %v2952 = vld [vmem:[%s2928 + $0xb8] sm:$0xff]
    %v2953 = vld [vmem:[%s2928 + $0xc0] sm:$0xff]
    %v2954 = vld [vmem:[%s2928 + $0xc8] sm:$0xff]
    %v2955 = vld [vmem:[%s2928 + $0xd0] sm:$0xff]
    %v2956 = vld [vmem:[%s2928 + $0xd8] sm:$0xff]
    %v2957 = vld [vmem:[%s2928 + $0xe0] sm:$0xff]
    %v2958 = vld [vmem:[%s2928 + $0xe8] sm:$0xff]
    %v2959 = vld [vmem:[%s2928 + $0xf0] sm:$0xff]
    %v2960 = vld [vmem:[%s2928 + $0xf8] sm:$0xff]
    %v2961 = vld [vmem:[%s2928 + $0x100] sm:$0xf]
    %v2962 = vld [vmem:[%s2928 + $0x108] sm:$0xf]
    %v2963 = vld [vmem:[%s2928 + $0x110] sm:$0xf]
    %v2964 = vld [vmem:[%s2928 + $0x118] sm:$0xf]
    %v2965 = vld [vmem:[%s2928 + $0x120] sm:$0xf]
    %v2966 = vld [vmem:[%s2928 + $0x128] sm:$0xf]
    %v2967 = vld [vmem:[%s2928 + $0x130] sm:$0xf]
    %v2968 = vld [vmem:[%s2928 + $0x138] sm:$0xf]
    %v2969 = vld [vmem:[%s2928 + $0x140] sm:$0xf]
    %v2970 = vld [vmem:[%s2928 + $0x148] sm:$0xf]
    %v2971 = vld [vmem:[%s2928 + $0x150] sm:$0xf]
    %v2972 = vld [vmem:[%s2928 + $0x158] sm:$0xf]
    %v2973 = vld [vmem:[%s2928 + $0x160] sm:$0xf]
    %v2974 = vld [vmem:[%s2928 + $0x168] sm:$0xf]
    %v2975 = vld [vmem:[%s2928 + $0x170] sm:$0xf]
    %v2976 = vld [vmem:[%s2928 + $0x178] sm:$0xf]
    %s2977 = scalar_lea.vmem %s47, 16
    %v2978 = vld [vmem:[%s2977] sm:$0xff]
    %v2979 = vld [vmem:[%s2977 + $0x8] sm:$0xff]
    %v2982 = vperm.slane %v2978, 0
    %v2983 = vperm.slane %v2978, 1
    %v2984 = vperm.slane %v2978, 2
    %v2985 = vperm.slane %v2978, 3
    %v2986 = vperm.slane %v2978, 4
    %v2987 = vperm.slane %v2978, 5
    %v2988 = vperm.slane %v2978, 6
    %v2989 = vperm.slane %v2978, 7
    %v2990 = vperm.slane %v2979, 0
    %v2991 = vperm.slane %v2979, 1
    %v2992 = vperm.slane %v2979, 2
    %v2993 = vperm.slane %v2979, 3
    %v2994 = vperm.slane %v2979, 4
    %v2995 = vperm.slane %v2979, 5
    %v2996 = vperm.slane %v2979, 6
    %v2997 = vperm.slane %v2979, 7
    %v3015 = vsel %vm156, %v2925, 0
    %v3018 = vsel %vm156, %v2926, 0
    %v3021 = vsel %vm156, %v2927, 0
    %v3024 = vsel %vm166, %v2961, 0
    %v3027 = vsel %vm166, %v2962, 0
    %v3030 = vsel %vm166, %v2963, 0
    %v3033 = vsel %vm166, %v2964, 0
    %v3036 = vsel %vm166, %v2965, 0
    %v3039 = vsel %vm166, %v2966, 0
    %v3042 = vsel %vm166, %v2967, 0
    %v3045 = vsel %vm166, %v2968, 0
    %v3048 = vsel %vm166, %v2969, 0
    %v3051 = vsel %vm166, %v2970, 0
    %v3054 = vsel %vm166, %v2971, 0
    %v3057 = vsel %vm166, %v2972, 0
    %v3060 = vsel %vm166, %v2973, 0
    %v3063 = vsel %vm166, %v2974, 0
    %v3066 = vsel %vm166, %v2975, 0
    %v3069 = vsel %vm166, %v2976, 0
    %3071 = vmatpush.msra.mxu0 0.0
    %3072 = vmatpush.msra.mxu0 0.0
    %3073 = vmatpush.msra.mxu0 0.0
    %3074 = vmatpush.msra.mxu0 0.0
    %3075 = vmatpush.msra.mxu0 0.0
    %3076 = vmatpush.msra.mxu0 0.0
    %3077 = vmatpush.msra.mxu0 0.0
    %3078 = vmatpush.msra.mxu0 0.0
    %3079 = vmatpush.msra.mxu0 0.0
    %3080 = vmatpush.msra.mxu0 0.0
    %3081 = vmatpush.msra.mxu0 0.0
    %3082 = vmatpush.msra.mxu0 0.0
    %3083 = vmatpush.msra.mxu0 0.0
    %3084 = vmatpush.msra.mxu0 %v3024
    %3085 = vmatpush.msra.mxu0 %v2945
    %3086 = vmatpush.msra.mxu0 %v2929
    %3087 = vmatmul.f32.gmra.mxu0 %v3015
    %v3088 = vpop.f32.mrf.mxu0
    %v3089 = vadd.f32 %v2982, %v3088
    %3090 = vmatmul.f32.gmra.mxu0 %v3018
    %v3091 = vpop.f32.mrf.mxu0
    %v3092 = vadd.f32 %v2982, %v3091
    %3093 = vmatmul.f32.gmra.mxu0 %v3021
    %v3094 = vpop.f32.mrf.mxu0
    %v3095 = vadd.f32 %v2982, %v3094
    %3096 = vdwg.mxu0
    %3097 = vmatpush.msra.mxu0 0.0
    %3098 = vmatpush.msra.mxu0 0.0
    %3099 = vmatpush.msra.mxu0 0.0
    %3100 = vmatpush.msra.mxu0 0.0
    %3101 = vmatpush.msra.mxu0 0.0
    %3102 = vmatpush.msra.mxu0 0.0
    %3103 = vmatpush.msra.mxu0 0.0
    %3104 = vmatpush.msra.mxu0 0.0
    %3105 = vmatpush.msra.mxu0 0.0
    %3106 = vmatpush.msra.mxu0 0.0
    %3107 = vmatpush.msra.mxu0 0.0
    %3108 = vmatpush.msra.mxu0 0.0
    %3109 = vmatpush.msra.mxu0 0.0
    %3110 = vmatpush.msra.mxu0 %v3027
    %3111 = vmatpush.msra.mxu0 %v2946
    %3112 = vmatpush.msra.mxu0 %v2930
    %3113 = vmatmul.f32.gmra.mxu0 %v3015
    %v3114 = vpop.f32.mrf.mxu0
    %v3115 = vadd.f32 %v2983, %v3114
    %3116 = vmatmul.f32.gmra.mxu0 %v3018
    %v3117 = vpop.f32.mrf.mxu0
    %v3118 = vadd.f32 %v2983, %v3117
    %3119 = vmatmul.f32.gmra.mxu0 %v3021
    %v3120 = vpop.f32.mrf.mxu0
    %v3121 = vadd.f32 %v2983, %v3120
    %3122 = vdwg.mxu0
    %3123 = vmatpush.msra.mxu0 0.0
    %3124 = vmatpush.msra.mxu0 0.0
    %3125 = vmatpush.msra.mxu0 0.0
    %3126 = vmatpush.msra.mxu0 0.0
    %3127 = vmatpush.msra.mxu0 0.0
    %3128 = vmatpush.msra.mxu0 0.0
    %3129 = vmatpush.msra.mxu0 0.0
    %3130 = vmatpush.msra.mxu0 0.0
    %3131 = vmatpush.msra.mxu0 0.0
    %3132 = vmatpush.msra.mxu0 0.0
    %3133 = vmatpush.msra.mxu0 0.0
    %3134 = vmatpush.msra.mxu0 0.0
    %3135 = vmatpush.msra.mxu0 0.0
    %3136 = vmatpush.msra.mxu0 %v3030
    %3137 = vmatpush.msra.mxu0 %v2947
    %3138 = vmatpush.msra.mxu0 %v2931
    %3139 = vmatmul.f32.gmra.mxu0 %v3015
    %v3140 = vpop.f32.mrf.mxu0
    %v3141 = vadd.f32 %v2984, %v3140
    %3142 = vmatmul.f32.gmra.mxu0 %v3018
    %v3143 = vpop.f32.mrf.mxu0
    %v3144 = vadd.f32 %v2984, %v3143
    %3145 = vmatmul.f32.gmra.mxu0 %v3021
    %v3146 = vpop.f32.mrf.mxu0
    %v3147 = vadd.f32 %v2984, %v3146
    %3148 = vdwg.mxu0
    %3149 = vmatpush.msra.mxu0 0.0
    %3150 = vmatpush.msra.mxu0 0.0
    %3151 = vmatpush.msra.mxu0 0.0
    %3152 = vmatpush.msra.mxu0 0.0
    %3153 = vmatpush.msra.mxu0 0.0
    %3154 = vmatpush.msra.mxu0 0.0
    %3155 = vmatpush.msra.mxu0 0.0
    %3156 = vmatpush.msra.mxu0 0.0
    %3157 = vmatpush.msra.mxu0 0.0
    %3158 = vmatpush.msra.mxu0 0.0
    %3159 = vmatpush.msra.mxu0 0.0
    %3160 = vmatpush.msra.mxu0 0.0
    %3161 = vmatpush.msra.mxu0 0.0
    %3162 = vmatpush.msra.mxu0 %v3033
    %3163 = vmatpush.msra.mxu0 %v2948
    %3164 = vmatpush.msra.mxu0 %v2932
    %3165 = vmatmul.f32.gmra.mxu0 %v3015
    %v3166 = vpop.f32.mrf.mxu0
    %v3167 = vadd.f32 %v2985, %v3166
    %3168 = vmatmul.f32.gmra.mxu0 %v3018
    %v3169 = vpop.f32.mrf.mxu0
    %v3170 = vadd.f32 %v2985, %v3169
    %3171 = vmatmul.f32.gmra.mxu0 %v3021
    %v3172 = vpop.f32.mrf.mxu0
    %v3173 = vadd.f32 %v2985, %v3172
    %3174 = vdwg.mxu0
    %3175 = vmatpush.msra.mxu0 0.0
    %3176 = vmatpush.msra.mxu0 0.0
    %3177 = vmatpush.msra.mxu0 0.0
    %3178 = vmatpush.msra.mxu0 0.0
    %3179 = vmatpush.msra.mxu0 0.0
    %3180 = vmatpush.msra.mxu0 0.0
    %3181 = vmatpush.msra.mxu0 0.0
    %3182 = vmatpush.msra.mxu0 0.0
    %3183 = vmatpush.msra.mxu0 0.0
    %3184 = vmatpush.msra.mxu0 0.0
    %3185 = vmatpush.msra.mxu0 0.0
    %3186 = vmatpush.msra.mxu0 0.0
    %3187 = vmatpush.msra.mxu0 0.0
    %3188 = vmatpush.msra.mxu0 %v3036
    %3189 = vmatpush.msra.mxu0 %v2949
    %3190 = vmatpush.msra.mxu0 %v2933
    %3191 = vmatmul.f32.gmra.mxu0 %v3015
    %v3192 = vpop.f32.mrf.mxu0
    %v3193 = vadd.f32 %v2986, %v3192
    %3194 = vmatmul.f32.gmra.mxu0 %v3018
    %v3195 = vpop.f32.mrf.mxu0
    %v3196 = vadd.f32 %v2986, %v3195
    %3197 = vmatmul.f32.gmra.mxu0 %v3021
    %v3198 = vpop.f32.mrf.mxu0
    %v3199 = vadd.f32 %v2986, %v3198
    %3200 = vdwg.mxu0
    %3201 = vmatpush.msra.mxu0 0.0
    %3202 = vmatpush.msra.mxu0 0.0
    %3203 = vmatpush.msra.mxu0 0.0
    %3204 = vmatpush.msra.mxu0 0.0
    %3205 = vmatpush.msra.mxu0 0.0
    %3206 = vmatpush.msra.mxu0 0.0
    %3207 = vmatpush.msra.mxu0 0.0
    %3208 = vmatpush.msra.mxu0 0.0
    %3209 = vmatpush.msra.mxu0 0.0
    %3210 = vmatpush.msra.mxu0 0.0
    %3211 = vmatpush.msra.mxu0 0.0
    %3212 = vmatpush.msra.mxu0 0.0
    %3213 = vmatpush.msra.mxu0 0.0
    %3214 = vmatpush.msra.mxu0 %v3039
    %3215 = vmatpush.msra.mxu0 %v2950
    %3216 = vmatpush.msra.mxu0 %v2934
    %3217 = vmatmul.f32.gmra.mxu0 %v3015
    %v3218 = vpop.f32.mrf.mxu0
    %v3219 = vadd.f32 %v2987, %v3218
    %3220 = vmatmul.f32.gmra.mxu0 %v3018
    %v3221 = vpop.f32.mrf.mxu0
    %v3222 = vadd.f32 %v2987, %v3221
    %3223 = vmatmul.f32.gmra.mxu0 %v3021
    %v3224 = vpop.f32.mrf.mxu0
    %v3225 = vadd.f32 %v2987, %v3224
    %3226 = vdwg.mxu0
    %3227 = vmatpush.msra.mxu0 0.0
    %3228 = vmatpush.msra.mxu0 0.0
    %3229 = vmatpush.msra.mxu0 0.0
    %3230 = vmatpush.msra.mxu0 0.0
    %3231 = vmatpush.msra.mxu0 0.0
    %3232 = vmatpush.msra.mxu0 0.0
    %3233 = vmatpush.msra.mxu0 0.0
    %3234 = vmatpush.msra.mxu0 0.0
    %3235 = vmatpush.msra.mxu0 0.0
    %3236 = vmatpush.msra.mxu0 0.0
    %3237 = vmatpush.msra.mxu0 0.0
    %3238 = vmatpush.msra.mxu0 0.0
    %3239 = vmatpush.msra.mxu0 0.0
    %3240 = vmatpush.msra.mxu0 %v3042
    %3241 = vmatpush.msra.mxu0 %v2951
    %3242 = vmatpush.msra.mxu0 %v2935
    %3243 = vmatmul.f32.gmra.mxu0 %v3015
    %v3244 = vpop.f32.mrf.mxu0
    %v3245 = vadd.f32 %v2988, %v3244
    %3246 = vmatmul.f32.gmra.mxu0 %v3018
    %v3247 = vpop.f32.mrf.mxu0
    %v3248 = vadd.f32 %v2988, %v3247
    %3249 = vmatmul.f32.gmra.mxu0 %v3021
    %v3250 = vpop.f32.mrf.mxu0
    %v3251 = vadd.f32 %v2988, %v3250
    %3252 = vdwg.mxu0
    %3253 = vmatpush.msra.mxu0 0.0
    %3254 = vmatpush.msra.mxu0 0.0
    %3255 = vmatpush.msra.mxu0 0.0
    %3256 = vmatpush.msra.mxu0 0.0
    %3257 = vmatpush.msra.mxu0 0.0
    %3258 = vmatpush.msra.mxu0 0.0
    %3259 = vmatpush.msra.mxu0 0.0
    %3260 = vmatpush.msra.mxu0 0.0
    %3261 = vmatpush.msra.mxu0 0.0
    %3262 = vmatpush.msra.mxu0 0.0
    %3263 = vmatpush.msra.mxu0 0.0
    %3264 = vmatpush.msra.mxu0 0.0
    %3265 = vmatpush.msra.mxu0 0.0
    %3266 = vmatpush.msra.mxu0 %v3045
    %3267 = vmatpush.msra.mxu0 %v2952
    %3268 = vmatpush.msra.mxu0 %v2936
    %3269 = vmatmul.f32.gmra.mxu0 %v3015
    %v3270 = vpop.f32.mrf.mxu0
    %v3271 = vadd.f32 %v2989, %v3270
    %3272 = vmatmul.f32.gmra.mxu0 %v3018
    %v3273 = vpop.f32.mrf.mxu0
    %v3274 = vadd.f32 %v2989, %v3273
    %3275 = vmatmul.f32.gmra.mxu0 %v3021
    %v3276 = vpop.f32.mrf.mxu0
    %v3277 = vadd.f32 %v2989, %v3276
    %3278 = vdwg.mxu0
    %3279 = vmatpush.msra.mxu0 0.0
    %3280 = vmatpush.msra.mxu0 0.0
    %3281 = vmatpush.msra.mxu0 0.0
    %3282 = vmatpush.msra.mxu0 0.0
    %3283 = vmatpush.msra.mxu0 0.0
    %3284 = vmatpush.msra.mxu0 0.0
    %3285 = vmatpush.msra.mxu0 0.0
    %3286 = vmatpush.msra.mxu0 0.0
    %3287 = vmatpush.msra.mxu0 0.0
    %3288 = vmatpush.msra.mxu0 0.0
    %3289 = vmatpush.msra.mxu0 0.0
    %3290 = vmatpush.msra.mxu0 0.0
    %3291 = vmatpush.msra.mxu0 0.0
    %3292 = vmatpush.msra.mxu0 %v3048
    %3293 = vmatpush.msra.mxu0 %v2953
    %3294 = vmatpush.msra.mxu0 %v2937
    %3295 = vmatmul.f32.gmra.mxu0 %v3015
    %v3296 = vpop.f32.mrf.mxu0
    %v3297 = vadd.f32 %v2990, %v3296
    %3298 = vmatmul.f32.gmra.mxu0 %v3018
    %v3299 = vpop.f32.mrf.mxu0
    %v3300 = vadd.f32 %v2990, %v3299
    %3301 = vmatmul.f32.gmra.mxu0 %v3021
    %v3302 = vpop.f32.mrf.mxu0
    %v3303 = vadd.f32 %v2990, %v3302
    %3304 = vdwg.mxu0
    %3305 = vmatpush.msra.mxu0 0.0
    %3306 = vmatpush.msra.mxu0 0.0
    %3307 = vmatpush.msra.mxu0 0.0
    %3308 = vmatpush.msra.mxu0 0.0
    %3309 = vmatpush.msra.mxu0 0.0
    %3310 = vmatpush.msra.mxu0 0.0
    %3311 = vmatpush.msra.mxu0 0.0
    %3312 = vmatpush.msra.mxu0 0.0
    %3313 = vmatpush.msra.mxu0 0.0
    %3314 = vmatpush.msra.mxu0 0.0
    %3315 = vmatpush.msra.mxu0 0.0
    %3316 = vmatpush.msra.mxu0 0.0
    %3317 = vmatpush.msra.mxu0 0.0
    %3318 = vmatpush.msra.mxu0 %v3051
    %3319 = vmatpush.msra.mxu0 %v2954
    %3320 = vmatpush.msra.mxu0 %v2938
    %3321 = vmatmul.f32.gmra.mxu0 %v3015
    %v3322 = vpop.f32.mrf.mxu0
    %v3323 = vadd.f32 %v2991, %v3322
    %3324 = vmatmul.f32.gmra.mxu0 %v3018
    %v3325 = vpop.f32.mrf.mxu0
    %v3326 = vadd.f32 %v2991, %v3325
    %3327 = vmatmul.f32.gmra.mxu0 %v3021
    %v3328 = vpop.f32.mrf.mxu0
    %v3329 = vadd.f32 %v2991, %v3328
    %3330 = vdwg.mxu0
    %3331 = vmatpush.msra.mxu0 0.0
    %3332 = vmatpush.msra.mxu0 0.0
    %3333 = vmatpush.msra.mxu0 0.0
    %3334 = vmatpush.msra.mxu0 0.0
    %3335 = vmatpush.msra.mxu0 0.0
    %3336 = vmatpush.msra.mxu0 0.0
    %3337 = vmatpush.msra.mxu0 0.0
    %3338 = vmatpush.msra.mxu0 0.0
    %3339 = vmatpush.msra.mxu0 0.0
    %3340 = vmatpush.msra.mxu0 0.0
    %3341 = vmatpush.msra.mxu0 0.0
    %3342 = vmatpush.msra.mxu0 0.0
    %3343 = vmatpush.msra.mxu0 0.0
    %3344 = vmatpush.msra.mxu0 %v3054
    %3345 = vmatpush.msra.mxu0 %v2955
    %3346 = vmatpush.msra.mxu0 %v2939
    %3347 = vmatmul.f32.gmra.mxu0 %v3015
    %v3348 = vpop.f32.mrf.mxu0
    %v3349 = vadd.f32 %v2992, %v3348
    %3350 = vmatmul.f32.gmra.mxu0 %v3018
    %v3351 = vpop.f32.mrf.mxu0
    %v3352 = vadd.f32 %v2992, %v3351
    %3353 = vmatmul.f32.gmra.mxu0 %v3021
    %v3354 = vpop.f32.mrf.mxu0
    %v3355 = vadd.f32 %v2992, %v3354
    %3356 = vdwg.mxu0
    %3357 = vmatpush.msra.mxu0 0.0
    %3358 = vmatpush.msra.mxu0 0.0
    %3359 = vmatpush.msra.mxu0 0.0
    %3360 = vmatpush.msra.mxu0 0.0
    %3361 = vmatpush.msra.mxu0 0.0
    %3362 = vmatpush.msra.mxu0 0.0
    %3363 = vmatpush.msra.mxu0 0.0
    %3364 = vmatpush.msra.mxu0 0.0
    %3365 = vmatpush.msra.mxu0 0.0
    %3366 = vmatpush.msra.mxu0 0.0
    %3367 = vmatpush.msra.mxu0 0.0
    %3368 = vmatpush.msra.mxu0 0.0
    %3369 = vmatpush.msra.mxu0 0.0
    %3370 = vmatpush.msra.mxu0 %v3057
    %3371 = vmatpush.msra.mxu0 %v2956
    %3372 = vmatpush.msra.mxu0 %v2940
    %3373 = vmatmul.f32.gmra.mxu0 %v3015
    %v3374 = vpop.f32.mrf.mxu0
    %v3375 = vadd.f32 %v2993, %v3374
    %3376 = vmatmul.f32.gmra.mxu0 %v3018
    %v3377 = vpop.f32.mrf.mxu0
    %v3378 = vadd.f32 %v2993, %v3377
    %3379 = vmatmul.f32.gmra.mxu0 %v3021
    %v3380 = vpop.f32.mrf.mxu0
    %v3381 = vadd.f32 %v2993, %v3380
    %3382 = vdwg.mxu0
    %3383 = vmatpush.msra.mxu0 0.0
    %3384 = vmatpush.msra.mxu0 0.0
    %3385 = vmatpush.msra.mxu0 0.0
    %3386 = vmatpush.msra.mxu0 0.0
    %3387 = vmatpush.msra.mxu0 0.0
    %3388 = vmatpush.msra.mxu0 0.0
    %3389 = vmatpush.msra.mxu0 0.0
    %3390 = vmatpush.msra.mxu0 0.0
    %3391 = vmatpush.msra.mxu0 0.0
    %3392 = vmatpush.msra.mxu0 0.0
    %3393 = vmatpush.msra.mxu0 0.0
    %3394 = vmatpush.msra.mxu0 0.0
    %3395 = vmatpush.msra.mxu0 0.0
    %3396 = vmatpush.msra.mxu0 %v3060
    %3397 = vmatpush.msra.mxu0 %v2957
    %3398 = vmatpush.msra.mxu0 %v2941
    %3399 = vmatmul.f32.gmra.mxu0 %v3015
    %v3400 = vpop.f32.mrf.mxu0
    %v3401 = vadd.f32 %v2994, %v3400
    %3402 = vmatmul.f32.gmra.mxu0 %v3018
    %v3403 = vpop.f32.mrf.mxu0
    %v3404 = vadd.f32 %v2994, %v3403
    %3405 = vmatmul.f32.gmra.mxu0 %v3021
    %v3406 = vpop.f32.mrf.mxu0
    %v3407 = vadd.f32 %v2994, %v3406
    %3408 = vdwg.mxu0
    %3409 = vmatpush.msra.mxu0 0.0
    %3410 = vmatpush.msra.mxu0 0.0
    %3411 = vmatpush.msra.mxu0 0.0
    %3412 = vmatpush.msra.mxu0 0.0
    %3413 = vmatpush.msra.mxu0 0.0
    %3414 = vmatpush.msra.mxu0 0.0
    %3415 = vmatpush.msra.mxu0 0.0
    %3416 = vmatpush.msra.mxu0 0.0
    %3417 = vmatpush.msra.mxu0 0.0
    %3418 = vmatpush.msra.mxu0 0.0
    %3419 = vmatpush.msra.mxu0 0.0
    %3420 = vmatpush.msra.mxu0 0.0
    %3421 = vmatpush.msra.mxu0 0.0
    %3422 = vmatpush.msra.mxu0 %v3063
    %3423 = vmatpush.msra.mxu0 %v2958
    %3424 = vmatpush.msra.mxu0 %v2942
    %3425 = vmatmul.f32.gmra.mxu0 %v3015
    %v3426 = vpop.f32.mrf.mxu0
    %v3427 = vadd.f32 %v2995, %v3426
    %3428 = vmatmul.f32.gmra.mxu0 %v3018
    %v3429 = vpop.f32.mrf.mxu0
    %v3430 = vadd.f32 %v2995, %v3429
    %3431 = vmatmul.f32.gmra.mxu0 %v3021
    %v3432 = vpop.f32.mrf.mxu0
    %v3433 = vadd.f32 %v2995, %v3432
    %3434 = vdwg.mxu0
    %3435 = vmatpush.msra.mxu0 0.0
    %3436 = vmatpush.msra.mxu0 0.0
    %3437 = vmatpush.msra.mxu0 0.0
    %3438 = vmatpush.msra.mxu0 0.0
    %3439 = vmatpush.msra.mxu0 0.0
    %3440 = vmatpush.msra.mxu0 0.0
    %3441 = vmatpush.msra.mxu0 0.0
    %3442 = vmatpush.msra.mxu0 0.0
    %3443 = vmatpush.msra.mxu0 0.0
    %3444 = vmatpush.msra.mxu0 0.0
    %3445 = vmatpush.msra.mxu0 0.0
    %3446 = vmatpush.msra.mxu0 0.0
    %3447 = vmatpush.msra.mxu0 0.0
    %3448 = vmatpush.msra.mxu0 %v3066
    %3449 = vmatpush.msra.mxu0 %v2959
    %3450 = vmatpush.msra.mxu0 %v2943
    %3451 = vmatmul.f32.gmra.mxu0 %v3015
    %v3452 = vpop.f32.mrf.mxu0
    %v3453 = vadd.f32 %v2996, %v3452
    %3454 = vmatmul.f32.gmra.mxu0 %v3018
    %v3455 = vpop.f32.mrf.mxu0
    %v3456 = vadd.f32 %v2996, %v3455
    %3457 = vmatmul.f32.gmra.mxu0 %v3021
    %v3458 = vpop.f32.mrf.mxu0
    %v3459 = vadd.f32 %v2996, %v3458
    %3460 = vdwg.mxu0
    %3461 = vmatpush.msra.mxu0 0.0
    %3462 = vmatpush.msra.mxu0 0.0
    %3463 = vmatpush.msra.mxu0 0.0
    %3464 = vmatpush.msra.mxu0 0.0
    %3465 = vmatpush.msra.mxu0 0.0
    %3466 = vmatpush.msra.mxu0 0.0
    %3467 = vmatpush.msra.mxu0 0.0
    %3468 = vmatpush.msra.mxu0 0.0
    %3469 = vmatpush.msra.mxu0 0.0
    %3470 = vmatpush.msra.mxu0 0.0
    %3471 = vmatpush.msra.mxu0 0.0
    %3472 = vmatpush.msra.mxu0 0.0
    %3473 = vmatpush.msra.mxu0 0.0
    %3474 = vmatpush.msra.mxu0 %v3069
    %3475 = vmatpush.msra.mxu0 %v2960
    %3476 = vmatpush.msra.mxu0 %v2944
    %3477 = vmatmul.f32.gmra.mxu0 %v3015
    %v3478 = vpop.f32.mrf.mxu0
    %v3479 = vadd.f32 %v2997, %v3478
    %3480 = vmatmul.f32.gmra.mxu0 %v3018
    %v3481 = vpop.f32.mrf.mxu0
    %v3482 = vadd.f32 %v2997, %v3481
    %3483 = vmatmul.f32.gmra.mxu0 %v3021
    %v3484 = vpop.f32.mrf.mxu0
    %v3485 = vadd.f32 %v2997, %v3484
    %3486 = vdwg.mxu0
    %v3487 = vmax.f32 %v3089, 0.0
    %v3488 = vmax.f32 %v3115, 0.0
    %v3489 = vmax.f32 %v3141, 0.0
    %v3490 = vmax.f32 %v3167, 0.0
    %v3491 = vmax.f32 %v3193, 0.0
    %v3492 = vmax.f32 %v3219, 0.0
    %v3493 = vmax.f32 %v3245, 0.0
    %v3494 = vmax.f32 %v3271, 0.0
    %v3495 = vmax.f32 %v3297, 0.0
    %v3496 = vmax.f32 %v3323, 0.0
    %v3497 = vmax.f32 %v3349, 0.0
    %v3498 = vmax.f32 %v3375, 0.0
    %v3499 = vmax.f32 %v3401, 0.0
    %v3500 = vmax.f32 %v3427, 0.0
    %v3501 = vmax.f32 %v3453, 0.0
    %v3502 = vmax.f32 %v3479, 0.0
    %v3503 = vmax.f32 %v3092, 0.0
    %v3504 = vmax.f32 %v3118, 0.0
    %v3505 = vmax.f32 %v3144, 0.0
    %v3506 = vmax.f32 %v3170, 0.0
    %v3507 = vmax.f32 %v3196, 0.0
    %v3508 = vmax.f32 %v3222, 0.0
    %v3509 = vmax.f32 %v3248, 0.0
    %v3510 = vmax.f32 %v3274, 0.0
    %v3511 = vmax.f32 %v3300, 0.0
    %v3512 = vmax.f32 %v3326, 0.0
    %v3513 = vmax.f32 %v3352, 0.0
    %v3514 = vmax.f32 %v3378, 0.0
    %v3515 = vmax.f32 %v3404, 0.0
    %v3516 = vmax.f32 %v3430, 0.0
    %v3517 = vmax.f32 %v3456, 0.0
    %v3518 = vmax.f32 %v3482, 0.0
    %v3519 = vmax.f32 %v3095, 0.0
    %v3520 = vmax.f32 %v3121, 0.0
    %v3521 = vmax.f32 %v3147, 0.0
    %v3522 = vmax.f32 %v3173, 0.0
    %v3523 = vmax.f32 %v3199, 0.0
    %v3524 = vmax.f32 %v3225, 0.0
    %v3525 = vmax.f32 %v3251, 0.0
    %v3526 = vmax.f32 %v3277, 0.0
    %v3527 = vmax.f32 %v3303, 0.0
    %v3528 = vmax.f32 %v3329, 0.0
    %v3529 = vmax.f32 %v3355, 0.0
    %v3530 = vmax.f32 %v3381, 0.0
    %v3531 = vmax.f32 %v3407, 0.0
    %v3532 = vmax.f32 %v3433, 0.0
    %v3533 = vmax.f32 %v3459, 0.0
    %v3534 = vmax.f32 %v3485, 0.0
    %s3535 = scalar_lea.vmem %s49, 2048
    %v3536 = vld [vmem:[%s3535] sm:$0xff]
    %v3537 = vld [vmem:[%s3535 + $0x8] sm:$0xff]
    %v3538 = vld [vmem:[%s3535 + $0x10] sm:$0xff]
    %v3539 = vld [vmem:[%s3535 + $0x18] sm:$0xff]
    %v3540 = vld [vmem:[%s3535 + $0x20] sm:$0xff]
    %v3541 = vld [vmem:[%s3535 + $0x28] sm:$0xff]
    %v3542 = vld [vmem:[%s3535 + $0x30] sm:$0xff]
    %v3543 = vld [vmem:[%s3535 + $0x38] sm:$0xff]
    %v3544 = vld [vmem:[%s3535 + $0x40] sm:$0xff]
    %v3545 = vld [vmem:[%s3535 + $0x48] sm:$0xff]
    %v3546 = vld [vmem:[%s3535 + $0x50] sm:$0xff]
    %v3547 = vld [vmem:[%s3535 + $0x58] sm:$0xff]
    %v3548 = vld [vmem:[%s3535 + $0x60] sm:$0xff]
    %v3549 = vld [vmem:[%s3535 + $0x68] sm:$0xff]
    %v3550 = vld [vmem:[%s3535 + $0x70] sm:$0xff]
    %v3551 = vld [vmem:[%s3535 + $0x78] sm:$0xff]
    %v3552 = vld [vmem:[%s3535 + $0x80] sm:$0xff]
    %v3553 = vld [vmem:[%s3535 + $0x88] sm:$0xff]
    %v3554 = vld [vmem:[%s3535 + $0x90] sm:$0xff]
    %v3555 = vld [vmem:[%s3535 + $0x98] sm:$0xff]
    %v3556 = vld [vmem:[%s3535 + $0xa0] sm:$0xff]
    %v3557 = vld [vmem:[%s3535 + $0xa8] sm:$0xff]
    %v3558 = vld [vmem:[%s3535 + $0xb0] sm:$0xff]
    %v3559 = vld [vmem:[%s3535 + $0xb8] sm:$0xff]
    %v3560 = vld [vmem:[%s3535 + $0xc0] sm:$0xff]
    %v3561 = vld [vmem:[%s3535 + $0xc8] sm:$0xff]
    %v3562 = vld [vmem:[%s3535 + $0xd0] sm:$0xff]
    %v3563 = vld [vmem:[%s3535 + $0xd8] sm:$0xff]
    %v3564 = vld [vmem:[%s3535 + $0xe0] sm:$0xff]
    %v3565 = vld [vmem:[%s3535 + $0xe8] sm:$0xff]
    %v3566 = vld [vmem:[%s3535 + $0xf0] sm:$0xff]
    %v3567 = vld [vmem:[%s3535 + $0xf8] sm:$0xff]
    %v3568 = vld [vmem:[%s3535 + $0x100] sm:$0xff]
    %v3569 = vld [vmem:[%s3535 + $0x108] sm:$0xff]
    %v3570 = vld [vmem:[%s3535 + $0x110] sm:$0xff]
    %v3571 = vld [vmem:[%s3535 + $0x118] sm:$0xff]
    %v3572 = vld [vmem:[%s3535 + $0x120] sm:$0xff]
    %v3573 = vld [vmem:[%s3535 + $0x128] sm:$0xff]
    %v3574 = vld [vmem:[%s3535 + $0x130] sm:$0xff]
    %v3575 = vld [vmem:[%s3535 + $0x138] sm:$0xff]
    %v3576 = vld [vmem:[%s3535 + $0x140] sm:$0xff]
    %v3577 = vld [vmem:[%s3535 + $0x148] sm:$0xff]
    %v3578 = vld [vmem:[%s3535 + $0x150] sm:$0xff]
    %v3579 = vld [vmem:[%s3535 + $0x158] sm:$0xff]
    %v3580 = vld [vmem:[%s3535 + $0x160] sm:$0xff]
    %v3581 = vld [vmem:[%s3535 + $0x168] sm:$0xff]
    %v3582 = vld [vmem:[%s3535 + $0x170] sm:$0xff]
    %v3583 = vld [vmem:[%s3535 + $0x178] sm:$0xff]
    %v3584 = vld [vmem:[%s3535 + $0x180] sm:$0xff]
    %v3585 = vld [vmem:[%s3535 + $0x188] sm:$0xff]
    %v3586 = vld [vmem:[%s3535 + $0x190] sm:$0xff]
    %v3587 = vld [vmem:[%s3535 + $0x198] sm:$0xff]
    %v3588 = vld [vmem:[%s3535 + $0x1a0] sm:$0xff]
    %v3589 = vld [vmem:[%s3535 + $0x1a8] sm:$0xff]
    %v3590 = vld [vmem:[%s3535 + $0x1b0] sm:$0xff]
    %v3591 = vld [vmem:[%s3535 + $0x1b8] sm:$0xff]
    %v3592 = vld [vmem:[%s3535 + $0x1c0] sm:$0xff]
    %v3593 = vld [vmem:[%s3535 + $0x1c8] sm:$0xff]
    %v3594 = vld [vmem:[%s3535 + $0x1d0] sm:$0xff]
    %v3595 = vld [vmem:[%s3535 + $0x1d8] sm:$0xff]
    %v3596 = vld [vmem:[%s3535 + $0x1e0] sm:$0xff]
    %v3597 = vld [vmem:[%s3535 + $0x1e8] sm:$0xff]
    %v3598 = vld [vmem:[%s3535 + $0x1f0] sm:$0xff]
    %v3599 = vld [vmem:[%s3535 + $0x1f8] sm:$0xff]
    %v3600 = vld [vmem:[%s3535 + $0x200] sm:$0xff]
    %v3601 = vld [vmem:[%s3535 + $0x208] sm:$0xff]
    %v3602 = vld [vmem:[%s3535 + $0x210] sm:$0xff]
    %v3603 = vld [vmem:[%s3535 + $0x218] sm:$0xff]
    %v3604 = vld [vmem:[%s3535 + $0x220] sm:$0xff]
    %v3605 = vld [vmem:[%s3535 + $0x228] sm:$0xff]
    %v3606 = vld [vmem:[%s3535 + $0x230] sm:$0xff]
    %v3607 = vld [vmem:[%s3535 + $0x238] sm:$0xff]
    %v3608 = vld [vmem:[%s3535 + $0x240] sm:$0xff]
    %v3609 = vld [vmem:[%s3535 + $0x248] sm:$0xff]
    %v3610 = vld [vmem:[%s3535 + $0x250] sm:$0xff]
    %v3611 = vld [vmem:[%s3535 + $0x258] sm:$0xff]
    %v3612 = vld [vmem:[%s3535 + $0x260] sm:$0xff]
    %v3613 = vld [vmem:[%s3535 + $0x268] sm:$0xff]
    %v3614 = vld [vmem:[%s3535 + $0x270] sm:$0xff]
    %v3615 = vld [vmem:[%s3535 + $0x278] sm:$0xff]
    %v3616 = vld [vmem:[%s3535 + $0x280] sm:$0xff]
    %v3617 = vld [vmem:[%s3535 + $0x288] sm:$0xff]
    %v3618 = vld [vmem:[%s3535 + $0x290] sm:$0xff]
    %v3619 = vld [vmem:[%s3535 + $0x298] sm:$0xff]
    %v3620 = vld [vmem:[%s3535 + $0x2a0] sm:$0xff]
    %v3621 = vld [vmem:[%s3535 + $0x2a8] sm:$0xff]
    %v3622 = vld [vmem:[%s3535 + $0x2b0] sm:$0xff]
    %v3623 = vld [vmem:[%s3535 + $0x2b8] sm:$0xff]
    %v3624 = vld [vmem:[%s3535 + $0x2c0] sm:$0xff]
    %v3625 = vld [vmem:[%s3535 + $0x2c8] sm:$0xff]
    %v3626 = vld [vmem:[%s3535 + $0x2d0] sm:$0xff]
    %v3627 = vld [vmem:[%s3535 + $0x2d8] sm:$0xff]
    %v3628 = vld [vmem:[%s3535 + $0x2e0] sm:$0xff]
    %v3629 = vld [vmem:[%s3535 + $0x2e8] sm:$0xff]
    %v3630 = vld [vmem:[%s3535 + $0x2f0] sm:$0xff]
    %v3631 = vld [vmem:[%s3535 + $0x2f8] sm:$0xff]
    %v3632 = vld [vmem:[%s3535 + $0x300] sm:$0xff]
    %v3633 = vld [vmem:[%s3535 + $0x308] sm:$0xff]
    %v3634 = vld [vmem:[%s3535 + $0x310] sm:$0xff]
    %v3635 = vld [vmem:[%s3535 + $0x318] sm:$0xff]
    %v3636 = vld [vmem:[%s3535 + $0x320] sm:$0xff]
    %v3637 = vld [vmem:[%s3535 + $0x328] sm:$0xff]
    %v3638 = vld [vmem:[%s3535 + $0x330] sm:$0xff]
    %v3639 = vld [vmem:[%s3535 + $0x338] sm:$0xff]
    %v3640 = vld [vmem:[%s3535 + $0x340] sm:$0xff]
    %v3641 = vld [vmem:[%s3535 + $0x348] sm:$0xff]
    %v3642 = vld [vmem:[%s3535 + $0x350] sm:$0xff]
    %v3643 = vld [vmem:[%s3535 + $0x358] sm:$0xff]
    %v3644 = vld [vmem:[%s3535 + $0x360] sm:$0xff]
    %v3645 = vld [vmem:[%s3535 + $0x368] sm:$0xff]
    %v3646 = vld [vmem:[%s3535 + $0x370] sm:$0xff]
    %v3647 = vld [vmem:[%s3535 + $0x378] sm:$0xff]
    %v3648 = vld [vmem:[%s3535 + $0x380] sm:$0xff]
    %v3649 = vld [vmem:[%s3535 + $0x388] sm:$0xff]
    %v3650 = vld [vmem:[%s3535 + $0x390] sm:$0xff]
    %v3651 = vld [vmem:[%s3535 + $0x398] sm:$0xff]
    %v3652 = vld [vmem:[%s3535 + $0x3a0] sm:$0xff]
    %v3653 = vld [vmem:[%s3535 + $0x3a8] sm:$0xff]
    %v3654 = vld [vmem:[%s3535 + $0x3b0] sm:$0xff]
    %v3655 = vld [vmem:[%s3535 + $0x3b8] sm:$0xff]
    %v3656 = vld [vmem:[%s3535 + $0x3c0] sm:$0xff]
    %v3657 = vld [vmem:[%s3535 + $0x3c8] sm:$0xff]
    %v3658 = vld [vmem:[%s3535 + $0x3d0] sm:$0xff]
    %v3659 = vld [vmem:[%s3535 + $0x3d8] sm:$0xff]
    %v3660 = vld [vmem:[%s3535 + $0x3e0] sm:$0xff]
    %v3661 = vld [vmem:[%s3535 + $0x3e8] sm:$0xff]
    %v3662 = vld [vmem:[%s3535 + $0x3f0] sm:$0xff]
    %v3663 = vld [vmem:[%s3535 + $0x3f8] sm:$0xff]
    %v3664 = vld [vmem:[%s3535 + $0x400] sm:$0xff]
    %v3665 = vld [vmem:[%s3535 + $0x408] sm:$0xff]
    %v3666 = vld [vmem:[%s3535 + $0x410] sm:$0xff]
    %v3667 = vld [vmem:[%s3535 + $0x418] sm:$0xff]
    %v3668 = vld [vmem:[%s3535 + $0x420] sm:$0xff]
    %v3669 = vld [vmem:[%s3535 + $0x428] sm:$0xff]
    %v3670 = vld [vmem:[%s3535 + $0x430] sm:$0xff]
    %v3671 = vld [vmem:[%s3535 + $0x438] sm:$0xff]
    %v3672 = vld [vmem:[%s3535 + $0x440] sm:$0xff]
    %v3673 = vld [vmem:[%s3535 + $0x448] sm:$0xff]
    %v3674 = vld [vmem:[%s3535 + $0x450] sm:$0xff]
    %v3675 = vld [vmem:[%s3535 + $0x458] sm:$0xff]
    %v3676 = vld [vmem:[%s3535 + $0x460] sm:$0xff]
    %v3677 = vld [vmem:[%s3535 + $0x468] sm:$0xff]
    %v3678 = vld [vmem:[%s3535 + $0x470] sm:$0xff]
    %v3679 = vld [vmem:[%s3535 + $0x478] sm:$0xff]
    %v3680 = vld [vmem:[%s3535 + $0x480] sm:$0xff]
    %v3681 = vld [vmem:[%s3535 + $0x488] sm:$0xff]
    %v3682 = vld [vmem:[%s3535 + $0x490] sm:$0xff]
    %v3683 = vld [vmem:[%s3535 + $0x498] sm:$0xff]
    %v3684 = vld [vmem:[%s3535 + $0x4a0] sm:$0xff]
    %v3685 = vld [vmem:[%s3535 + $0x4a8] sm:$0xff]
    %v3686 = vld [vmem:[%s3535 + $0x4b0] sm:$0xff]
    %v3687 = vld [vmem:[%s3535 + $0x4b8] sm:$0xff]
    %v3688 = vld [vmem:[%s3535 + $0x4c0] sm:$0xff]
    %v3689 = vld [vmem:[%s3535 + $0x4c8] sm:$0xff]
    %v3690 = vld [vmem:[%s3535 + $0x4d0] sm:$0xff]
    %v3691 = vld [vmem:[%s3535 + $0x4d8] sm:$0xff]
    %v3692 = vld [vmem:[%s3535 + $0x4e0] sm:$0xff]
    %v3693 = vld [vmem:[%s3535 + $0x4e8] sm:$0xff]
    %v3694 = vld [vmem:[%s3535 + $0x4f0] sm:$0xff]
    %v3695 = vld [vmem:[%s3535 + $0x4f8] sm:$0xff]
    %v3696 = vld [vmem:[%s3535 + $0x500] sm:$0xff]
    %v3697 = vld [vmem:[%s3535 + $0x508] sm:$0xff]
    %v3698 = vld [vmem:[%s3535 + $0x510] sm:$0xff]
    %v3699 = vld [vmem:[%s3535 + $0x518] sm:$0xff]
    %v3700 = vld [vmem:[%s3535 + $0x520] sm:$0xff]
    %v3701 = vld [vmem:[%s3535 + $0x528] sm:$0xff]
    %v3702 = vld [vmem:[%s3535 + $0x530] sm:$0xff]
    %v3703 = vld [vmem:[%s3535 + $0x538] sm:$0xff]
    %v3704 = vld [vmem:[%s3535 + $0x540] sm:$0xff]
    %v3705 = vld [vmem:[%s3535 + $0x548] sm:$0xff]
    %v3706 = vld [vmem:[%s3535 + $0x550] sm:$0xff]
    %v3707 = vld [vmem:[%s3535 + $0x558] sm:$0xff]
    %v3708 = vld [vmem:[%s3535 + $0x560] sm:$0xff]
    %v3709 = vld [vmem:[%s3535 + $0x568] sm:$0xff]
    %v3710 = vld [vmem:[%s3535 + $0x570] sm:$0xff]
    %v3711 = vld [vmem:[%s3535 + $0x578] sm:$0xff]
    %v3712 = vld [vmem:[%s3535 + $0x580] sm:$0xff]
    %v3713 = vld [vmem:[%s3535 + $0x588] sm:$0xff]
    %v3714 = vld [vmem:[%s3535 + $0x590] sm:$0xff]
    %v3715 = vld [vmem:[%s3535 + $0x598] sm:$0xff]
    %v3716 = vld [vmem:[%s3535 + $0x5a0] sm:$0xff]
    %v3717 = vld [vmem:[%s3535 + $0x5a8] sm:$0xff]
    %v3718 = vld [vmem:[%s3535 + $0x5b0] sm:$0xff]
    %v3719 = vld [vmem:[%s3535 + $0x5b8] sm:$0xff]
    %v3720 = vld [vmem:[%s3535 + $0x5c0] sm:$0xff]
    %v3721 = vld [vmem:[%s3535 + $0x5c8] sm:$0xff]
    %v3722 = vld [vmem:[%s3535 + $0x5d0] sm:$0xff]
    %v3723 = vld [vmem:[%s3535 + $0x5d8] sm:$0xff]
    %v3724 = vld [vmem:[%s3535 + $0x5e0] sm:$0xff]
    %v3725 = vld [vmem:[%s3535 + $0x5e8] sm:$0xff]
    %v3726 = vld [vmem:[%s3535 + $0x5f0] sm:$0xff]
    %v3727 = vld [vmem:[%s3535 + $0x5f8] sm:$0xff]
    %v3728 = vld [vmem:[%s3535 + $0x600] sm:$0xff]
    %v3729 = vld [vmem:[%s3535 + $0x608] sm:$0xff]
    %v3730 = vld [vmem:[%s3535 + $0x610] sm:$0xff]
    %v3731 = vld [vmem:[%s3535 + $0x618] sm:$0xff]
    %v3732 = vld [vmem:[%s3535 + $0x620] sm:$0xff]
    %v3733 = vld [vmem:[%s3535 + $0x628] sm:$0xff]
    %v3734 = vld [vmem:[%s3535 + $0x630] sm:$0xff]
    %v3735 = vld [vmem:[%s3535 + $0x638] sm:$0xff]
    %v3736 = vld [vmem:[%s3535 + $0x640] sm:$0xff]
    %v3737 = vld [vmem:[%s3535 + $0x648] sm:$0xff]
    %v3738 = vld [vmem:[%s3535 + $0x650] sm:$0xff]
    %v3739 = vld [vmem:[%s3535 + $0x658] sm:$0xff]
    %v3740 = vld [vmem:[%s3535 + $0x660] sm:$0xff]
    %v3741 = vld [vmem:[%s3535 + $0x668] sm:$0xff]
    %v3742 = vld [vmem:[%s3535 + $0x670] sm:$0xff]
    %v3743 = vld [vmem:[%s3535 + $0x678] sm:$0xff]
    %v3744 = vld [vmem:[%s3535 + $0x680] sm:$0xff]
    %v3745 = vld [vmem:[%s3535 + $0x688] sm:$0xff]
    %v3746 = vld [vmem:[%s3535 + $0x690] sm:$0xff]
    %v3747 = vld [vmem:[%s3535 + $0x698] sm:$0xff]
    %v3748 = vld [vmem:[%s3535 + $0x6a0] sm:$0xff]
    %v3749 = vld [vmem:[%s3535 + $0x6a8] sm:$0xff]
    %v3750 = vld [vmem:[%s3535 + $0x6b0] sm:$0xff]
    %v3751 = vld [vmem:[%s3535 + $0x6b8] sm:$0xff]
    %v3752 = vld [vmem:[%s3535 + $0x6c0] sm:$0xff]
    %v3753 = vld [vmem:[%s3535 + $0x6c8] sm:$0xff]
    %v3754 = vld [vmem:[%s3535 + $0x6d0] sm:$0xff]
    %v3755 = vld [vmem:[%s3535 + $0x6d8] sm:$0xff]
    %v3756 = vld [vmem:[%s3535 + $0x6e0] sm:$0xff]
    %v3757 = vld [vmem:[%s3535 + $0x6e8] sm:$0xff]
    %v3758 = vld [vmem:[%s3535 + $0x6f0] sm:$0xff]
    %v3759 = vld [vmem:[%s3535 + $0x6f8] sm:$0xff]
    %v3760 = vld [vmem:[%s3535 + $0x700] sm:$0xff]
    %v3761 = vld [vmem:[%s3535 + $0x708] sm:$0xff]
    %v3762 = vld [vmem:[%s3535 + $0x710] sm:$0xff]
    %v3763 = vld [vmem:[%s3535 + $0x718] sm:$0xff]
    %v3764 = vld [vmem:[%s3535 + $0x720] sm:$0xff]
    %v3765 = vld [vmem:[%s3535 + $0x728] sm:$0xff]
    %v3766 = vld [vmem:[%s3535 + $0x730] sm:$0xff]
    %v3767 = vld [vmem:[%s3535 + $0x738] sm:$0xff]
    %v3768 = vld [vmem:[%s3535 + $0x740] sm:$0xff]
    %v3769 = vld [vmem:[%s3535 + $0x748] sm:$0xff]
    %v3770 = vld [vmem:[%s3535 + $0x750] sm:$0xff]
    %v3771 = vld [vmem:[%s3535 + $0x758] sm:$0xff]
    %v3772 = vld [vmem:[%s3535 + $0x760] sm:$0xff]
    %v3773 = vld [vmem:[%s3535 + $0x768] sm:$0xff]
    %v3774 = vld [vmem:[%s3535 + $0x770] sm:$0xff]
    %v3775 = vld [vmem:[%s3535 + $0x778] sm:$0xff]
    %v3776 = vld [vmem:[%s3535 + $0x780] sm:$0xff]
    %v3777 = vld [vmem:[%s3535 + $0x788] sm:$0xff]
    %v3778 = vld [vmem:[%s3535 + $0x790] sm:$0xff]
    %v3779 = vld [vmem:[%s3535 + $0x798] sm:$0xff]
    %v3780 = vld [vmem:[%s3535 + $0x7a0] sm:$0xff]
    %v3781 = vld [vmem:[%s3535 + $0x7a8] sm:$0xff]
    %v3782 = vld [vmem:[%s3535 + $0x7b0] sm:$0xff]
    %v3783 = vld [vmem:[%s3535 + $0x7b8] sm:$0xff]
    %v3784 = vld [vmem:[%s3535 + $0x7c0] sm:$0xff]
    %v3785 = vld [vmem:[%s3535 + $0x7c8] sm:$0xff]
    %v3786 = vld [vmem:[%s3535 + $0x7d0] sm:$0xff]
    %v3787 = vld [vmem:[%s3535 + $0x7d8] sm:$0xff]
    %v3788 = vld [vmem:[%s3535 + $0x7e0] sm:$0xff]
    %v3789 = vld [vmem:[%s3535 + $0x7e8] sm:$0xff]
    %v3790 = vld [vmem:[%s3535 + $0x7f0] sm:$0xff]
    %v3791 = vld [vmem:[%s3535 + $0x7f8] sm:$0xff]
    %s3792 = scalar_lea.vmem %s51, 1
    %v3793 = vld [vmem:[%s3792] sm:$0x1]
    %v3795 = vperm.slane %v3793, 0
    %3797 = vmatpush.msra.mxu0 %v3551
    %3798 = vmatpush.msra.mxu0 %v3550
    %3799 = vmatpush.msra.mxu0 %v3549
    %3800 = vmatpush.msra.mxu0 %v3548
    %3801 = vmatpush.msra.mxu0 %v3547
    %3802 = vmatpush.msra.mxu0 %v3546
    %3803 = vmatpush.msra.mxu0 %v3545
    %3804 = vmatpush.msra.mxu0 %v3544
    %3805 = vmatpush.msra.mxu0 %v3543
    %3806 = vmatpush.msra.mxu0 %v3542
    %3807 = vmatpush.msra.mxu0 %v3541
    %3808 = vmatpush.msra.mxu0 %v3540
    %3809 = vmatpush.msra.mxu0 %v3539
    %3810 = vmatpush.msra.mxu0 %v3538
    %3811 = vmatpush.msra.mxu0 %v3537
    %3812 = vmatpush.msra.mxu0 %v3536
    %3813 = vmatmul.f32.gmra.mxu0 %v3487
    %v3814 = vpop.f32.mrf.mxu0
    %v3815 = vadd.f32 %v3795, %v3814
    %3816 = vmatmul.f32.gmra.mxu0 %v3503
    %v3817 = vpop.f32.mrf.mxu0
    %v3818 = vadd.f32 %v3795, %v3817
    %3819 = vmatmul.f32.gmra.mxu0 %v3519
    %v3820 = vpop.f32.mrf.mxu0
    %v3821 = vadd.f32 %v3795, %v3820
    %3822 = vdwg.mxu0
    %3823 = vmatpush.msra.mxu0 %v3567
    %3824 = vmatpush.msra.mxu0 %v3566
    %3825 = vmatpush.msra.mxu0 %v3565
    %3826 = vmatpush.msra.mxu0 %v3564
    %3827 = vmatpush.msra.mxu0 %v3563
    %3828 = vmatpush.msra.mxu0 %v3562
    %3829 = vmatpush.msra.mxu0 %v3561
    %3830 = vmatpush.msra.mxu0 %v3560
    %3831 = vmatpush.msra.mxu0 %v3559
    %3832 = vmatpush.msra.mxu0 %v3558
    %3833 = vmatpush.msra.mxu0 %v3557
    %3834 = vmatpush.msra.mxu0 %v3556
    %3835 = vmatpush.msra.mxu0 %v3555
    %3836 = vmatpush.msra.mxu0 %v3554
    %3837 = vmatpush.msra.mxu0 %v3553
    %3838 = vmatpush.msra.mxu0 %v3552
    %3839 = vmatmul.f32.gmra.mxu0 %v3488
    %v3840 = vpop.f32.mrf.mxu0
    %v3841 = vadd.f32 %v3815, %v3840
    %3842 = vmatmul.f32.gmra.mxu0 %v3504
    %v3843 = vpop.f32.mrf.mxu0
    %v3844 = vadd.f32 %v3818, %v3843
    %3845 = vmatmul.f32.gmra.mxu0 %v3520
    %v3846 = vpop.f32.mrf.mxu0
    %v3847 = vadd.f32 %v3821, %v3846
    %3848 = vdwg.mxu0
    %3849 = vmatpush.msra.mxu0 %v3583
    %3850 = vmatpush.msra.mxu0 %v3582
    %3851 = vmatpush.msra.mxu0 %v3581
    %3852 = vmatpush.msra.mxu0 %v3580
    %3853 = vmatpush.msra.mxu0 %v3579
    %3854 = vmatpush.msra.mxu0 %v3578
    %3855 = vmatpush.msra.mxu0 %v3577
    %3856 = vmatpush.msra.mxu0 %v3576
    %3857 = vmatpush.msra.mxu0 %v3575
    %3858 = vmatpush.msra.mxu0 %v3574
    %3859 = vmatpush.msra.mxu0 %v3573
    %3860 = vmatpush.msra.mxu0 %v3572
    %3861 = vmatpush.msra.mxu0 %v3571
    %3862 = vmatpush.msra.mxu0 %v3570
    %3863 = vmatpush.msra.mxu0 %v3569
    %3864 = vmatpush.msra.mxu0 %v3568
    %3865 = vmatmul.f32.gmra.mxu0 %v3489
    %v3866 = vpop.f32.mrf.mxu0
    %v3867 = vadd.f32 %v3841, %v3866
    %3868 = vmatmul.f32.gmra.mxu0 %v3505
    %v3869 = vpop.f32.mrf.mxu0
    %v3870 = vadd.f32 %v3844, %v3869
    %3871 = vmatmul.f32.gmra.mxu0 %v3521
    %v3872 = vpop.f32.mrf.mxu0
    %v3873 = vadd.f32 %v3847, %v3872
    %3874 = vdwg.mxu0
    %3875 = vmatpush.msra.mxu0 %v3599
    %3876 = vmatpush.msra.mxu0 %v3598
    %3877 = vmatpush.msra.mxu0 %v3597
    %3878 = vmatpush.msra.mxu0 %v3596
    %3879 = vmatpush.msra.mxu0 %v3595
    %3880 = vmatpush.msra.mxu0 %v3594
    %3881 = vmatpush.msra.mxu0 %v3593
    %3882 = vmatpush.msra.mxu0 %v3592
    %3883 = vmatpush.msra.mxu0 %v3591
    %3884 = vmatpush.msra.mxu0 %v3590
    %3885 = vmatpush.msra.mxu0 %v3589
    %3886 = vmatpush.msra.mxu0 %v3588
    %3887 = vmatpush.msra.mxu0 %v3587
    %3888 = vmatpush.msra.mxu0 %v3586
    %3889 = vmatpush.msra.mxu0 %v3585
    %3890 = vmatpush.msra.mxu0 %v3584
    %3891 = vmatmul.f32.gmra.mxu0 %v3490
    %v3892 = vpop.f32.mrf.mxu0
    %v3893 = vadd.f32 %v3867, %v3892
    %3894 = vmatmul.f32.gmra.mxu0 %v3506
    %v3895 = vpop.f32.mrf.mxu0
    %v3896 = vadd.f32 %v3870, %v3895
    %3897 = vmatmul.f32.gmra.mxu0 %v3522
    %v3898 = vpop.f32.mrf.mxu0
    %v3899 = vadd.f32 %v3873, %v3898
    %3900 = vdwg.mxu0
    %3901 = vmatpush.msra.mxu0 %v3615
    %3902 = vmatpush.msra.mxu0 %v3614
    %3903 = vmatpush.msra.mxu0 %v3613
    %3904 = vmatpush.msra.mxu0 %v3612
    %3905 = vmatpush.msra.mxu0 %v3611
    %3906 = vmatpush.msra.mxu0 %v3610
    %3907 = vmatpush.msra.mxu0 %v3609
    %3908 = vmatpush.msra.mxu0 %v3608
    %3909 = vmatpush.msra.mxu0 %v3607
    %3910 = vmatpush.msra.mxu0 %v3606
    %3911 = vmatpush.msra.mxu0 %v3605
    %3912 = vmatpush.msra.mxu0 %v3604
    %3913 = vmatpush.msra.mxu0 %v3603
    %3914 = vmatpush.msra.mxu0 %v3602
    %3915 = vmatpush.msra.mxu0 %v3601
    %3916 = vmatpush.msra.mxu0 %v3600
    %3917 = vmatmul.f32.gmra.mxu0 %v3491
    %v3918 = vpop.f32.mrf.mxu0
    %v3919 = vadd.f32 %v3893, %v3918
    %3920 = vmatmul.f32.gmra.mxu0 %v3507
    %v3921 = vpop.f32.mrf.mxu0
    %v3922 = vadd.f32 %v3896, %v3921
    %3923 = vmatmul.f32.gmra.mxu0 %v3523
    %v3924 = vpop.f32.mrf.mxu0
    %v3925 = vadd.f32 %v3899, %v3924
    %3926 = vdwg.mxu0
    %3927 = vmatpush.msra.mxu0 %v3631
    %3928 = vmatpush.msra.mxu0 %v3630
    %3929 = vmatpush.msra.mxu0 %v3629
    %3930 = vmatpush.msra.mxu0 %v3628
    %3931 = vmatpush.msra.mxu0 %v3627
    %3932 = vmatpush.msra.mxu0 %v3626
    %3933 = vmatpush.msra.mxu0 %v3625
    %3934 = vmatpush.msra.mxu0 %v3624
    %3935 = vmatpush.msra.mxu0 %v3623
    %3936 = vmatpush.msra.mxu0 %v3622
    %3937 = vmatpush.msra.mxu0 %v3621
    %3938 = vmatpush.msra.mxu0 %v3620
    %3939 = vmatpush.msra.mxu0 %v3619
    %3940 = vmatpush.msra.mxu0 %v3618
    %3941 = vmatpush.msra.mxu0 %v3617
    %3942 = vmatpush.msra.mxu0 %v3616
    %3943 = vmatmul.f32.gmra.mxu0 %v3492
    %v3944 = vpop.f32.mrf.mxu0
    %v3945 = vadd.f32 %v3919, %v3944
    %3946 = vmatmul.f32.gmra.mxu0 %v3508
    %v3947 = vpop.f32.mrf.mxu0
    %v3948 = vadd.f32 %v3922, %v3947
    %3949 = vmatmul.f32.gmra.mxu0 %v3524
    %v3950 = vpop.f32.mrf.mxu0
    %v3951 = vadd.f32 %v3925, %v3950
    %3952 = vdwg.mxu0
    %3953 = vmatpush.msra.mxu0 %v3647
    %3954 = vmatpush.msra.mxu0 %v3646
    %3955 = vmatpush.msra.mxu0 %v3645
    %3956 = vmatpush.msra.mxu0 %v3644
    %3957 = vmatpush.msra.mxu0 %v3643
    %3958 = vmatpush.msra.mxu0 %v3642
    %3959 = vmatpush.msra.mxu0 %v3641
    %3960 = vmatpush.msra.mxu0 %v3640
    %3961 = vmatpush.msra.mxu0 %v3639
    %3962 = vmatpush.msra.mxu0 %v3638
    %3963 = vmatpush.msra.mxu0 %v3637
    %3964 = vmatpush.msra.mxu0 %v3636
    %3965 = vmatpush.msra.mxu0 %v3635
    %3966 = vmatpush.msra.mxu0 %v3634
    %3967 = vmatpush.msra.mxu0 %v3633
    %3968 = vmatpush.msra.mxu0 %v3632
    %3969 = vmatmul.f32.gmra.mxu0 %v3493
    %v3970 = vpop.f32.mrf.mxu0
    %v3971 = vadd.f32 %v3945, %v3970
    %3972 = vmatmul.f32.gmra.mxu0 %v3509
    %v3973 = vpop.f32.mrf.mxu0
    %v3974 = vadd.f32 %v3948, %v3973
    %3975 = vmatmul.f32.gmra.mxu0 %v3525
    %v3976 = vpop.f32.mrf.mxu0
    %v3977 = vadd.f32 %v3951, %v3976
    %3978 = vdwg.mxu0
    %3979 = vmatpush.msra.mxu0 %v3663
    %3980 = vmatpush.msra.mxu0 %v3662
    %3981 = vmatpush.msra.mxu0 %v3661
    %3982 = vmatpush.msra.mxu0 %v3660
    %3983 = vmatpush.msra.mxu0 %v3659
    %3984 = vmatpush.msra.mxu0 %v3658
    %3985 = vmatpush.msra.mxu0 %v3657
    %3986 = vmatpush.msra.mxu0 %v3656
    %3987 = vmatpush.msra.mxu0 %v3655
    %3988 = vmatpush.msra.mxu0 %v3654
    %3989 = vmatpush.msra.mxu0 %v3653
    %3990 = vmatpush.msra.mxu0 %v3652
    %3991 = vmatpush.msra.mxu0 %v3651
    %3992 = vmatpush.msra.mxu0 %v3650
    %3993 = vmatpush.msra.mxu0 %v3649
    %3994 = vmatpush.msra.mxu0 %v3648
    %3995 = vmatmul.f32.gmra.mxu0 %v3494
    %v3996 = vpop.f32.mrf.mxu0
    %v3997 = vadd.f32 %v3971, %v3996
    %3998 = vmatmul.f32.gmra.mxu0 %v3510
    %v3999 = vpop.f32.mrf.mxu0
    %v4000 = vadd.f32 %v3974, %v3999
    %4001 = vmatmul.f32.gmra.mxu0 %v3526
    %v4002 = vpop.f32.mrf.mxu0
    %v4003 = vadd.f32 %v3977, %v4002
    %4004 = vdwg.mxu0
    %4005 = vmatpush.msra.mxu0 %v3679
    %4006 = vmatpush.msra.mxu0 %v3678
    %4007 = vmatpush.msra.mxu0 %v3677
    %4008 = vmatpush.msra.mxu0 %v3676
    %4009 = vmatpush.msra.mxu0 %v3675
    %4010 = vmatpush.msra.mxu0 %v3674
    %4011 = vmatpush.msra.mxu0 %v3673
    %4012 = vmatpush.msra.mxu0 %v3672
    %4013 = vmatpush.msra.mxu0 %v3671
    %4014 = vmatpush.msra.mxu0 %v3670
    %4015 = vmatpush.msra.mxu0 %v3669
    %4016 = vmatpush.msra.mxu0 %v3668
    %4017 = vmatpush.msra.mxu0 %v3667
    %4018 = vmatpush.msra.mxu0 %v3666
    %4019 = vmatpush.msra.mxu0 %v3665
    %4020 = vmatpush.msra.mxu0 %v3664
    %4021 = vmatmul.f32.gmra.mxu0 %v3495
    %v4022 = vpop.f32.mrf.mxu0
    %v4023 = vadd.f32 %v3997, %v4022
    %4024 = vmatmul.f32.gmra.mxu0 %v3511
    %v4025 = vpop.f32.mrf.mxu0
    %v4026 = vadd.f32 %v4000, %v4025
    %4027 = vmatmul.f32.gmra.mxu0 %v3527
    %v4028 = vpop.f32.mrf.mxu0
    %v4029 = vadd.f32 %v4003, %v4028
    %4030 = vdwg.mxu0
    %4031 = vmatpush.msra.mxu0 %v3695
    %4032 = vmatpush.msra.mxu0 %v3694
    %4033 = vmatpush.msra.mxu0 %v3693
    %4034 = vmatpush.msra.mxu0 %v3692
    %4035 = vmatpush.msra.mxu0 %v3691
    %4036 = vmatpush.msra.mxu0 %v3690
    %4037 = vmatpush.msra.mxu0 %v3689
    %4038 = vmatpush.msra.mxu0 %v3688
    %4039 = vmatpush.msra.mxu0 %v3687
    %4040 = vmatpush.msra.mxu0 %v3686
    %4041 = vmatpush.msra.mxu0 %v3685
    %4042 = vmatpush.msra.mxu0 %v3684
    %4043 = vmatpush.msra.mxu0 %v3683
    %4044 = vmatpush.msra.mxu0 %v3682
    %4045 = vmatpush.msra.mxu0 %v3681
    %4046 = vmatpush.msra.mxu0 %v3680
    %4047 = vmatmul.f32.gmra.mxu0 %v3496
    %v4048 = vpop.f32.mrf.mxu0
    %v4049 = vadd.f32 %v4023, %v4048
    %4050 = vmatmul.f32.gmra.mxu0 %v3512
    %v4051 = vpop.f32.mrf.mxu0
    %v4052 = vadd.f32 %v4026, %v4051
    %4053 = vmatmul.f32.gmra.mxu0 %v3528
    %v4054 = vpop.f32.mrf.mxu0
    %v4055 = vadd.f32 %v4029, %v4054
    %4056 = vdwg.mxu0
    %4057 = vmatpush.msra.mxu0 %v3711
    %4058 = vmatpush.msra.mxu0 %v3710
    %4059 = vmatpush.msra.mxu0 %v3709
    %4060 = vmatpush.msra.mxu0 %v3708
    %4061 = vmatpush.msra.mxu0 %v3707
    %4062 = vmatpush.msra.mxu0 %v3706
    %4063 = vmatpush.msra.mxu0 %v3705
    %4064 = vmatpush.msra.mxu0 %v3704
    %4065 = vmatpush.msra.mxu0 %v3703
    %4066 = vmatpush.msra.mxu0 %v3702
    %4067 = vmatpush.msra.mxu0 %v3701
    %4068 = vmatpush.msra.mxu0 %v3700
    %4069 = vmatpush.msra.mxu0 %v3699
    %4070 = vmatpush.msra.mxu0 %v3698
    %4071 = vmatpush.msra.mxu0 %v3697
    %4072 = vmatpush.msra.mxu0 %v3696
    %4073 = vmatmul.f32.gmra.mxu0 %v3497
    %v4074 = vpop.f32.mrf.mxu0
    %v4075 = vadd.f32 %v4049, %v4074
    %4076 = vmatmul.f32.gmra.mxu0 %v3513
    %v4077 = vpop.f32.mrf.mxu0
    %v4078 = vadd.f32 %v4052, %v4077
    %4079 = vmatmul.f32.gmra.mxu0 %v3529
    %v4080 = vpop.f32.mrf.mxu0
    %v4081 = vadd.f32 %v4055, %v4080
    %4082 = vdwg.mxu0
    %4083 = vmatpush.msra.mxu0 %v3727
    %4084 = vmatpush.msra.mxu0 %v3726
    %4085 = vmatpush.msra.mxu0 %v3725
    %4086 = vmatpush.msra.mxu0 %v3724
    %4087 = vmatpush.msra.mxu0 %v3723
    %4088 = vmatpush.msra.mxu0 %v3722
    %4089 = vmatpush.msra.mxu0 %v3721
    %4090 = vmatpush.msra.mxu0 %v3720
    %4091 = vmatpush.msra.mxu0 %v3719
    %4092 = vmatpush.msra.mxu0 %v3718
    %4093 = vmatpush.msra.mxu0 %v3717
    %4094 = vmatpush.msra.mxu0 %v3716
    %4095 = vmatpush.msra.mxu0 %v3715
    %4096 = vmatpush.msra.mxu0 %v3714
    %4097 = vmatpush.msra.mxu0 %v3713
    %4098 = vmatpush.msra.mxu0 %v3712
    %4099 = vmatmul.f32.gmra.mxu0 %v3498
    %v4100 = vpop.f32.mrf.mxu0
    %v4101 = vadd.f32 %v4075, %v4100
    %4102 = vmatmul.f32.gmra.mxu0 %v3514
    %v4103 = vpop.f32.mrf.mxu0
    %v4104 = vadd.f32 %v4078, %v4103
    %4105 = vmatmul.f32.gmra.mxu0 %v3530
    %v4106 = vpop.f32.mrf.mxu0
    %v4107 = vadd.f32 %v4081, %v4106
    %4108 = vdwg.mxu0
    %4109 = vmatpush.msra.mxu0 %v3743
    %4110 = vmatpush.msra.mxu0 %v3742
    %4111 = vmatpush.msra.mxu0 %v3741
    %4112 = vmatpush.msra.mxu0 %v3740
    %4113 = vmatpush.msra.mxu0 %v3739
    %4114 = vmatpush.msra.mxu0 %v3738
    %4115 = vmatpush.msra.mxu0 %v3737
    %4116 = vmatpush.msra.mxu0 %v3736
    %4117 = vmatpush.msra.mxu0 %v3735
    %4118 = vmatpush.msra.mxu0 %v3734
    %4119 = vmatpush.msra.mxu0 %v3733
    %4120 = vmatpush.msra.mxu0 %v3732
    %4121 = vmatpush.msra.mxu0 %v3731
    %4122 = vmatpush.msra.mxu0 %v3730
    %4123 = vmatpush.msra.mxu0 %v3729
    %4124 = vmatpush.msra.mxu0 %v3728
    %4125 = vmatmul.f32.gmra.mxu0 %v3499
    %v4126 = vpop.f32.mrf.mxu0
    %v4127 = vadd.f32 %v4101, %v4126
    %4128 = vmatmul.f32.gmra.mxu0 %v3515
    %v4129 = vpop.f32.mrf.mxu0
    %v4130 = vadd.f32 %v4104, %v4129
    %4131 = vmatmul.f32.gmra.mxu0 %v3531
    %v4132 = vpop.f32.mrf.mxu0
    %v4133 = vadd.f32 %v4107, %v4132
    %4134 = vdwg.mxu0
    %4135 = vmatpush.msra.mxu0 %v3759
    %4136 = vmatpush.msra.mxu0 %v3758
    %4137 = vmatpush.msra.mxu0 %v3757
    %4138 = vmatpush.msra.mxu0 %v3756
    %4139 = vmatpush.msra.mxu0 %v3755
    %4140 = vmatpush.msra.mxu0 %v3754
    %4141 = vmatpush.msra.mxu0 %v3753
    %4142 = vmatpush.msra.mxu0 %v3752
    %4143 = vmatpush.msra.mxu0 %v3751
    %4144 = vmatpush.msra.mxu0 %v3750
    %4145 = vmatpush.msra.mxu0 %v3749
    %4146 = vmatpush.msra.mxu0 %v3748
    %4147 = vmatpush.msra.mxu0 %v3747
    %4148 = vmatpush.msra.mxu0 %v3746
    %4149 = vmatpush.msra.mxu0 %v3745
    %4150 = vmatpush.msra.mxu0 %v3744
    %4151 = vmatmul.f32.gmra.mxu0 %v3500
    %v4152 = vpop.f32.mrf.mxu0
    %v4153 = vadd.f32 %v4127, %v4152
    %4154 = vmatmul.f32.gmra.mxu0 %v3516
    %v4155 = vpop.f32.mrf.mxu0
    %v4156 = vadd.f32 %v4130, %v4155
    %4157 = vmatmul.f32.gmra.mxu0 %v3532
    %v4158 = vpop.f32.mrf.mxu0
    %v4159 = vadd.f32 %v4133, %v4158
    %4160 = vdwg.mxu0
    %4161 = vmatpush.msra.mxu0 %v3775
    %4162 = vmatpush.msra.mxu0 %v3774
    %4163 = vmatpush.msra.mxu0 %v3773
    %4164 = vmatpush.msra.mxu0 %v3772
    %4165 = vmatpush.msra.mxu0 %v3771
    %4166 = vmatpush.msra.mxu0 %v3770
    %4167 = vmatpush.msra.mxu0 %v3769
    %4168 = vmatpush.msra.mxu0 %v3768
    %4169 = vmatpush.msra.mxu0 %v3767
    %4170 = vmatpush.msra.mxu0 %v3766
    %4171 = vmatpush.msra.mxu0 %v3765
    %4172 = vmatpush.msra.mxu0 %v3764
    %4173 = vmatpush.msra.mxu0 %v3763
    %4174 = vmatpush.msra.mxu0 %v3762
    %4175 = vmatpush.msra.mxu0 %v3761
    %4176 = vmatpush.msra.mxu0 %v3760
    %4177 = vmatmul.f32.gmra.mxu0 %v3501
    %v4178 = vpop.f32.mrf.mxu0
    %v4179 = vadd.f32 %v4153, %v4178
    %4180 = vmatmul.f32.gmra.mxu0 %v3517
    %v4181 = vpop.f32.mrf.mxu0
    %v4182 = vadd.f32 %v4156, %v4181
    %4183 = vmatmul.f32.gmra.mxu0 %v3533
    %v4184 = vpop.f32.mrf.mxu0
    %v4185 = vadd.f32 %v4159, %v4184
    %4186 = vdwg.mxu0
    %4187 = vmatpush.msra.mxu0 %v3791
    %4188 = vmatpush.msra.mxu0 %v3790
    %4189 = vmatpush.msra.mxu0 %v3789
    %4190 = vmatpush.msra.mxu0 %v3788
    %4191 = vmatpush.msra.mxu0 %v3787
    %4192 = vmatpush.msra.mxu0 %v3786
    %4193 = vmatpush.msra.mxu0 %v3785
    %4194 = vmatpush.msra.mxu0 %v3784
    %4195 = vmatpush.msra.mxu0 %v3783
    %4196 = vmatpush.msra.mxu0 %v3782
    %4197 = vmatpush.msra.mxu0 %v3781
    %4198 = vmatpush.msra.mxu0 %v3780
    %4199 = vmatpush.msra.mxu0 %v3779
    %4200 = vmatpush.msra.mxu0 %v3778
    %4201 = vmatpush.msra.mxu0 %v3777
    %4202 = vmatpush.msra.mxu0 %v3776
    %4203 = vmatmul.f32.gmra.mxu0 %v3502
    %v4204 = vpop.f32.mrf.mxu0
    %v4205 = vadd.f32 %v4179, %v4204
    %4206 = vmatmul.f32.gmra.mxu0 %v3518
    %v4207 = vpop.f32.mrf.mxu0
    %v4208 = vadd.f32 %v4182, %v4207
    %4209 = vmatmul.f32.gmra.mxu0 %v3534
    %v4210 = vpop.f32.mrf.mxu0
    %v4211 = vadd.f32 %v4185, %v4210
    %4212 = vdwg.mxu0
    %v4213 = vadd.f32 %v2925, %v4205
    %v4214 = vadd.f32 %v2926, %v4208
    %v4215 = vadd.f32 %v2927, %v4211
    %s4216 = scalar_lea.vmem %s41, 1
    %v4217 = vld [vmem:[%s4216] sm:$0x1]
    %s4218 = scalar_lea.vmem %s43, 1
    %v4219 = vld [vmem:[%s4218] sm:$0x1]
    %v4220 = vsel %vm156, %v4213, 0.0
    %4221 = vadd.xlane.f32.xlu0 %v4220
    %v4222 = vpop.xlane.xlu0 %4221
    %v4223 = vsel %vm156, %v4214, 0.0
    %4224 = vadd.xlane.f32.xlu0 %v4223
    %v4225 = vpop.xlane.xlu0 %4224
    %v4226 = vsel %vm834, %v4215, 0.0
    %4227 = vadd.xlane.f32.xlu0 %v4226
    %v4228 = vpop.xlane.xlu0 %4227
    %v4229 = vmul.f32 %v4222, %v844
    %v4230 = vmul.f32 %v4225, %v844
    %v4231 = vmul.f32 %v4228, %v844
    %v4232 = vsub.f32 %v4213, %v4229
    %v4233 = vsub.f32 %v4214, %v4230
    %v4234 = vsub.f32 %v4215, %v4231
    %v4235 = vmul.f32 %v4232, %v4232
    %v4236 = vmul.f32 %v4233, %v4233
    %v4237 = vmul.f32 %v4234, %v4234
    %v4238 = vsel %vm156, %v4235, 0.0
    %4239 = vadd.xlane.f32.xlu0 %v4238
    %v4240 = vpop.xlane.xlu0 %4239
    %v4241 = vsel %vm156, %v4236, 0.0
    %4242 = vadd.xlane.f32.xlu0 %v4241
    %v4243 = vpop.xlane.xlu0 %4242
    %v4244 = vsel %vm834, %v4237, 0.0
    %4245 = vadd.xlane.f32.xlu0 %v4244
    %v4246 = vpop.xlane.xlu0 %4245
    %v4247 = vmul.f32 %v4240, %v844
    %v4248 = vmul.f32 %v4243, %v844
    %v4249 = vmul.f32 %v4246, %v844
    %v4250 = vadd.f32 %v4247, 1e-05
    %v4251 = vadd.f32 %v4248, 1e-05
    %v4252 = vadd.f32 %v4249, 1e-05
    %v4253 = vrsqrt.pop %v4250
    %v4254 = vmul.f32 %v4253, %v4250
    %v4255 = vmul.f32 %v4254, %v4253
    %v4256 = vmul.f32 0.5, %v4255
    %v4257 = vsub.f32 1.5, %v4256
    %v4258 = vmul.f32 %v4253, %v4257
    %vm4259 = vweird.f32 %v4250
    %vm4260 = vweird.f32 %v4253
    %vm4261 = vmor %vm4259, %vm4260
    %v4262 = vsel %vm4261, %v4253, %v4258
    %v4263 = vrsqrt.pop %v4251
    %v4264 = vmul.f32 %v4263, %v4251
    %v4265 = vmul.f32 %v4264, %v4263
    %v4266 = vmul.f32 0.5, %v4265
    %v4267 = vsub.f32 1.5, %v4266
    %v4268 = vmul.f32 %v4263, %v4267
    %vm4269 = vweird.f32 %v4251
    %vm4270 = vweird.f32 %v4263
    %vm4271 = vmor %vm4269, %vm4270
    %v4272 = vsel %vm4271, %v4263, %v4268
    %v4273 = vrsqrt.pop %v4252
    %v4274 = vmul.f32 %v4273, %v4252
    %v4275 = vmul.f32 %v4274, %v4273
    %v4276 = vmul.f32 0.5, %v4275
    %v4277 = vsub.f32 1.5, %v4276
    %v4278 = vmul.f32 %v4273, %v4277
    %vm4279 = vweird.f32 %v4252
    %vm4280 = vweird.f32 %v4273
    %vm4281 = vmor %vm4279, %vm4280
    %v4282 = vsel %vm4281, %v4273, %v4278
    %v4283 = vmul.f32 %v4232, %v4262
    %v4284 = vmul.f32 %v4233, %v4272
    %v4285 = vmul.f32 %v4234, %v4282
    %v4287 = vperm.slane %v4217, 0
    %v4289 = vmul.f32 %v4283, %v4287
    %v4290 = vmul.f32 %v4284, %v4287
    %v4291 = vmul.f32 %v4285, %v4287
    %v4293 = vperm.slane %v4219, 0
    %v4295 = vadd.f32 %v4289, %v4293
    %v4296 = vadd.f32 %v4290, %v4293
    %v4297 = vadd.f32 %v4291, %v4293
    %v4298 = vadd.f32 %v4295, %v2278
    %v4299 = vadd.f32 %v4296, %v2279
    %v4300 = vadd.f32 %v4297, %v2280
    %v4301 = vld [vmem:[%s15] sm:$0xff]
    %v4302 = vld [vmem:[%s15 + $0x8] sm:$0xff]
    %v4303 = vld [vmem:[%s15 + $0x10] sm:$0xff]
    %v4304 = vld [vmem:[%s15 + $0x18] sm:$0xff]
    %v4305 = vld [vmem:[%s15 + $0x20] sm:$0xf]
    %v4306 = vld [vmem:[%s15 + $0x28] sm:$0xf]
    %v4308 = vsel %vm156, %v4298, 0
    %v4311 = vsel %vm156, %v4299, 0
    %v4314 = vsel %vm156, %v4300, 0
    %v4317 = vsel %vm166, %v4305, 0
    %v4320 = vsel %vm166, %v4306, 0
    %4322 = vmatpush.msra.mxu0 0.0
    %4323 = vmatpush.msra.mxu0 0.0
    %4324 = vmatpush.msra.mxu0 0.0
    %4325 = vmatpush.msra.mxu0 0.0
    %4326 = vmatpush.msra.mxu0 0.0
    %4327 = vmatpush.msra.mxu0 0.0
    %4328 = vmatpush.msra.mxu0 0.0
    %4329 = vmatpush.msra.mxu0 0.0
    %4330 = vmatpush.msra.mxu0 0.0
    %4331 = vmatpush.msra.mxu0 0.0
    %4332 = vmatpush.msra.mxu0 0.0
    %4333 = vmatpush.msra.mxu0 0.0
    %4334 = vmatpush.msra.mxu0 0.0
    %4335 = vmatpush.msra.mxu0 %v4317
    %4336 = vmatpush.msra.mxu0 %v4303
    %4337 = vmatpush.msra.mxu0 %v4301
    %4338 = vmatmul.f32.gmra.mxu0 %v4308
    %v4339 = vpop.f32.mrf.mxu0
    %v4340 = vadd.f32 0.0, %v4339
    %4341 = vmatmul.f32.gmra.mxu0 %v4311
    %v4342 = vpop.f32.mrf.mxu0
    %v4343 = vadd.f32 0.0, %v4342
    %4344 = vmatmul.f32.gmra.mxu0 %v4314
    %v4345 = vpop.f32.mrf.mxu0
    %v4346 = vadd.f32 0.0, %v4345
    %4347 = vdwg.mxu0
    %4348 = vmatpush.msra.mxu0 0.0
    %4349 = vmatpush.msra.mxu0 0.0
    %4350 = vmatpush.msra.mxu0 0.0
    %4351 = vmatpush.msra.mxu0 0.0
    %4352 = vmatpush.msra.mxu0 0.0
    %4353 = vmatpush.msra.mxu0 0.0
    %4354 = vmatpush.msra.mxu0 0.0
    %4355 = vmatpush.msra.mxu0 0.0
    %4356 = vmatpush.msra.mxu0 0.0
    %4357 = vmatpush.msra.mxu0 0.0
    %4358 = vmatpush.msra.mxu0 0.0
    %4359 = vmatpush.msra.mxu0 0.0
    %4360 = vmatpush.msra.mxu0 0.0
    %4361 = vmatpush.msra.mxu0 %v4320
    %4362 = vmatpush.msra.mxu0 %v4304
    %4363 = vmatpush.msra.mxu0 %v4302
    %4364 = vmatmul.f32.gmra.mxu0 %v4308
    %v4365 = vpop.f32.mrf.mxu0
    %v4366 = vadd.f32 0.0, %v4365
    %4367 = vmatmul.f32.gmra.mxu0 %v4311
    %v4368 = vpop.f32.mrf.mxu0
    %v4369 = vadd.f32 0.0, %v4368
    %4370 = vmatmul.f32.gmra.mxu0 %v4314
    %v4371 = vpop.f32.mrf.mxu0
    %v4372 = vadd.f32 0.0, %v4371
    %4373 = vdwg.mxu0
    %v4374 = vld [vmem:[%s17] sm:$0xff]
    %v4375 = vld [vmem:[%s17 + $0x8] sm:$0xff]
    %v4376 = vld [vmem:[%s17 + $0x10] sm:$0xff]
    %v4377 = vld [vmem:[%s17 + $0x18] sm:$0xff]
    %v4378 = vld [vmem:[%s17 + $0x20] sm:$0xf]
    %v4379 = vld [vmem:[%s17 + $0x28] sm:$0xf]
    %v4380 = vmul.f32 %v4340, %v4374
    %v4381 = vmul.f32 %v4366, %v4375
    %v4382 = vmul.f32 %v4343, %v4376
    %v4383 = vmul.f32 %v4369, %v4377
    %v4384 = vmul.f32 %v4346, %v4378
    %v4385 = vmul.f32 %v4372, %v4379
    %v4386 = vld [vmem:[%s53] sm:$0xff]
    %v4387 = vld [vmem:[%s53 + $0x8] sm:$0xff]
    %v4388 = vld [vmem:[%s53 + $0x10] sm:$0xff]
    %v4389 = vld [vmem:[%s53 + $0x18] sm:$0xff]
    %v4390 = vld [vmem:[%s53 + $0x20] sm:$0xff]
    %v4391 = vld [vmem:[%s53 + $0x28] sm:$0xff]
    %v4392 = vld [vmem:[%s53 + $0x30] sm:$0xff]
    %v4393 = vld [vmem:[%s53 + $0x38] sm:$0xff]
    %v4394 = vld [vmem:[%s53 + $0x40] sm:$0xff]
    %v4395 = vld [vmem:[%s53 + $0x48] sm:$0xff]
    %v4396 = vld [vmem:[%s53 + $0x50] sm:$0xff]
    %v4397 = vld [vmem:[%s53 + $0x58] sm:$0xff]
    %v4398 = vld [vmem:[%s53 + $0x60] sm:$0xff]
    %v4399 = vld [vmem:[%s53 + $0x68] sm:$0xff]
    %v4400 = vld [vmem:[%s53 + $0x70] sm:$0xff]
    %v4401 = vld [vmem:[%s53 + $0x78] sm:$0xff]
    %v4402 = vld [vmem:[%s53 + $0x80] sm:$0xff]
    %v4403 = vld [vmem:[%s53 + $0x88] sm:$0xff]
    %v4404 = vld [vmem:[%s53 + $0x90] sm:$0xff]
    %v4405 = vld [vmem:[%s53 + $0x98] sm:$0xff]
    %v4406 = vld [vmem:[%s53 + $0xa0] sm:$0xff]
    %v4407 = vld [vmem:[%s53 + $0xa8] sm:$0xff]
    %v4408 = vld [vmem:[%s53 + $0xb0] sm:$0xff]
    %v4409 = vld [vmem:[%s53 + $0xb8] sm:$0xff]
    %v4410 = vld [vmem:[%s53 + $0xc0] sm:$0xff]
    %vm4411 = vcmask 588800
    %v4413 = vsel %vm4411, %v4381, 0
    %v4416 = vsel %vm4411, %v4383, 0
    %v4419 = vsel %vm4411, %v4385, 0
    %4421 = vmatpush.msra.mxu0 %v4401
    %4422 = vmatpush.msra.mxu0 %v4400
    %4423 = vmatpush.msra.mxu0 %v4399
    %4424 = vmatpush.msra.mxu0 %v4398
    %4425 = vmatpush.msra.mxu0 %v4397
    %4426 = vmatpush.msra.mxu0 %v4396
    %4427 = vmatpush.msra.mxu0 %v4395
    %4428 = vmatpush.msra.mxu0 %v4394
    %4429 = vmatpush.msra.mxu0 %v4393
    %4430 = vmatpush.msra.mxu0 %v4392
    %4431 = vmatpush.msra.mxu0 %v4391
    %4432 = vmatpush.msra.mxu0 %v4390
    %4433 = vmatpush.msra.mxu0 %v4389
    %4434 = vmatpush.msra.mxu0 %v4388
    %4435 = vmatpush.msra.mxu0 %v4387
    %4436 = vmatpush.msra.mxu0 %v4386
    %4437 = vmatmul.f32.gmra.mxu0 %v4380
    %v4438 = vpop.f32.mrf.mxu0
    %v4439 = vadd.f32 0.0, %v4438
    %4440 = vmatmul.f32.gmra.mxu0 %v4382
    %v4441 = vpop.f32.mrf.mxu0
    %v4442 = vadd.f32 0.0, %v4441
    %4443 = vmatmul.f32.gmra.mxu0 %v4384
    %v4444 = vpop.f32.mrf.mxu0
    %v4445 = vadd.f32 0.0, %v4444
    %4446 = vdwg.mxu0
    %4447 = vmatpush.msra.mxu0 0.0
    %4448 = vmatpush.msra.mxu0 0.0
    %4449 = vmatpush.msra.mxu0 0.0
    %4450 = vmatpush.msra.mxu0 0.0
    %4451 = vmatpush.msra.mxu0 0.0
    %4452 = vmatpush.msra.mxu0 0.0
    %4453 = vmatpush.msra.mxu0 0.0
    %4454 = vmatpush.msra.mxu0 %v4410
    %4455 = vmatpush.msra.mxu0 %v4409
    %4456 = vmatpush.msra.mxu0 %v4408
    %4457 = vmatpush.msra.mxu0 %v4407
    %4458 = vmatpush.msra.mxu0 %v4406
    %4459 = vmatpush.msra.mxu0 %v4405
    %4460 = vmatpush.msra.mxu0 %v4404
    %4461 = vmatpush.msra.mxu0 %v4403
    %4462 = vmatpush.msra.mxu0 %v4402
    %4463 = vmatmul.f32.gmra.mxu0 %v4413
    %v4464 = vpop.f32.mrf.mxu0
    %v4465 = vadd.f32 %v4439, %v4464
    %4466 = vmatmul.f32.gmra.mxu0 %v4416
    %v4467 = vpop.f32.mrf.mxu0
    %v4468 = vadd.f32 %v4442, %v4467
    %4469 = vmatmul.f32.gmra.mxu0 %v4419
    %v4470 = vpop.f32.mrf.mxu0
    %v4471 = vadd.f32 %v4445, %v4470
    %4472 = vdwg.mxu0
    %v4473 = vld [vmem:[%s19] sm:$0x3]
    %v4474 = vld [vmem:[%s55] sm:$0x1]
    %v4476 = vperm.slane %v4474, 0
    %v4479 = vsel %vm156, %v4473, 0
    %v4482 = vsel %vm166, %v4471, 0
    %4484 = vmatpush.msra.mxu0 0.0
    %4485 = vmatpush.msra.mxu0 0.0
    %4486 = vmatpush.msra.mxu0 0.0
    %4487 = vmatpush.msra.mxu0 0.0
    %4488 = vmatpush.msra.mxu0 0.0
    %4489 = vmatpush.msra.mxu0 0.0
    %4490 = vmatpush.msra.mxu0 0.0
    %4491 = vmatpush.msra.mxu0 0.0
    %4492 = vmatpush.msra.mxu0 0.0
    %4493 = vmatpush.msra.mxu0 0.0
    %4494 = vmatpush.msra.mxu0 0.0
    %4495 = vmatpush.msra.mxu0 0.0
    %4496 = vmatpush.msra.mxu0 0.0
    %4497 = vmatpush.msra.mxu0 %v4482
    %4498 = vmatpush.msra.mxu0 %v4468
    %4499 = vmatpush.msra.mxu0 %v4465
    %4500 = vmatmul.f32.gmra.mxu0 %v4479
    %v4501 = vpop.f32.mrf.mxu0
    %v4502 = vadd.f32 %v4476, %v4501
    %4503 = vdwg.mxu0
    %v4504 = vmax.f32 %v4502, 0.0
    %v4505 = vld [vmem:[%s57] sm:$0xff]
    %v4506 = vld [vmem:[%s57 + $0x8] sm:$0xff]
    %v4507 = vld [vmem:[%s57 + $0x10] sm:$0xff]
    %v4508 = vld [vmem:[%s57 + $0x18] sm:$0xff]
    %v4509 = vld [vmem:[%s57 + $0x20] sm:$0xff]
    %v4510 = vld [vmem:[%s57 + $0x28] sm:$0xff]
    %v4511 = vld [vmem:[%s57 + $0x30] sm:$0xff]
    %v4512 = vld [vmem:[%s57 + $0x38] sm:$0xff]
    %v4513 = vld [vmem:[%s57 + $0x40] sm:$0xff]
    %v4514 = vld [vmem:[%s57 + $0x48] sm:$0xff]
    %v4515 = vld [vmem:[%s57 + $0x50] sm:$0xff]
    %v4516 = vld [vmem:[%s57 + $0x58] sm:$0xff]
    %v4517 = vld [vmem:[%s57 + $0x60] sm:$0xf]
    %v4518 = vld [vmem:[%s59] sm:$0x1]
    %v4520 = vperm.slane %v4518, 0
    %vm4522 = vcmask 818176
    %v4524 = vsel %vm4522, %v4504, 0
    %v4527 = vsel %vm166, %v4517, 0
    %4529 = vmatpush.msra.mxu0 0.0
    %4530 = vmatpush.msra.mxu0 0.0
    %4531 = vmatpush.msra.mxu0 0.0
    %4532 = vmatpush.msra.mxu0 %v4527
    %4533 = vmatpush.msra.mxu0 %v4516
    %4534 = vmatpush.msra.mxu0 %v4515
    %4535 = vmatpush.msra.mxu0 %v4514
    %4536 = vmatpush.msra.mxu0 %v4513
    %4537 = vmatpush.msra.mxu0 %v4512
    %4538 = vmatpush.msra.mxu0 %v4511
    %4539 = vmatpush.msra.mxu0 %v4510
    %4540 = vmatpush.msra.mxu0 %v4509
    %4541 = vmatpush.msra.mxu0 %v4508
    %4542 = vmatpush.msra.mxu0 %v4507
    %4543 = vmatpush.msra.mxu0 %v4506
    %4544 = vmatpush.msra.mxu0 %v4505
    %4545 = vmatmul.f32.gmra.mxu0 %v4524
    %v4546 = vpop.f32.mrf.mxu0
    %v4547 = vadd.f32 %v4520, %v4546
    %4548 = vdwg.mxu0
    %vm4549 = vcmask 9216
    %4550 = vst.msk [vmem:[#allocation2] sm:$0x3] %vm4549, %v4547
    // Predicated region
    $region122: #{attns2_forward.1} parent=1 // pred_check
      _
    $region123: #{attns2_forward.1} parent=1 // pred_check_branch
      %4552 = sbr.rel (0) target = $region125
    $region124: #{attns2_forward.1} parent=1 // pred_region
      %4554 = vsyncadd [#allocation3], 0
      %s4556 = sshll.u32 [#allocation2], 4
      %s4557 = int_to_ptr.vmem [resolvable:$true] %s4556
      %s4558 = sshll.u32 %s61, 4
      %s4559 = int_to_ptr.hbm [resolvable:$true] %s4558
      %4561 = dma.vmem_to_hbm [thread:$0]  %s4557, 32, %s4559, [#allocation3]
    $region125: #{attns2_forward.1} parent=1 // pred_fallthru
      _
    // Predicated region
    $region126: #{attns2_forward.1} parent=1 // pred_check
      _
    $region127: #{attns2_forward.1} parent=1 // pred_check_branch
      %4563 = sbr.rel (0) target = $region129
    $region128: #{attns2_forward.1} parent=1 // pred_region
      %4565 = dma.done [#allocation3], 32
    $region129: #{attns2_forward.1} parent=1 // pred_fallthru
      _
    %4566 = vsyncpa [#allocation3], 1

</llo_original>
